<compile_context>
chip_gen: v6e
topology: v6e:2x2x1
jax: 0.10.0
libtpu: 0.0.40
codegen_flags: <defaults>
</compile_context>

<pallas_src>
import functools
import numpy as np
import jax
import jax.numpy as jnp
from jax.experimental import pallas as pl
from jax.experimental.pallas import tpu as pltpu


# ----------------------------- in-kernel helpers -----------------------------

def _layer_norm(x, gamma, beta, eps=1e-5):
    # One-pass statistics: E[x^2] - mean^2 (two independent reductions instead
    # of a serial mean -> centered-variance chain).  f32 throughout.
    mean = jnp.mean(x, axis=-1, keepdims=True)
    meansq = jnp.mean(x * x, axis=-1, keepdims=True)
    var = jnp.maximum(meansq - mean * mean, 0.0)
    return (x - mean) * jax.lax.rsqrt(var + eps) * gamma + beta


def _mha_core(q, k, v, bias, num_heads, b_tile, tq, tk):
    """Score/softmax/context for a (b_tile*tq, D) query slab.

    q : (b_tile*tq, D) f32, Wq already carries the 1/sqrt(hd) scale.
    k, v : (b_tile*tk, D) f32.
    bias : (b_tile, tq, tk) additive mask bias (0 where attended, -1e9 masked).
    Returns merged-head context (b_tile*tq, D) f32.
    """
    d_model = q.shape[-1]
    hd = d_model // num_heads
    q = q.astype(jnp.bfloat16)
    k = k.astype(jnp.bfloat16)
    v = v.astype(jnp.bfloat16)
    outs = []
    # TODO(synk): for larger batch tiles, batch the two dot_generals over
    # B*H jointly instead of this small static per-sequence loop.
    for b in range(b_tile):
        qb = q[b * tq:(b + 1) * tq]
        kb = k[b * tk:(b + 1) * tk]
        vb = v[b * tk:(b + 1) * tk]
        qh = jnp.stack([qb[:, h * hd:(h + 1) * hd] for h in range(num_heads)])
        kh = jnp.stack([kb[:, h * hd:(h + 1) * hd] for h in range(num_heads)])
        vh = jnp.stack([vb[:, h * hd:(h + 1) * hd] for h in range(num_heads)])
        s = jax.lax.dot_general(qh, kh, (((2,), (2,)), ((0,), (0,))),
                                preferred_element_type=jnp.float32)  # (H,tq,tk)
        s = s + bias[b][None, :, :]
        m = jnp.max(s, axis=-1, keepdims=True)
        p = jnp.exp(s - m)
        denom = jnp.sum(p, axis=-1, keepdims=True)
        p = p * pl.reciprocal(denom, approx=False)
        o = jax.lax.dot_general(p.astype(jnp.bfloat16), vh,
                                (((2,), (1,)), ((0,), (0,))),
                                preferred_element_type=jnp.float32)  # (H,tq,hd)
        # Merge heads along lanes -> (tq, D); the (D, D) output projection then
        # contracts the full 128-deep dimension in a single MXU matmul.
        outs.append(jnp.concatenate([o[h] for h in range(num_heads)], axis=-1))
    return jnp.concatenate(outs, axis=0)       # (b_tile*tq, D) f32


# ----------------------------- Pallas kernel ---------------------------------

def decoder_stack_kernel(
    # data blocks (constant across the layer axis)
    x_ref, enc_ref, tbias_ref, sbias_ref,
    # per-layer weights (indexed by the layer grid axis)
    sa_wqkv, sa_bqkv, sa_wo, sa_bo,
    ca_wq, ca_bq, ca_wkv, ca_bkv, ca_wo, ca_bo,
    ff_w1, ff_b1, ff_w2, ff_b2,
    ln1_g, ln1_b, ln2_g, ln2_b, ln3_g, ln3_b,
    # output + carried activations
    out_ref, x_carry,
    *, num_heads, b_tile, seq_t, seq_s,
):
    layer = pl.program_id(1)
    d_model = x_ref.shape[-1]

    @pl.when(layer == 0)
    def _():
        x_carry[...] = x_ref[...]           # embedding + positional encoding

    x = x_carry[...]                        # (b_tile*T, D) f32 residual stream
    enc_bf = enc_ref[...]                   # (b_tile*S, D) bf16

    # ---- self attention + residual + LN -------------------------------------
    qkv = jnp.dot(x.astype(jnp.bfloat16), sa_wqkv[0],
                  preferred_element_type=jnp.float32) + sa_bqkv[0]   # (BT, 3D)
    q = qkv[:, :d_model]
    k = qkv[:, d_model:2 * d_model]
    v = qkv[:, 2 * d_model:]
    ctx = _mha_core(q, k, v, tbias_ref[...], num_heads, b_tile, seq_t, seq_t)
    sa = jnp.dot(ctx.astype(jnp.bfloat16), sa_wo[0],
                 preferred_element_type=jnp.float32) + sa_bo[0]
    x = _layer_norm(x + sa, ln1_g[0], ln1_b[0])

    # ---- cross attention + residual + LN ------------------------------------
    q = jnp.dot(x.astype(jnp.bfloat16), ca_wq[0],
                preferred_element_type=jnp.float32) + ca_bq[0]       # (BT, D)
    kv = jnp.dot(enc_bf, ca_wkv[0],
                 preferred_element_type=jnp.float32) + ca_bkv[0]     # (BS, 2D)
    k = kv[:, :d_model]
    v = kv[:, d_model:]
    ctx = _mha_core(q, k, v, sbias_ref[...], num_heads, b_tile, seq_t, seq_s)
    ca = jnp.dot(ctx.astype(jnp.bfloat16), ca_wo[0],
                 preferred_element_type=jnp.float32) + ca_bo[0]
    x = _layer_norm(x + ca, ln2_g[0], ln2_b[0])

    # ---- feed forward + residual + LN (dropout == identity in eval) ---------
    h = jnp.maximum(
        jnp.dot(x.astype(jnp.bfloat16), ff_w1[0],
                preferred_element_type=jnp.float32) + ff_b1[0], 0.0)
    ff = jnp.dot(h.astype(jnp.bfloat16), ff_w2[0],
                 preferred_element_type=jnp.float32) + ff_b2[0]
    x = _layer_norm(x + ff, ln3_g[0], ln3_b[0])

    x_carry[...] = x                        # carry to the next layer

    @pl.when(layer == pl.num_programs(1) - 1)
    def _():
        out_ref[...] = x.astype(out_ref.dtype)


_PARAM_ORDER = (
    "sa_wqkv", "sa_bqkv", "sa_wo", "sa_bo",
    "ca_wq", "ca_bq", "ca_wkv", "ca_bkv", "ca_wo", "ca_bo",
    "ff_w1", "ff_b1", "ff_w2", "ff_b2",
    "ln1_g", "ln1_b", "ln2_g", "ln2_b", "ln3_g", "ln3_b",
)
_BF16_PARAMS = {"sa_wqkv", "sa_wo", "ca_wq", "ca_wkv", "ca_wo", "ff_w1", "ff_w2"}


def decoder_stack(x, enc, tgt_bias, src_bias, stacked, *, num_heads,
                  b_tile=None):
    B, T, D = x.shape
    S = enc.shape[1]
    L = stacked["sa_wqkv"].shape[0]
    if b_tile is None:
        b_tile = B                       # fold the whole batch into the rows
    assert B % b_tile == 0
    nb = B // b_tile

    # Present lane/row-dense 2-D activation slabs to the kernel.
    x2 = x.reshape(B * T, D).astype(jnp.float32)
    enc2 = enc.reshape(B * S, D).astype(jnp.bfloat16)
    params = [stacked[n] for n in _PARAM_ORDER]

    def layer_spec(arr):
        nz = arr.ndim - 1
        return pl.BlockSpec((1,) + tuple(arr.shape[1:]),
                            lambda b, l, nz=nz: (l,) + (0,) * nz)

    in_specs = [
        pl.BlockSpec((b_tile * T, D), lambda b, l: (b, 0)),
        pl.BlockSpec((b_tile * S, D), lambda b, l: (b, 0)),
        pl.BlockSpec((b_tile, T, T), lambda b, l: (b, 0, 0)),
        pl.BlockSpec((b_tile, T, S), lambda b, l: (b, 0, 0)),
    ] + [layer_spec(a) for a in params]

    # VMEM budget: 2x (double-buffer) every per-step block + carry + headroom,
    # capped well below v7x's 64 MiB physical VMEM.
    w_bytes = sum(int(np.prod(a.shape[1:])) * a.dtype.itemsize for a in params)
    d_bytes = (b_tile * T * D * 4          # x block (f32)
               + b_tile * S * D * 2        # enc block (bf16)
               + b_tile * T * T * 4        # tgt bias
               + b_tile * T * S * 4        # src bias
               + b_tile * T * D * 4)       # output block
    carry_bytes = b_tile * T * D * 4
    vmem_limit = int(np.clip(2 * (w_bytes + d_bytes) + carry_bytes + (4 << 20),
                             16 << 20, 48 << 20))

    kernel = functools.partial(decoder_stack_kernel, num_heads=num_heads,
                               b_tile=b_tile, seq_t=T, seq_s=S)

    out = pl.pallas_call(
        kernel,
        out_shape=jax.ShapeDtypeStruct((B * T, D), jnp.float32),
        grid=(nb, L),
        in_specs=in_specs,
        out_specs=pl.BlockSpec((b_tile * T, D), lambda b, l: (b, 0)),
        scratch_shapes=[pltpu.VMEM((b_tile * T, D), jnp.float32)],
        compiler_params=pltpu.CompilerParams(
            dimension_semantics=("parallel", "arbitrary"),
            vmem_limit_bytes=vmem_limit),
    )(x2, enc2, tgt_bias, src_bias, *params)
    return out.reshape(B, T, D)


def decoder_forward(tokens, enc_output, src_mask, tgt_mask, emb, pe, stacked,
                    num_heads):
    x = jnp.take(emb, tokens, axis=0)            # embedding lookup
    x = x + pe[None, :tokens.shape[1], :]        # positional encoding
    # dropout == identity (eval mode)
    # Additive mask biases: 0 where attended, -1e9 where masked.
    tgt_bias = (tgt_mask.astype(jnp.float32) - 1.0) * 1e9
    src_bias = (src_mask.astype(jnp.float32) - 1.0) * 1e9
    return decoder_stack(x, enc_output, tgt_bias, src_bias, stacked,
                         num_heads=num_heads)


# ----------------------------- host-side param plumbing ----------------------

def positional_encoding(max_len, d_model):
    position = np.arange(max_len, dtype=np.float32)[:, None]
    div_term = np.exp(np.arange(0, d_model, 2, dtype=np.float32)
                      * (-np.log(10000.0) / d_model))
    pe = np.zeros((max_len, d_model), dtype=np.float32)
    pe[:, 0::2] = np.sin(position * div_term)
    pe[:, 1::2] = np.cos(position * div_term)
    return jnp.asarray(pe)


def init_layer_params(key, d_model, d_ff):
    names_shapes = [
        ("sa_wq", (d_model, d_model)), ("sa_bq", (d_model,)),
        ("sa_wk", (d_model, d_model)), ("sa_bk", (d_model,)),
        ("sa_wv", (d_model, d_model)), ("sa_bv", (d_model,)),
        ("sa_wo", (d_model, d_model)), ("sa_bo", (d_model,)),
        ("ca_wq", (d_model, d_model)), ("ca_bq", (d_model,)),
        ("ca_wk", (d_model, d_model)), ("ca_bk", (d_model,)),
        ("ca_wv", (d_model, d_model)), ("ca_bv", (d_model,)),
        ("ca_wo", (d_model, d_model)), ("ca_bo", (d_model,)),
        ("ff_w1", (d_model, d_ff)), ("ff_b1", (d_ff,)),
        ("ff_w2", (d_ff, d_model)), ("ff_b2", (d_model,)),
    ]
    params = {}
    keys = jax.random.split(key, len(names_shapes) + 6)
    for k, (name, shape) in zip(keys, names_shapes):
        scale = 0.05 if name.endswith(("wq", "wk", "wv", "wo", "w1", "w2")) else 0.02
        params[name] = scale * jax.random.normal(k, shape, jnp.float32)
    ki = len(names_shapes)
    for i in (1, 2, 3):
        params[f"ln{i}_g"] = 1.0 + 0.05 * jax.random.normal(
            keys[ki], (d_model,), jnp.float32); ki += 1
        params[f"ln{i}_b"] = 0.05 * jax.random.normal(
            keys[ki], (d_model,), jnp.float32); ki += 1
    return params


def stack_kernel_params(layer_params, num_heads):
    """Stack per-layer params along a layer axis with fused, lane-dense
    projection weights; 1/sqrt(head_dim) folded into Wq/bq; weights -> bf16."""
    d_model = layer_params[0]["sa_wq"].shape[0]
    hd = d_model // num_heads
    scale = 1.0 / float(np.sqrt(hd))

    def one(p):
        o = {}
        o["sa_wqkv"] = jnp.concatenate(
            [p["sa_wq"] * scale, p["sa_wk"], p["sa_wv"]], axis=1)     # (D, 3D)
        o["sa_bqkv"] = jnp.concatenate(
            [p["sa_bq"] * scale, p["sa_bk"], p["sa_bv"]])[None, :]    # (1, 3D)
        o["sa_wo"] = p["sa_wo"]
        o["sa_bo"] = p["sa_bo"][None, :]
        o["ca_wq"] = p["ca_wq"] * scale
        o["ca_bq"] = (p["ca_bq"] * scale)[None, :]
        o["ca_wkv"] = jnp.concatenate([p["ca_wk"], p["ca_wv"]], axis=1)
        o["ca_bkv"] = jnp.concatenate([p["ca_bk"], p["ca_bv"]])[None, :]
        o["ca_wo"] = p["ca_wo"]
        o["ca_bo"] = p["ca_bo"][None, :]
        o["ff_w1"] = p["ff_w1"]; o["ff_b1"] = p["ff_b1"][None, :]
        o["ff_w2"] = p["ff_w2"]; o["ff_b2"] = p["ff_b2"][None, :]
        for i in (1, 2, 3):
            o[f"ln{i}_g"] = p[f"ln{i}_g"][None, :]
            o[f"ln{i}_b"] = p[f"ln{i}_b"][None, :]
        return o

    per = [one(p) for p in layer_params]
    stacked = {}
    for name in _PARAM_ORDER:
        arr = jnp.stack([pp[name] for pp in per])
        dtype = jnp.bfloat16 if name in _BF16_PARAMS else jnp.float32
        stacked[name] = arr.astype(dtype)
    return stacked


# ----------------------------- pure-JAX reference ----------------------------

def _ref_mha(xq, xkv, mask, p, pre, num_heads):
    B, _, D = xq.shape
    hd = D // num_heads
    q = xq @ p[pre + "wq"] + p[pre + "bq"]
    k = xkv @ p[pre + "wk"] + p[pre + "bk"]
    v = xkv @ p[pre + "wv"] + p[pre + "bv"]
    q = q.reshape(B, -1, num_heads, hd).transpose(0, 2, 1, 3)
    k = k.reshape(B, -1, num_heads, hd).transpose(0, 2, 1, 3)
    v = v.reshape(B, -1, num_heads, hd).transpose(0, 2, 1, 3)
    s = jnp.einsum("bhqd,bhkd->bhqk", q, k) / np.sqrt(hd)
    s = jnp.where(mask[:, None, :, :] == 0, -1e9, s)
    a = jax.nn.softmax(s, axis=-1)
    o = jnp.einsum("bhqk,bhkd->bhqd", a, v).transpose(0, 2, 1, 3).reshape(B, -1, D)
    return o @ p[pre + "wo"] + p[pre + "bo"]


def _ref_ln(x, g, b, eps=1e-5):
    m = x.mean(-1, keepdims=True)
    v = ((x - m) ** 2).mean(-1, keepdims=True)
    return (x - m) / jnp.sqrt(v + eps) * g + b


def decoder_forward_ref(tokens, enc, src_mask, tgt_mask, emb, pe,
                        layer_params, num_heads):
    x = jnp.take(emb, tokens, axis=0) + pe[None, :tokens.shape[1], :]
    for p in layer_params:
        x = _ref_ln(x + _ref_mha(x, x, tgt_mask, p, "sa_", num_heads),
                    p["ln1_g"], p["ln1_b"])
        x = _ref_ln(x + _ref_mha(x, enc, src_mask, p, "ca_", num_heads),
                    p["ln2_g"], p["ln2_b"])
        h = jnp.maximum(x @ p["ff_w1"] + p["ff_b1"], 0.0)
        x = _ref_ln(x + h @ p["ff_w2"] + p["ff_b2"], p["ln3_g"], p["ln3_b"])
    return x


# ----------------------------- demo / check ----------------------------------

if __name__ == "__main__":
    # Small but lane/sublane-friendly shapes (D, d_ff multiples of 128; T,S=8).
    vocab_size, d_model, num_heads, num_layers, d_ff = 50, 128, 4, 2, 256
    max_len = 64
    B, T, S = 2, 8, 8

    key = jax.random.PRNGKey(0)
    k_emb, k_tok, k_enc, *k_layers = jax.random.split(key, 3 + num_layers)

    emb = 0.05 * jax.random.normal(k_emb, (vocab_size, d_model), jnp.float32)
    pe = positional_encoding(max_len, d_model)
    layer_params = [init_layer_params(k, d_model, d_ff) for k in k_layers]
    stacked = stack_kernel_params(layer_params, num_heads)

    tokens = jax.random.randint(k_tok, (B, T), 0, vocab_size, dtype=jnp.int32)
    enc_output = 0.1 * jax.random.normal(k_enc, (B, S, d_model), jnp.float32)

    # causal target mask, full source mask (1.0 = attend, 0.0 = masked)
    tgt_mask = jnp.broadcast_to(jnp.tril(jnp.ones((T, T), jnp.float32)),
                                (B, T, T))
    src_mask = jnp.ones((B, T, S), jnp.float32)

    out = decoder_forward(tokens, enc_output, src_mask, tgt_mask,
                          emb, pe, stacked, num_heads)
    out = jax.block_until_ready(out)

    ref = decoder_forward_ref(tokens, enc_output, src_mask, tgt_mask,
                              emb, pe, layer_params, num_heads)
    # Kernel uses bf16 matmul operands (f32 accumulation) and additive mask
    # biases, while the reference is full f32 with masked_fill; compare with a
    # bf16-appropriate tolerance.
    np.testing.assert_allclose(np.asarray(out), np.asarray(ref),
                               rtol=5e-2, atol=5e-2)
    print("KERNEL_OK")
</pallas_src>

<mosaic_0001>
module attributes {stable_mosaic.version = 11 : i64} {
  func.func @decoder_stack_kernel(%arg0: i32, %arg1: i32, %arg2: memref<16x128xf32, #tpu.memory_space<vmem>>, %arg3: memref<16x128xbf16, #tpu.memory_space<vmem>>, %arg4: memref<2x8x8xf32, #tpu.memory_space<vmem>>, %arg5: memref<2x8x8xf32, #tpu.memory_space<vmem>>, %arg6: memref<1x128x384xbf16, #tpu.memory_space<vmem>>, %arg7: memref<1x1x384xf32, #tpu.memory_space<vmem>>, %arg8: memref<1x128x128xbf16, #tpu.memory_space<vmem>>, %arg9: memref<1x1x128xf32, #tpu.memory_space<vmem>>, %arg10: memref<1x128x128xbf16, #tpu.memory_space<vmem>>, %arg11: memref<1x1x128xf32, #tpu.memory_space<vmem>>, %arg12: memref<1x128x256xbf16, #tpu.memory_space<vmem>>, %arg13: memref<1x1x256xf32, #tpu.memory_space<vmem>>, %arg14: memref<1x128x128xbf16, #tpu.memory_space<vmem>>, %arg15: memref<1x1x128xf32, #tpu.memory_space<vmem>>, %arg16: memref<1x128x256xbf16, #tpu.memory_space<vmem>>, %arg17: memref<1x1x256xf32, #tpu.memory_space<vmem>>, %arg18: memref<1x256x128xbf16, #tpu.memory_space<vmem>>, %arg19: memref<1x1x128xf32, #tpu.memory_space<vmem>>, %arg20: memref<1x1x128xf32, #tpu.memory_space<vmem>>, %arg21: memref<1x1x128xf32, #tpu.memory_space<vmem>>, %arg22: memref<1x1x128xf32, #tpu.memory_space<vmem>>, %arg23: memref<1x1x128xf32, #tpu.memory_space<vmem>>, %arg24: memref<1x1x128xf32, #tpu.memory_space<vmem>>, %arg25: memref<1x1x128xf32, #tpu.memory_space<vmem>>, %arg26: memref<16x128xf32, #tpu.memory_space<vmem>>, %arg27: memref<16x128xf32, #tpu.memory_space<vmem>>) attributes {dimension_semantics = [#tpu.dimension_semantics<parallel>, #tpu.dimension_semantics<arbitrary>], iteration_bounds = array<i64: 1, 2>, scalar_prefetch = 0 : i64, scratch_operands = 1 : i64, tpu.core_type = #tpu.core_type<tc>, window_params = [{transform_indices = @transform_0, window_bounds = array<i64: 16, 128>}, {transform_indices = @transform_1, window_bounds = array<i64: 16, 128>}, {transform_indices = @transform_2, window_bounds = array<i64: 2, 8, 8>}, {transform_indices = @transform_3, window_bounds = array<i64: 2, 8, 8>}, {transform_indices = @transform_4, window_bounds = array<i64: 1, 128, 384>}, {transform_indices = @transform_5, window_bounds = array<i64: 1, 1, 384>}, {transform_indices = @transform_6, window_bounds = array<i64: 1, 128, 128>}, {transform_indices = @transform_7, window_bounds = array<i64: 1, 1, 128>}, {transform_indices = @transform_8, window_bounds = array<i64: 1, 128, 128>}, {transform_indices = @transform_9, window_bounds = array<i64: 1, 1, 128>}, {transform_indices = @transform_10, window_bounds = array<i64: 1, 128, 256>}, {transform_indices = @transform_11, window_bounds = array<i64: 1, 1, 256>}, {transform_indices = @transform_12, window_bounds = array<i64: 1, 128, 128>}, {transform_indices = @transform_13, window_bounds = array<i64: 1, 1, 128>}, {transform_indices = @transform_14, window_bounds = array<i64: 1, 128, 256>}, {transform_indices = @transform_15, window_bounds = array<i64: 1, 1, 256>}, {transform_indices = @transform_16, window_bounds = array<i64: 1, 256, 128>}, {transform_indices = @transform_17, window_bounds = array<i64: 1, 1, 128>}, {transform_indices = @transform_18, window_bounds = array<i64: 1, 1, 128>}, {transform_indices = @transform_19, window_bounds = array<i64: 1, 1, 128>}, {transform_indices = @transform_20, window_bounds = array<i64: 1, 1, 128>}, {transform_indices = @transform_21, window_bounds = array<i64: 1, 1, 128>}, {transform_indices = @transform_22, window_bounds = array<i64: 1, 1, 128>}, {transform_indices = @transform_23, window_bounds = array<i64: 1, 1, 128>}, {transform_indices = @transform_24, window_bounds = array<i64: 16, 128>}]} {
    %c0_i32 = arith.constant 0 : i32
    %0 = arith.cmpi eq, %arg1, %c0_i32 : i32
    %1 = arith.extui %0 : i1 to i32
    %c0_i32_0 = arith.constant 0 : i32
    %2 = arith.cmpi ne, %1, %c0_i32_0 : i32
    scf.if %2 {
      %c0_114 = arith.constant 0 : index
      %c0_115 = arith.constant 0 : index
      %396 = vector.load %arg2[%c0_114, %c0_115] : memref<16x128xf32, #tpu.memory_space<vmem>>, vector<16x128xf32>
      %c0_116 = arith.constant 0 : index
      %c0_117 = arith.constant 0 : index
      %397 = vector.load %arg27[%c0_116, %c0_117] : memref<16x128xf32, #tpu.memory_space<vmem>>, vector<16x128xf32>
      tpu.vector_store %arg27[%c0_116, %c0_117], %396 {strides = array<i32>} : memref<16x128xf32, #tpu.memory_space<vmem>>, vector<16x128xf32>,
    } else {
    }
    %c0 = arith.constant 0 : index
    %c0_1 = arith.constant 0 : index
    %3 = vector.load %arg27[%c0, %c0_1] : memref<16x128xf32, #tpu.memory_space<vmem>>, vector<16x128xf32>
    %c0_2 = arith.constant 0 : index
    %c0_3 = arith.constant 0 : index
    %4 = vector.load %arg3[%c0_2, %c0_3] : memref<16x128xbf16, #tpu.memory_space<vmem>>, vector<16x128xbf16>
    %5 = arith.truncf %3 : vector<16x128xf32> to vector<16x128xbf16>
    %c0_4 = arith.constant 0 : index
    %c0_5 = arith.constant 0 : index
    %c0_6 = arith.constant 0 : index
    %6 = vector.load %arg6[%c0_4, %c0_5, %c0_6] : memref<1x128x384xbf16, #tpu.memory_space<vmem>>, vector<1x128x384xbf16>
    %7 = vector.shape_cast %6 : vector<1x128x384xbf16> to vector<128x384xbf16>
    %cst = arith.constant dense<0.000000e+00> : vector<16x384xf32>
    %8 = tpu.matmul %5, %7, %cst {dimension_numbers = #tpu.dot_dimension_numbers<[1], [0], [0], [1], [0, 0, 1, 1], [], []>} : vector<16x128xbf16>, vector<128x384xbf16>, vector<16x384xf32> -> vector<16x384xf32>
    %c0_7 = arith.constant 0 : index
    %c0_8 = arith.constant 0 : index
    %c0_9 = arith.constant 0 : index
    %9 = vector.load %arg7[%c0_7, %c0_8, %c0_9] : memref<1x1x384xf32, #tpu.memory_space<vmem>>, vector<1x1x384xf32>
    %10 = vector.shape_cast %9 : vector<1x1x384xf32> to vector<1x384xf32>
    %11 = vector.broadcast %10 : vector<1x384xf32> to vector<16x384xf32>
    %12 = arith.addf %8, %11 : vector<16x384xf32>
    %13 = vector.extract_strided_slice %12 {offsets = [0, 0], sizes = [16, 128], strides = [1, 1]} : vector<16x384xf32> to vector<16x128xf32>
    %14 = vector.extract_strided_slice %12 {offsets = [0, 128], sizes = [16, 128], strides = [1, 1]} : vector<16x384xf32> to vector<16x128xf32>
    %15 = vector.extract_strided_slice %12 {offsets = [0, 256], sizes = [16, 128], strides = [1, 1]} : vector<16x384xf32> to vector<16x128xf32>
    %c0_10 = arith.constant 0 : index
    %c0_11 = arith.constant 0 : index
    %c0_12 = arith.constant 0 : index
    %16 = vector.load %arg4[%c0_10, %c0_11, %c0_12] : memref<2x8x8xf32, #tpu.memory_space<vmem>>, vector<2x8x8xf32>
    %17 = arith.truncf %13 : vector<16x128xf32> to vector<16x128xbf16>
    %18 = arith.truncf %14 : vector<16x128xf32> to vector<16x128xbf16>
    %19 = arith.truncf %15 : vector<16x128xf32> to vector<16x128xbf16>
    %20 = vector.extract_strided_slice %17 {offsets = [0, 0], sizes = [8, 128], strides = [1, 1]} : vector<16x128xbf16> to vector<8x128xbf16>
    %21 = vector.extract_strided_slice %18 {offsets = [0, 0], sizes = [8, 128], strides = [1, 1]} : vector<16x128xbf16> to vector<8x128xbf16>
    %22 = vector.extract_strided_slice %19 {offsets = [0, 0], sizes = [8, 128], strides = [1, 1]} : vector<16x128xbf16> to vector<8x128xbf16>
    %23 = vector.extract_strided_slice %20 {offsets = [0, 0], sizes = [8, 32], strides = [1, 1]} : vector<8x128xbf16> to vector<8x32xbf16>
    %24 = vector.extract_strided_slice %20 {offsets = [0, 32], sizes = [8, 32], strides = [1, 1]} : vector<8x128xbf16> to vector<8x32xbf16>
    %25 = vector.extract_strided_slice %20 {offsets = [0, 64], sizes = [8, 32], strides = [1, 1]} : vector<8x128xbf16> to vector<8x32xbf16>
    %26 = vector.extract_strided_slice %20 {offsets = [0, 96], sizes = [8, 32], strides = [1, 1]} : vector<8x128xbf16> to vector<8x32xbf16>
    %27 = vector.shape_cast %23 : vector<8x32xbf16> to vector<1x8x32xbf16>
    %28 = vector.shape_cast %24 : vector<8x32xbf16> to vector<1x8x32xbf16>
    %29 = vector.shape_cast %25 : vector<8x32xbf16> to vector<1x8x32xbf16>
    %30 = vector.shape_cast %26 : vector<8x32xbf16> to vector<1x8x32xbf16>
    %31 = tpu.concatenate %27, %28, %29, %30 in 0 : vector<1x8x32xbf16>, vector<1x8x32xbf16>, vector<1x8x32xbf16>, vector<1x8x32xbf16> -> vector<4x8x32xbf16>
    %32 = vector.extract_strided_slice %21 {offsets = [0, 0], sizes = [8, 32], strides = [1, 1]} : vector<8x128xbf16> to vector<8x32xbf16>
    %33 = vector.extract_strided_slice %21 {offsets = [0, 32], sizes = [8, 32], strides = [1, 1]} : vector<8x128xbf16> to vector<8x32xbf16>
    %34 = vector.extract_strided_slice %21 {offsets = [0, 64], sizes = [8, 32], strides = [1, 1]} : vector<8x128xbf16> to vector<8x32xbf16>
    %35 = vector.extract_strided_slice %21 {offsets = [0, 96], sizes = [8, 32], strides = [1, 1]} : vector<8x128xbf16> to vector<8x32xbf16>
    %36 = vector.shape_cast %32 : vector<8x32xbf16> to vector<1x8x32xbf16>
    %37 = vector.shape_cast %33 : vector<8x32xbf16> to vector<1x8x32xbf16>
    %38 = vector.shape_cast %34 : vector<8x32xbf16> to vector<1x8x32xbf16>
    %39 = vector.shape_cast %35 : vector<8x32xbf16> to vector<1x8x32xbf16>
    %40 = tpu.concatenate %36, %37, %38, %39 in 0 : vector<1x8x32xbf16>, vector<1x8x32xbf16>, vector<1x8x32xbf16>, vector<1x8x32xbf16> -> vector<4x8x32xbf16>
    %41 = vector.extract_strided_slice %22 {offsets = [0, 0], sizes = [8, 32], strides = [1, 1]} : vector<8x128xbf16> to vector<8x32xbf16>
    %42 = vector.extract_strided_slice %22 {offsets = [0, 32], sizes = [8, 32], strides = [1, 1]} : vector<8x128xbf16> to vector<8x32xbf16>
    %43 = vector.extract_strided_slice %22 {offsets = [0, 64], sizes = [8, 32], strides = [1, 1]} : vector<8x128xbf16> to vector<8x32xbf16>
    %44 = vector.extract_strided_slice %22 {offsets = [0, 96], sizes = [8, 32], strides = [1, 1]} : vector<8x128xbf16> to vector<8x32xbf16>
    %45 = vector.shape_cast %41 : vector<8x32xbf16> to vector<1x8x32xbf16>
    %46 = vector.shape_cast %42 : vector<8x32xbf16> to vector<1x8x32xbf16>
    %47 = vector.shape_cast %43 : vector<8x32xbf16> to vector<1x8x32xbf16>
    %48 = vector.shape_cast %44 : vector<8x32xbf16> to vector<1x8x32xbf16>
    %49 = tpu.concatenate %45, %46, %47, %48 in 0 : vector<1x8x32xbf16>, vector<1x8x32xbf16>, vector<1x8x32xbf16>, vector<1x8x32xbf16> -> vector<4x8x32xbf16>
    %cst_13 = arith.constant dense<0.000000e+00> : vector<4x8x8xf32>
    %50 = tpu.matmul %31, %40, %cst_13 {dimension_numbers = #tpu.dot_dimension_numbers<[2], [2], [1], [1], [0, 0, 0, 1, 1, 1], [0], [0]>} : vector<4x8x32xbf16>, vector<4x8x32xbf16>, vector<4x8x8xf32> -> vector<4x8x8xf32>
    %51 = vector.extract_strided_slice %16 {offsets = [0, 0, 0], sizes = [1, 8, 8], strides = [1, 1, 1]} : vector<2x8x8xf32> to vector<1x8x8xf32>
    %52 = vector.shape_cast %51 : vector<1x8x8xf32> to vector<8x8xf32>
    %53 = vector.shape_cast %52 : vector<8x8xf32> to vector<1x8x8xf32>
    %54 = vector.broadcast %53 : vector<1x8x8xf32> to vector<4x8x8xf32>
    %55 = arith.addf %50, %54 : vector<4x8x8xf32>
    %cst_14 = arith.constant dense<0xFF800000> : vector<4x8xf32>
    %56 = vector.multi_reduction <maximumf>, %55, %cst_14 [2] : vector<4x8x8xf32> to vector<4x8xf32>
    %57 = vector.shape_cast %56 : vector<4x8xf32> to vector<4x8x1xf32>
    %58 = vector.broadcast %57 : vector<4x8x1xf32> to vector<4x8x8xf32>
    %59 = arith.subf %55, %58 : vector<4x8x8xf32>
    %60 = math.exp %59 : vector<4x8x8xf32>
    %cst_15 = arith.constant dense<0.000000e+00> : vector<4x8xf32>
    %61 = vector.multi_reduction <add>, %60, %cst_15 [2] : vector<4x8x8xf32> to vector<4x8xf32>
    %62 = vector.shape_cast %61 : vector<4x8xf32> to vector<4x8x1xf32>
    %63 = tpu.reciprocal %62 : vector<4x8x1xf32> -> vector<4x8x1xf32>
    %64 = vector.broadcast %63 : vector<4x8x1xf32> to vector<4x8x8xf32>
    %65 = arith.mulf %60, %64 : vector<4x8x8xf32>
    %66 = arith.truncf %65 : vector<4x8x8xf32> to vector<4x8x8xbf16>
    %cst_16 = arith.constant dense<0.000000e+00> : vector<4x8x32xf32>
    %67 = tpu.matmul %66, %49, %cst_16 {dimension_numbers = #tpu.dot_dimension_numbers<[2], [1], [1], [2], [0, 0, 0, 1, 1, 2], [0], [0]>} : vector<4x8x8xbf16>, vector<4x8x32xbf16>, vector<4x8x32xf32> -> vector<4x8x32xf32>
    %68 = vector.extract_strided_slice %67 {offsets = [0, 0, 0], sizes = [1, 8, 32], strides = [1, 1, 1]} : vector<4x8x32xf32> to vector<1x8x32xf32>
    %69 = vector.shape_cast %68 : vector<1x8x32xf32> to vector<8x32xf32>
    %70 = vector.extract_strided_slice %67 {offsets = [1, 0, 0], sizes = [1, 8, 32], strides = [1, 1, 1]} : vector<4x8x32xf32> to vector<1x8x32xf32>
    %71 = vector.shape_cast %70 : vector<1x8x32xf32> to vector<8x32xf32>
    %72 = vector.extract_strided_slice %67 {offsets = [2, 0, 0], sizes = [1, 8, 32], strides = [1, 1, 1]} : vector<4x8x32xf32> to vector<1x8x32xf32>
    %73 = vector.shape_cast %72 : vector<1x8x32xf32> to vector<8x32xf32>
    %74 = vector.extract_strided_slice %67 {offsets = [3, 0, 0], sizes = [1, 8, 32], strides = [1, 1, 1]} : vector<4x8x32xf32> to vector<1x8x32xf32>
    %75 = vector.shape_cast %74 : vector<1x8x32xf32> to vector<8x32xf32>
    %76 = tpu.concatenate %69, %71, %73, %75 in 1 : vector<8x32xf32>, vector<8x32xf32>, vector<8x32xf32>, vector<8x32xf32> -> vector<8x128xf32>
    %77 = vector.extract_strided_slice %17 {offsets = [8, 0], sizes = [8, 128], strides = [1, 1]} : vector<16x128xbf16> to vector<8x128xbf16>
    %78 = vector.extract_strided_slice %18 {offsets = [8, 0], sizes = [8, 128], strides = [1, 1]} : vector<16x128xbf16> to vector<8x128xbf16>
    %79 = vector.extract_strided_slice %19 {offsets = [8, 0], sizes = [8, 128], strides = [1, 1]} : vector<16x128xbf16> to vector<8x128xbf16>
    %80 = vector.extract_strided_slice %77 {offsets = [0, 0], sizes = [8, 32], strides = [1, 1]} : vector<8x128xbf16> to vector<8x32xbf16>
    %81 = vector.extract_strided_slice %77 {offsets = [0, 32], sizes = [8, 32], strides = [1, 1]} : vector<8x128xbf16> to vector<8x32xbf16>
    %82 = vector.extract_strided_slice %77 {offsets = [0, 64], sizes = [8, 32], strides = [1, 1]} : vector<8x128xbf16> to vector<8x32xbf16>
    %83 = vector.extract_strided_slice %77 {offsets = [0, 96], sizes = [8, 32], strides = [1, 1]} : vector<8x128xbf16> to vector<8x32xbf16>
    %84 = vector.shape_cast %80 : vector<8x32xbf16> to vector<1x8x32xbf16>
    %85 = vector.shape_cast %81 : vector<8x32xbf16> to vector<1x8x32xbf16>
    %86 = vector.shape_cast %82 : vector<8x32xbf16> to vector<1x8x32xbf16>
    %87 = vector.shape_cast %83 : vector<8x32xbf16> to vector<1x8x32xbf16>
    %88 = tpu.concatenate %84, %85, %86, %87 in 0 : vector<1x8x32xbf16>, vector<1x8x32xbf16>, vector<1x8x32xbf16>, vector<1x8x32xbf16> -> vector<4x8x32xbf16>
    %89 = vector.extract_strided_slice %78 {offsets = [0, 0], sizes = [8, 32], strides = [1, 1]} : vector<8x128xbf16> to vector<8x32xbf16>
    %90 = vector.extract_strided_slice %78 {offsets = [0, 32], sizes = [8, 32], strides = [1, 1]} : vector<8x128xbf16> to vector<8x32xbf16>
    %91 = vector.extract_strided_slice %78 {offsets = [0, 64], sizes = [8, 32], strides = [1, 1]} : vector<8x128xbf16> to vector<8x32xbf16>
    %92 = vector.extract_strided_slice %78 {offsets = [0, 96], sizes = [8, 32], strides = [1, 1]} : vector<8x128xbf16> to vector<8x32xbf16>
    %93 = vector.shape_cast %89 : vector<8x32xbf16> to vector<1x8x32xbf16>
    %94 = vector.shape_cast %90 : vector<8x32xbf16> to vector<1x8x32xbf16>
    %95 = vector.shape_cast %91 : vector<8x32xbf16> to vector<1x8x32xbf16>
    %96 = vector.shape_cast %92 : vector<8x32xbf16> to vector<1x8x32xbf16>
    %97 = tpu.concatenate %93, %94, %95, %96 in 0 : vector<1x8x32xbf16>, vector<1x8x32xbf16>, vector<1x8x32xbf16>, vector<1x8x32xbf16> -> vector<4x8x32xbf16>
    %98 = vector.extract_strided_slice %79 {offsets = [0, 0], sizes = [8, 32], strides = [1, 1]} : vector<8x128xbf16> to vector<8x32xbf16>
    %99 = vector.extract_strided_slice %79 {offsets = [0, 32], sizes = [8, 32], strides = [1, 1]} : vector<8x128xbf16> to vector<8x32xbf16>
    %100 = vector.extract_strided_slice %79 {offsets = [0, 64], sizes = [8, 32], strides = [1, 1]} : vector<8x128xbf16> to vector<8x32xbf16>
    %101 = vector.extract_strided_slice %79 {offsets = [0, 96], sizes = [8, 32], strides = [1, 1]} : vector<8x128xbf16> to vector<8x32xbf16>
    %102 = vector.shape_cast %98 : vector<8x32xbf16> to vector<1x8x32xbf16>
    %103 = vector.shape_cast %99 : vector<8x32xbf16> to vector<1x8x32xbf16>
    %104 = vector.shape_cast %100 : vector<8x32xbf16> to vector<1x8x32xbf16>
    %105 = vector.shape_cast %101 : vector<8x32xbf16> to vector<1x8x32xbf16>
    %106 = tpu.concatenate %102, %103, %104, %105 in 0 : vector<1x8x32xbf16>, vector<1x8x32xbf16>, vector<1x8x32xbf16>, vector<1x8x32xbf16> -> vector<4x8x32xbf16>
    %cst_17 = arith.constant dense<0.000000e+00> : vector<4x8x8xf32>
    %107 = tpu.matmul %88, %97, %cst_17 {dimension_numbers = #tpu.dot_dimension_numbers<[2], [2], [1], [1], [0, 0, 0, 1, 1, 1], [0], [0]>} : vector<4x8x32xbf16>, vector<4x8x32xbf16>, vector<4x8x8xf32> -> vector<4x8x8xf32>
    %108 = vector.extract_strided_slice %16 {offsets = [1, 0, 0], sizes = [1, 8, 8], strides = [1, 1, 1]} : vector<2x8x8xf32> to vector<1x8x8xf32>
    %109 = vector.shape_cast %108 : vector<1x8x8xf32> to vector<8x8xf32>
    %110 = vector.shape_cast %109 : vector<8x8xf32> to vector<1x8x8xf32>
    %111 = vector.broadcast %110 : vector<1x8x8xf32> to vector<4x8x8xf32>
    %112 = arith.addf %107, %111 : vector<4x8x8xf32>
    %cst_18 = arith.constant dense<0xFF800000> : vector<4x8xf32>
    %113 = vector.multi_reduction <maximumf>, %112, %cst_18 [2] : vector<4x8x8xf32> to vector<4x8xf32>
    %114 = vector.shape_cast %113 : vector<4x8xf32> to vector<4x8x1xf32>
    %115 = vector.broadcast %114 : vector<4x8x1xf32> to vector<4x8x8xf32>
    %116 = arith.subf %112, %115 : vector<4x8x8xf32>
    %117 = math.exp %116 : vector<4x8x8xf32>
    %cst_19 = arith.constant dense<0.000000e+00> : vector<4x8xf32>
    %118 = vector.multi_reduction <add>, %117, %cst_19 [2] : vector<4x8x8xf32> to vector<4x8xf32>
    %119 = vector.shape_cast %118 : vector<4x8xf32> to vector<4x8x1xf32>
    %120 = tpu.reciprocal %119 : vector<4x8x1xf32> -> vector<4x8x1xf32>
    %121 = vector.broadcast %120 : vector<4x8x1xf32> to vector<4x8x8xf32>
    %122 = arith.mulf %117, %121 : vector<4x8x8xf32>
    %123 = arith.truncf %122 : vector<4x8x8xf32> to vector<4x8x8xbf16>
    %cst_20 = arith.constant dense<0.000000e+00> : vector<4x8x32xf32>
    %124 = tpu.matmul %123, %106, %cst_20 {dimension_numbers = #tpu.dot_dimension_numbers<[2], [1], [1], [2], [0, 0, 0, 1, 1, 2], [0], [0]>} : vector<4x8x8xbf16>, vector<4x8x32xbf16>, vector<4x8x32xf32> -> vector<4x8x32xf32>
    %125 = vector.extract_strided_slice %124 {offsets = [0, 0, 0], sizes = [1, 8, 32], strides = [1, 1, 1]} : vector<4x8x32xf32> to vector<1x8x32xf32>
    %126 = vector.shape_cast %125 : vector<1x8x32xf32> to vector<8x32xf32>
    %127 = vector.extract_strided_slice %124 {offsets = [1, 0, 0], sizes = [1, 8, 32], strides = [1, 1, 1]} : vector<4x8x32xf32> to vector<1x8x32xf32>
    %128 = vector.shape_cast %127 : vector<1x8x32xf32> to vector<8x32xf32>
    %129 = vector.extract_strided_slice %124 {offsets = [2, 0, 0], sizes = [1, 8, 32], strides = [1, 1, 1]} : vector<4x8x32xf32> to vector<1x8x32xf32>
    %130 = vector.shape_cast %129 : vector<1x8x32xf32> to vector<8x32xf32>
    %131 = vector.extract_strided_slice %124 {offsets = [3, 0, 0], sizes = [1, 8, 32], strides = [1, 1, 1]} : vector<4x8x32xf32> to vector<1x8x32xf32>
    %132 = vector.shape_cast %131 : vector<1x8x32xf32> to vector<8x32xf32>
    %133 = tpu.concatenate %126, %128, %130, %132 in 1 : vector<8x32xf32>, vector<8x32xf32>, vector<8x32xf32>, vector<8x32xf32> -> vector<8x128xf32>
    %134 = tpu.concatenate %76, %133 in 0 : vector<8x128xf32>, vector<8x128xf32> -> vector<16x128xf32>
    %135 = arith.truncf %134 : vector<16x128xf32> to vector<16x128xbf16>
    %c0_21 = arith.constant 0 : index
    %c0_22 = arith.constant 0 : index
    %c0_23 = arith.constant 0 : index
    %136 = vector.load %arg8[%c0_21, %c0_22, %c0_23] : memref<1x128x128xbf16, #tpu.memory_space<vmem>>, vector<1x128x128xbf16>
    %137 = vector.shape_cast %136 : vector<1x128x128xbf16> to vector<128x128xbf16>
    %cst_24 = arith.constant dense<0.000000e+00> : vector<16x128xf32>
    %138 = tpu.matmul %135, %137, %cst_24 {dimension_numbers = #tpu.dot_dimension_numbers<[1], [0], [0], [1], [0, 0, 1, 1], [], []>} : vector<16x128xbf16>, vector<128x128xbf16>, vector<16x128xf32> -> vector<16x128xf32>
    %c0_25 = arith.constant 0 : index
    %c0_26 = arith.constant 0 : index
    %c0_27 = arith.constant 0 : index
    %139 = vector.load %arg9[%c0_25, %c0_26, %c0_27] : memref<1x1x128xf32, #tpu.memory_space<vmem>>, vector<1x1x128xf32>
    %140 = vector.shape_cast %139 : vector<1x1x128xf32> to vector<1x128xf32>
    %141 = vector.broadcast %140 : vector<1x128xf32> to vector<16x128xf32>
    %142 = arith.addf %138, %141 : vector<16x128xf32>
    %143 = arith.addf %3, %142 : vector<16x128xf32>
    %c0_28 = arith.constant 0 : index
    %c0_29 = arith.constant 0 : index
    %c0_30 = arith.constant 0 : index
    %144 = vector.load %arg20[%c0_28, %c0_29, %c0_30] : memref<1x1x128xf32, #tpu.memory_space<vmem>>, vector<1x1x128xf32>
    %145 = vector.shape_cast %144 : vector<1x1x128xf32> to vector<1x128xf32>
    %c0_31 = arith.constant 0 : index
    %c0_32 = arith.constant 0 : index
    %c0_33 = arith.constant 0 : index
    %146 = vector.load %arg21[%c0_31, %c0_32, %c0_33] : memref<1x1x128xf32, #tpu.memory_space<vmem>>, vector<1x1x128xf32>
    %147 = vector.shape_cast %146 : vector<1x1x128xf32> to vector<1x128xf32>
    %cst_34 = arith.constant dense<0.000000e+00> : vector<16xf32>
    %148 = vector.multi_reduction <add>, %143, %cst_34 [1] : vector<16x128xf32> to vector<16xf32>
    %149 = vector.shape_cast %148 : vector<16xf32> to vector<16x1xf32>
    %cst_35 = arith.constant 1.280000e+02 : f32
    %150 = vector.broadcast %cst_35 : f32 to vector<16x1xf32>
    %151 = arith.divf %149, %150 : vector<16x1xf32>
    %152 = arith.mulf %143, %143 : vector<16x128xf32>
    %cst_36 = arith.constant dense<0.000000e+00> : vector<16xf32>
    %153 = vector.multi_reduction <add>, %152, %cst_36 [1] : vector<16x128xf32> to vector<16xf32>
    %154 = vector.shape_cast %153 : vector<16xf32> to vector<16x1xf32>
    %cst_37 = arith.constant 1.280000e+02 : f32
    %155 = vector.broadcast %cst_37 : f32 to vector<16x1xf32>
    %156 = arith.divf %154, %155 : vector<16x1xf32>
    %157 = arith.mulf %151, %151 : vector<16x1xf32>
    %158 = arith.subf %156, %157 : vector<16x1xf32>
    %cst_38 = arith.constant 0.000000e+00 : f32
    %159 = vector.broadcast %cst_38 : f32 to vector<16x1xf32>
    %160 = arith.maximumf %158, %159 : vector<16x1xf32>
    %161 = vector.broadcast %151 : vector<16x1xf32> to vector<16x128xf32>
    %162 = arith.subf %143, %161 : vector<16x128xf32>
    %cst_39 = arith.constant 9.99999974E-6 : f32
    %163 = vector.broadcast %cst_39 : f32 to vector<16x1xf32>
    %164 = arith.addf %160, %163 : vector<16x1xf32>
    %165 = math.rsqrt %164 : vector<16x1xf32>
    %166 = vector.broadcast %165 : vector<16x1xf32> to vector<16x128xf32>
    %167 = arith.mulf %162, %166 : vector<16x128xf32>
    %168 = vector.broadcast %145 : vector<1x128xf32> to vector<16x128xf32>
    %169 = arith.mulf %167, %168 : vector<16x128xf32>
    %170 = vector.broadcast %147 : vector<1x128xf32> to vector<16x128xf32>
    %171 = arith.addf %169, %170 : vector<16x128xf32>
    %172 = arith.truncf %171 : vector<16x128xf32> to vector<16x128xbf16>
    %c0_40 = arith.constant 0 : index
    %c0_41 = arith.constant 0 : index
    %c0_42 = arith.constant 0 : index
    %173 = vector.load %arg10[%c0_40, %c0_41, %c0_42] : memref<1x128x128xbf16, #tpu.memory_space<vmem>>, vector<1x128x128xbf16>
    %174 = vector.shape_cast %173 : vector<1x128x128xbf16> to vector<128x128xbf16>
    %cst_43 = arith.constant dense<0.000000e+00> : vector<16x128xf32>
    %175 = tpu.matmul %172, %174, %cst_43 {dimension_numbers = #tpu.dot_dimension_numbers<[1], [0], [0], [1], [0, 0, 1, 1], [], []>} : vector<16x128xbf16>, vector<128x128xbf16>, vector<16x128xf32> -> vector<16x128xf32>
    %c0_44 = arith.constant 0 : index
    %c0_45 = arith.constant 0 : index
    %c0_46 = arith.constant 0 : index
    %176 = vector.load %arg11[%c0_44, %c0_45, %c0_46] : memref<1x1x128xf32, #tpu.memory_space<vmem>>, vector<1x1x128xf32>
    %177 = vector.shape_cast %176 : vector<1x1x128xf32> to vector<1x128xf32>
    %178 = vector.broadcast %177 : vector<1x128xf32> to vector<16x128xf32>
    %179 = arith.addf %175, %178 : vector<16x128xf32>
    %c0_47 = arith.constant 0 : index
    %c0_48 = arith.constant 0 : index
    %c0_49 = arith.constant 0 : index
    %180 = vector.load %arg12[%c0_47, %c0_48, %c0_49] : memref<1x128x256xbf16, #tpu.memory_space<vmem>>, vector<1x128x256xbf16>
    %181 = vector.shape_cast %180 : vector<1x128x256xbf16> to vector<128x256xbf16>
    %cst_50 = arith.constant dense<0.000000e+00> : vector<16x256xf32>
    %182 = tpu.matmul %4, %181, %cst_50 {dimension_numbers = #tpu.dot_dimension_numbers<[1], [0], [0], [1], [0, 0, 1, 1], [], []>} : vector<16x128xbf16>, vector<128x256xbf16>, vector<16x256xf32> -> vector<16x256xf32>
    %c0_51 = arith.constant 0 : index
    %c0_52 = arith.constant 0 : index
    %c0_53 = arith.constant 0 : index
    %183 = vector.load %arg13[%c0_51, %c0_52, %c0_53] : memref<1x1x256xf32, #tpu.memory_space<vmem>>, vector<1x1x256xf32>
    %184 = vector.shape_cast %183 : vector<1x1x256xf32> to vector<1x256xf32>
    %185 = vector.broadcast %184 : vector<1x256xf32> to vector<16x256xf32>
    %186 = arith.addf %182, %185 : vector<16x256xf32>
    %187 = vector.extract_strided_slice %186 {offsets = [0, 0], sizes = [16, 128], strides = [1, 1]} : vector<16x256xf32> to vector<16x128xf32>
    %188 = vector.extract_strided_slice %186 {offsets = [0, 128], sizes = [16, 128], strides = [1, 1]} : vector<16x256xf32> to vector<16x128xf32>
    %c0_54 = arith.constant 0 : index
    %c0_55 = arith.constant 0 : index
    %c0_56 = arith.constant 0 : index
    %189 = vector.load %arg5[%c0_54, %c0_55, %c0_56] : memref<2x8x8xf32, #tpu.memory_space<vmem>>, vector<2x8x8xf32>
    %190 = arith.truncf %179 : vector<16x128xf32> to vector<16x128xbf16>
    %191 = arith.truncf %187 : vector<16x128xf32> to vector<16x128xbf16>
    %192 = arith.truncf %188 : vector<16x128xf32> to vector<16x128xbf16>
    %193 = vector.extract_strided_slice %190 {offsets = [0, 0], sizes = [8, 128], strides = [1, 1]} : vector<16x128xbf16> to vector<8x128xbf16>
    %194 = vector.extract_strided_slice %191 {offsets = [0, 0], sizes = [8, 128], strides = [1, 1]} : vector<16x128xbf16> to vector<8x128xbf16>
    %195 = vector.extract_strided_slice %192 {offsets = [0, 0], sizes = [8, 128], strides = [1, 1]} : vector<16x128xbf16> to vector<8x128xbf16>
    %196 = vector.extract_strided_slice %193 {offsets = [0, 0], sizes = [8, 32], strides = [1, 1]} : vector<8x128xbf16> to vector<8x32xbf16>
    %197 = vector.extract_strided_slice %193 {offsets = [0, 32], sizes = [8, 32], strides = [1, 1]} : vector<8x128xbf16> to vector<8x32xbf16>
    %198 = vector.extract_strided_slice %193 {offsets = [0, 64], sizes = [8, 32], strides = [1, 1]} : vector<8x128xbf16> to vector<8x32xbf16>
    %199 = vector.extract_strided_slice %193 {offsets = [0, 96], sizes = [8, 32], strides = [1, 1]} : vector<8x128xbf16> to vector<8x32xbf16>
    %200 = vector.shape_cast %196 : vector<8x32xbf16> to vector<1x8x32xbf16>
    %201 = vector.shape_cast %197 : vector<8x32xbf16> to vector<1x8x32xbf16>
    %202 = vector.shape_cast %198 : vector<8x32xbf16> to vector<1x8x32xbf16>
    %203 = vector.shape_cast %199 : vector<8x32xbf16> to vector<1x8x32xbf16>
    %204 = tpu.concatenate %200, %201, %202, %203 in 0 : vector<1x8x32xbf16>, vector<1x8x32xbf16>, vector<1x8x32xbf16>, vector<1x8x32xbf16> -> vector<4x8x32xbf16>
    %205 = vector.extract_strided_slice %194 {offsets = [0, 0], sizes = [8, 32], strides = [1, 1]} : vector<8x128xbf16> to vector<8x32xbf16>
    %206 = vector.extract_strided_slice %194 {offsets = [0, 32], sizes = [8, 32], strides = [1, 1]} : vector<8x128xbf16> to vector<8x32xbf16>
    %207 = vector.extract_strided_slice %194 {offsets = [0, 64], sizes = [8, 32], strides = [1, 1]} : vector<8x128xbf16> to vector<8x32xbf16>
    %208 = vector.extract_strided_slice %194 {offsets = [0, 96], sizes = [8, 32], strides = [1, 1]} : vector<8x128xbf16> to vector<8x32xbf16>
    %209 = vector.shape_cast %205 : vector<8x32xbf16> to vector<1x8x32xbf16>
    %210 = vector.shape_cast %206 : vector<8x32xbf16> to vector<1x8x32xbf16>
    %211 = vector.shape_cast %207 : vector<8x32xbf16> to vector<1x8x32xbf16>
    %212 = vector.shape_cast %208 : vector<8x32xbf16> to vector<1x8x32xbf16>
    %213 = tpu.concatenate %209, %210, %211, %212 in 0 : vector<1x8x32xbf16>, vector<1x8x32xbf16>, vector<1x8x32xbf16>, vector<1x8x32xbf16> -> vector<4x8x32xbf16>
    %214 = vector.extract_strided_slice %195 {offsets = [0, 0], sizes = [8, 32], strides = [1, 1]} : vector<8x128xbf16> to vector<8x32xbf16>
    %215 = vector.extract_strided_slice %195 {offsets = [0, 32], sizes = [8, 32], strides = [1, 1]} : vector<8x128xbf16> to vector<8x32xbf16>
    %216 = vector.extract_strided_slice %195 {offsets = [0, 64], sizes = [8, 32], strides = [1, 1]} : vector<8x128xbf16> to vector<8x32xbf16>
    %217 = vector.extract_strided_slice %195 {offsets = [0, 96], sizes = [8, 32], strides = [1, 1]} : vector<8x128xbf16> to vector<8x32xbf16>
    %218 = vector.shape_cast %214 : vector<8x32xbf16> to vector<1x8x32xbf16>
    %219 = vector.shape_cast %215 : vector<8x32xbf16> to vector<1x8x32xbf16>
    %220 = vector.shape_cast %216 : vector<8x32xbf16> to vector<1x8x32xbf16>
    %221 = vector.shape_cast %217 : vector<8x32xbf16> to vector<1x8x32xbf16>
    %222 = tpu.concatenate %218, %219, %220, %221 in 0 : vector<1x8x32xbf16>, vector<1x8x32xbf16>, vector<1x8x32xbf16>, vector<1x8x32xbf16> -> vector<4x8x32xbf16>
    %cst_57 = arith.constant dense<0.000000e+00> : vector<4x8x8xf32>
    %223 = tpu.matmul %204, %213, %cst_57 {dimension_numbers = #tpu.dot_dimension_numbers<[2], [2], [1], [1], [0, 0, 0, 1, 1, 1], [0], [0]>} : vector<4x8x32xbf16>, vector<4x8x32xbf16>, vector<4x8x8xf32> -> vector<4x8x8xf32>
    %224 = vector.extract_strided_slice %189 {offsets = [0, 0, 0], sizes = [1, 8, 8], strides = [1, 1, 1]} : vector<2x8x8xf32> to vector<1x8x8xf32>
    %225 = vector.shape_cast %224 : vector<1x8x8xf32> to vector<8x8xf32>
    %226 = vector.shape_cast %225 : vector<8x8xf32> to vector<1x8x8xf32>
    %227 = vector.broadcast %226 : vector<1x8x8xf32> to vector<4x8x8xf32>
    %228 = arith.addf %223, %227 : vector<4x8x8xf32>
    %cst_58 = arith.constant dense<0xFF800000> : vector<4x8xf32>
    %229 = vector.multi_reduction <maximumf>, %228, %cst_58 [2] : vector<4x8x8xf32> to vector<4x8xf32>
    %230 = vector.shape_cast %229 : vector<4x8xf32> to vector<4x8x1xf32>
    %231 = vector.broadcast %230 : vector<4x8x1xf32> to vector<4x8x8xf32>
    %232 = arith.subf %228, %231 : vector<4x8x8xf32>
    %233 = math.exp %232 : vector<4x8x8xf32>
    %cst_59 = arith.constant dense<0.000000e+00> : vector<4x8xf32>
    %234 = vector.multi_reduction <add>, %233, %cst_59 [2] : vector<4x8x8xf32> to vector<4x8xf32>
    %235 = vector.shape_cast %234 : vector<4x8xf32> to vector<4x8x1xf32>
    %236 = tpu.reciprocal %235 : vector<4x8x1xf32> -> vector<4x8x1xf32>
    %237 = vector.broadcast %236 : vector<4x8x1xf32> to vector<4x8x8xf32>
    %238 = arith.mulf %233, %237 : vector<4x8x8xf32>
    %239 = arith.truncf %238 : vector<4x8x8xf32> to vector<4x8x8xbf16>
    %cst_60 = arith.constant dense<0.000000e+00> : vector<4x8x32xf32>
    %240 = tpu.matmul %239, %222, %cst_60 {dimension_numbers = #tpu.dot_dimension_numbers<[2], [1], [1], [2], [0, 0, 0, 1, 1, 2], [0], [0]>} : vector<4x8x8xbf16>, vector<4x8x32xbf16>, vector<4x8x32xf32> -> vector<4x8x32xf32>
    %241 = vector.extract_strided_slice %240 {offsets = [0, 0, 0], sizes = [1, 8, 32], strides = [1, 1, 1]} : vector<4x8x32xf32> to vector<1x8x32xf32>
    %242 = vector.shape_cast %241 : vector<1x8x32xf32> to vector<8x32xf32>
    %243 = vector.extract_strided_slice %240 {offsets = [1, 0, 0], sizes = [1, 8, 32], strides = [1, 1, 1]} : vector<4x8x32xf32> to vector<1x8x32xf32>
    %244 = vector.shape_cast %243 : vector<1x8x32xf32> to vector<8x32xf32>
    %245 = vector.extract_strided_slice %240 {offsets = [2, 0, 0], sizes = [1, 8, 32], strides = [1, 1, 1]} : vector<4x8x32xf32> to vector<1x8x32xf32>
    %246 = vector.shape_cast %245 : vector<1x8x32xf32> to vector<8x32xf32>
    %247 = vector.extract_strided_slice %240 {offsets = [3, 0, 0], sizes = [1, 8, 32], strides = [1, 1, 1]} : vector<4x8x32xf32> to vector<1x8x32xf32>
    %248 = vector.shape_cast %247 : vector<1x8x32xf32> to vector<8x32xf32>
    %249 = tpu.concatenate %242, %244, %246, %248 in 1 : vector<8x32xf32>, vector<8x32xf32>, vector<8x32xf32>, vector<8x32xf32> -> vector<8x128xf32>
    %250 = vector.extract_strided_slice %190 {offsets = [8, 0], sizes = [8, 128], strides = [1, 1]} : vector<16x128xbf16> to vector<8x128xbf16>
    %251 = vector.extract_strided_slice %191 {offsets = [8, 0], sizes = [8, 128], strides = [1, 1]} : vector<16x128xbf16> to vector<8x128xbf16>
    %252 = vector.extract_strided_slice %192 {offsets = [8, 0], sizes = [8, 128], strides = [1, 1]} : vector<16x128xbf16> to vector<8x128xbf16>
    %253 = vector.extract_strided_slice %250 {offsets = [0, 0], sizes = [8, 32], strides = [1, 1]} : vector<8x128xbf16> to vector<8x32xbf16>
    %254 = vector.extract_strided_slice %250 {offsets = [0, 32], sizes = [8, 32], strides = [1, 1]} : vector<8x128xbf16> to vector<8x32xbf16>
    %255 = vector.extract_strided_slice %250 {offsets = [0, 64], sizes = [8, 32], strides = [1, 1]} : vector<8x128xbf16> to vector<8x32xbf16>
    %256 = vector.extract_strided_slice %250 {offsets = [0, 96], sizes = [8, 32], strides = [1, 1]} : vector<8x128xbf16> to vector<8x32xbf16>
    %257 = vector.shape_cast %253 : vector<8x32xbf16> to vector<1x8x32xbf16>
    %258 = vector.shape_cast %254 : vector<8x32xbf16> to vector<1x8x32xbf16>
    %259 = vector.shape_cast %255 : vector<8x32xbf16> to vector<1x8x32xbf16>
    %260 = vector.shape_cast %256 : vector<8x32xbf16> to vector<1x8x32xbf16>
    %261 = tpu.concatenate %257, %258, %259, %260 in 0 : vector<1x8x32xbf16>, vector<1x8x32xbf16>, vector<1x8x32xbf16>, vector<1x8x32xbf16> -> vector<4x8x32xbf16>
    %262 = vector.extract_strided_slice %251 {offsets = [0, 0], sizes = [8, 32], strides = [1, 1]} : vector<8x128xbf16> to vector<8x32xbf16>
    %263 = vector.extract_strided_slice %251 {offsets = [0, 32], sizes = [8, 32], strides = [1, 1]} : vector<8x128xbf16> to vector<8x32xbf16>
    %264 = vector.extract_strided_slice %251 {offsets = [0, 64], sizes = [8, 32], strides = [1, 1]} : vector<8x128xbf16> to vector<8x32xbf16>
    %265 = vector.extract_strided_slice %251 {offsets = [0, 96], sizes = [8, 32], strides = [1, 1]} : vector<8x128xbf16> to vector<8x32xbf16>
    %266 = vector.shape_cast %262 : vector<8x32xbf16> to vector<1x8x32xbf16>
    %267 = vector.shape_cast %263 : vector<8x32xbf16> to vector<1x8x32xbf16>
    %268 = vector.shape_cast %264 : vector<8x32xbf16> to vector<1x8x32xbf16>
    %269 = vector.shape_cast %265 : vector<8x32xbf16> to vector<1x8x32xbf16>
    %270 = tpu.concatenate %266, %267, %268, %269 in 0 : vector<1x8x32xbf16>, vector<1x8x32xbf16>, vector<1x8x32xbf16>, vector<1x8x32xbf16> -> vector<4x8x32xbf16>
    %271 = vector.extract_strided_slice %252 {offsets = [0, 0], sizes = [8, 32], strides = [1, 1]} : vector<8x128xbf16> to vector<8x32xbf16>
    %272 = vector.extract_strided_slice %252 {offsets = [0, 32], sizes = [8, 32], strides = [1, 1]} : vector<8x128xbf16> to vector<8x32xbf16>
    %273 = vector.extract_strided_slice %252 {offsets = [0, 64], sizes = [8, 32], strides = [1, 1]} : vector<8x128xbf16> to vector<8x32xbf16>
    %274 = vector.extract_strided_slice %252 {offsets = [0, 96], sizes = [8, 32], strides = [1, 1]} : vector<8x128xbf16> to vector<8x32xbf16>
    %275 = vector.shape_cast %271 : vector<8x32xbf16> to vector<1x8x32xbf16>
    %276 = vector.shape_cast %272 : vector<8x32xbf16> to vector<1x8x32xbf16>
    %277 = vector.shape_cast %273 : vector<8x32xbf16> to vector<1x8x32xbf16>
    %278 = vector.shape_cast %274 : vector<8x32xbf16> to vector<1x8x32xbf16>
    %279 = tpu.concatenate %275, %276, %277, %278 in 0 : vector<1x8x32xbf16>, vector<1x8x32xbf16>, vector<1x8x32xbf16>, vector<1x8x32xbf16> -> vector<4x8x32xbf16>
    %cst_61 = arith.constant dense<0.000000e+00> : vector<4x8x8xf32>
    %280 = tpu.matmul %261, %270, %cst_61 {dimension_numbers = #tpu.dot_dimension_numbers<[2], [2], [1], [1], [0, 0, 0, 1, 1, 1], [0], [0]>} : vector<4x8x32xbf16>, vector<4x8x32xbf16>, vector<4x8x8xf32> -> vector<4x8x8xf32>
    %281 = vector.extract_strided_slice %189 {offsets = [1, 0, 0], sizes = [1, 8, 8], strides = [1, 1, 1]} : vector<2x8x8xf32> to vector<1x8x8xf32>
    %282 = vector.shape_cast %281 : vector<1x8x8xf32> to vector<8x8xf32>
    %283 = vector.shape_cast %282 : vector<8x8xf32> to vector<1x8x8xf32>
    %284 = vector.broadcast %283 : vector<1x8x8xf32> to vector<4x8x8xf32>
    %285 = arith.addf %280, %284 : vector<4x8x8xf32>
    %cst_62 = arith.constant dense<0xFF800000> : vector<4x8xf32>
    %286 = vector.multi_reduction <maximumf>, %285, %cst_62 [2] : vector<4x8x8xf32> to vector<4x8xf32>
    %287 = vector.shape_cast %286 : vector<4x8xf32> to vector<4x8x1xf32>
    %288 = vector.broadcast %287 : vector<4x8x1xf32> to vector<4x8x8xf32>
    %289 = arith.subf %285, %288 : vector<4x8x8xf32>
    %290 = math.exp %289 : vector<4x8x8xf32>
    %cst_63 = arith.constant dense<0.000000e+00> : vector<4x8xf32>
    %291 = vector.multi_reduction <add>, %290, %cst_63 [2] : vector<4x8x8xf32> to vector<4x8xf32>
    %292 = vector.shape_cast %291 : vector<4x8xf32> to vector<4x8x1xf32>
    %293 = tpu.reciprocal %292 : vector<4x8x1xf32> -> vector<4x8x1xf32>
    %294 = vector.broadcast %293 : vector<4x8x1xf32> to vector<4x8x8xf32>
    %295 = arith.mulf %290, %294 : vector<4x8x8xf32>
    %296 = arith.truncf %295 : vector<4x8x8xf32> to vector<4x8x8xbf16>
    %cst_64 = arith.constant dense<0.000000e+00> : vector<4x8x32xf32>
    %297 = tpu.matmul %296, %279, %cst_64 {dimension_numbers = #tpu.dot_dimension_numbers<[2], [1], [1], [2], [0, 0, 0, 1, 1, 2], [0], [0]>} : vector<4x8x8xbf16>, vector<4x8x32xbf16>, vector<4x8x32xf32> -> vector<4x8x32xf32>
    %298 = vector.extract_strided_slice %297 {offsets = [0, 0, 0], sizes = [1, 8, 32], strides = [1, 1, 1]} : vector<4x8x32xf32> to vector<1x8x32xf32>
    %299 = vector.shape_cast %298 : vector<1x8x32xf32> to vector<8x32xf32>
    %300 = vector.extract_strided_slice %297 {offsets = [1, 0, 0], sizes = [1, 8, 32], strides = [1, 1, 1]} : vector<4x8x32xf32> to vector<1x8x32xf32>
    %301 = vector.shape_cast %300 : vector<1x8x32xf32> to vector<8x32xf32>
    %302 = vector.extract_strided_slice %297 {offsets = [2, 0, 0], sizes = [1, 8, 32], strides = [1, 1, 1]} : vector<4x8x32xf32> to vector<1x8x32xf32>
    %303 = vector.shape_cast %302 : vector<1x8x32xf32> to vector<8x32xf32>
    %304 = vector.extract_strided_slice %297 {offsets = [3, 0, 0], sizes = [1, 8, 32], strides = [1, 1, 1]} : vector<4x8x32xf32> to vector<1x8x32xf32>
    %305 = vector.shape_cast %304 : vector<1x8x32xf32> to vector<8x32xf32>
    %306 = tpu.concatenate %299, %301, %303, %305 in 1 : vector<8x32xf32>, vector<8x32xf32>, vector<8x32xf32>, vector<8x32xf32> -> vector<8x128xf32>
    %307 = tpu.concatenate %249, %306 in 0 : vector<8x128xf32>, vector<8x128xf32> -> vector<16x128xf32>
    %308 = arith.truncf %307 : vector<16x128xf32> to vector<16x128xbf16>
    %c0_65 = arith.constant 0 : index
    %c0_66 = arith.constant 0 : index
    %c0_67 = arith.constant 0 : index
    %309 = vector.load %arg14[%c0_65, %c0_66, %c0_67] : memref<1x128x128xbf16, #tpu.memory_space<vmem>>, vector<1x128x128xbf16>
    %310 = vector.shape_cast %309 : vector<1x128x128xbf16> to vector<128x128xbf16>
    %cst_68 = arith.constant dense<0.000000e+00> : vector<16x128xf32>
    %311 = tpu.matmul %308, %310, %cst_68 {dimension_numbers = #tpu.dot_dimension_numbers<[1], [0], [0], [1], [0, 0, 1, 1], [], []>} : vector<16x128xbf16>, vector<128x128xbf16>, vector<16x128xf32> -> vector<16x128xf32>
    %c0_69 = arith.constant 0 : index
    %c0_70 = arith.constant 0 : index
    %c0_71 = arith.constant 0 : index
    %312 = vector.load %arg15[%c0_69, %c0_70, %c0_71] : memref<1x1x128xf32, #tpu.memory_space<vmem>>, vector<1x1x128xf32>
    %313 = vector.shape_cast %312 : vector<1x1x128xf32> to vector<1x128xf32>
    %314 = vector.broadcast %313 : vector<1x128xf32> to vector<16x128xf32>
    %315 = arith.addf %311, %314 : vector<16x128xf32>
    %316 = arith.addf %171, %315 : vector<16x128xf32>
    %c0_72 = arith.constant 0 : index
    %c0_73 = arith.constant 0 : index
    %c0_74 = arith.constant 0 : index
    %317 = vector.load %arg22[%c0_72, %c0_73, %c0_74] : memref<1x1x128xf32, #tpu.memory_space<vmem>>, vector<1x1x128xf32>
    %318 = vector.shape_cast %317 : vector<1x1x128xf32> to vector<1x128xf32>
    %c0_75 = arith.constant 0 : index
    %c0_76 = arith.constant 0 : index
    %c0_77 = arith.constant 0 : index
    %319 = vector.load %arg23[%c0_75, %c0_76, %c0_77] : memref<1x1x128xf32, #tpu.memory_space<vmem>>, vector<1x1x128xf32>
    %320 = vector.shape_cast %319 : vector<1x1x128xf32> to vector<1x128xf32>
    %cst_78 = arith.constant dense<0.000000e+00> : vector<16xf32>
    %321 = vector.multi_reduction <add>, %316, %cst_78 [1] : vector<16x128xf32> to vector<16xf32>
    %322 = vector.shape_cast %321 : vector<16xf32> to vector<16x1xf32>
    %cst_79 = arith.constant 1.280000e+02 : f32
    %323 = vector.broadcast %cst_79 : f32 to vector<16x1xf32>
    %324 = arith.divf %322, %323 : vector<16x1xf32>
    %325 = arith.mulf %316, %316 : vector<16x128xf32>
    %cst_80 = arith.constant dense<0.000000e+00> : vector<16xf32>
    %326 = vector.multi_reduction <add>, %325, %cst_80 [1] : vector<16x128xf32> to vector<16xf32>
    %327 = vector.shape_cast %326 : vector<16xf32> to vector<16x1xf32>
    %cst_81 = arith.constant 1.280000e+02 : f32
    %328 = vector.broadcast %cst_81 : f32 to vector<16x1xf32>
    %329 = arith.divf %327, %328 : vector<16x1xf32>
    %330 = arith.mulf %324, %324 : vector<16x1xf32>
    %331 = arith.subf %329, %330 : vector<16x1xf32>
    %cst_82 = arith.constant 0.000000e+00 : f32
    %332 = vector.broadcast %cst_82 : f32 to vector<16x1xf32>
    %333 = arith.maximumf %331, %332 : vector<16x1xf32>
    %334 = vector.broadcast %324 : vector<16x1xf32> to vector<16x128xf32>
    %335 = arith.subf %316, %334 : vector<16x128xf32>
    %cst_83 = arith.constant 9.99999974E-6 : f32
    %336 = vector.broadcast %cst_83 : f32 to vector<16x1xf32>
    %337 = arith.addf %333, %336 : vector<16x1xf32>
    %338 = math.rsqrt %337 : vector<16x1xf32>
    %339 = vector.broadcast %338 : vector<16x1xf32> to vector<16x128xf32>
    %340 = arith.mulf %335, %339 : vector<16x128xf32>
    %341 = vector.broadcast %318 : vector<1x128xf32> to vector<16x128xf32>
    %342 = arith.mulf %340, %341 : vector<16x128xf32>
    %343 = vector.broadcast %320 : vector<1x128xf32> to vector<16x128xf32>
    %344 = arith.addf %342, %343 : vector<16x128xf32>
    %345 = arith.truncf %344 : vector<16x128xf32> to vector<16x128xbf16>
    %c0_84 = arith.constant 0 : index
    %c0_85 = arith.constant 0 : index
    %c0_86 = arith.constant 0 : index
    %346 = vector.load %arg16[%c0_84, %c0_85, %c0_86] : memref<1x128x256xbf16, #tpu.memory_space<vmem>>, vector<1x128x256xbf16>
    %347 = vector.shape_cast %346 : vector<1x128x256xbf16> to vector<128x256xbf16>
    %cst_87 = arith.constant dense<0.000000e+00> : vector<16x256xf32>
    %348 = tpu.matmul %345, %347, %cst_87 {dimension_numbers = #tpu.dot_dimension_numbers<[1], [0], [0], [1], [0, 0, 1, 1], [], []>} : vector<16x128xbf16>, vector<128x256xbf16>, vector<16x256xf32> -> vector<16x256xf32>
    %c0_88 = arith.constant 0 : index
    %c0_89 = arith.constant 0 : index
    %c0_90 = arith.constant 0 : index
    %349 = vector.load %arg17[%c0_88, %c0_89, %c0_90] : memref<1x1x256xf32, #tpu.memory_space<vmem>>, vector<1x1x256xf32>
    %350 = vector.shape_cast %349 : vector<1x1x256xf32> to vector<1x256xf32>
    %351 = vector.broadcast %350 : vector<1x256xf32> to vector<16x256xf32>
    %352 = arith.addf %348, %351 : vector<16x256xf32>
    %cst_91 = arith.constant 0.000000e+00 : f32
    %353 = vector.broadcast %cst_91 : f32 to vector<16x256xf32>
    %354 = arith.maximumf %352, %353 : vector<16x256xf32>
    %355 = arith.truncf %354 : vector<16x256xf32> to vector<16x256xbf16>
    %c0_92 = arith.constant 0 : index
    %c0_93 = arith.constant 0 : index
    %c0_94 = arith.constant 0 : index
    %356 = vector.load %arg18[%c0_92, %c0_93, %c0_94] : memref<1x256x128xbf16, #tpu.memory_space<vmem>>, vector<1x256x128xbf16>
    %357 = vector.shape_cast %356 : vector<1x256x128xbf16> to vector<256x128xbf16>
    %cst_95 = arith.constant dense<0.000000e+00> : vector<16x128xf32>
    %358 = tpu.matmul %355, %357, %cst_95 {dimension_numbers = #tpu.dot_dimension_numbers<[1], [0], [0], [1], [0, 0, 1, 1], [], []>} : vector<16x256xbf16>, vector<256x128xbf16>, vector<16x128xf32> -> vector<16x128xf32>
    %c0_96 = arith.constant 0 : index
    %c0_97 = arith.constant 0 : index
    %c0_98 = arith.constant 0 : index
    %359 = vector.load %arg19[%c0_96, %c0_97, %c0_98] : memref<1x1x128xf32, #tpu.memory_space<vmem>>, vector<1x1x128xf32>
    %360 = vector.shape_cast %359 : vector<1x1x128xf32> to vector<1x128xf32>
    %361 = vector.broadcast %360 : vector<1x128xf32> to vector<16x128xf32>
    %362 = arith.addf %358, %361 : vector<16x128xf32>
    %363 = arith.addf %344, %362 : vector<16x128xf32>
    %c0_99 = arith.constant 0 : index
    %c0_100 = arith.constant 0 : index
    %c0_101 = arith.constant 0 : index
    %364 = vector.load %arg24[%c0_99, %c0_100, %c0_101] : memref<1x1x128xf32, #tpu.memory_space<vmem>>, vector<1x1x128xf32>
    %365 = vector.shape_cast %364 : vector<1x1x128xf32> to vector<1x128xf32>
    %c0_102 = arith.constant 0 : index
    %c0_103 = arith.constant 0 : index
    %c0_104 = arith.constant 0 : index
    %366 = vector.load %arg25[%c0_102, %c0_103, %c0_104] : memref<1x1x128xf32, #tpu.memory_space<vmem>>, vector<1x1x128xf32>
    %367 = vector.shape_cast %366 : vector<1x1x128xf32> to vector<1x128xf32>
    %cst_105 = arith.constant dense<0.000000e+00> : vector<16xf32>
    %368 = vector.multi_reduction <add>, %363, %cst_105 [1] : vector<16x128xf32> to vector<16xf32>
    %369 = vector.shape_cast %368 : vector<16xf32> to vector<16x1xf32>
    %cst_106 = arith.constant 1.280000e+02 : f32
    %370 = vector.broadcast %cst_106 : f32 to vector<16x1xf32>
    %371 = arith.divf %369, %370 : vector<16x1xf32>
    %372 = arith.mulf %363, %363 : vector<16x128xf32>
    %cst_107 = arith.constant dense<0.000000e+00> : vector<16xf32>
    %373 = vector.multi_reduction <add>, %372, %cst_107 [1] : vector<16x128xf32> to vector<16xf32>
    %374 = vector.shape_cast %373 : vector<16xf32> to vector<16x1xf32>
    %cst_108 = arith.constant 1.280000e+02 : f32
    %375 = vector.broadcast %cst_108 : f32 to vector<16x1xf32>
    %376 = arith.divf %374, %375 : vector<16x1xf32>
    %377 = arith.mulf %371, %371 : vector<16x1xf32>
    %378 = arith.subf %376, %377 : vector<16x1xf32>
    %cst_109 = arith.constant 0.000000e+00 : f32
    %379 = vector.broadcast %cst_109 : f32 to vector<16x1xf32>
    %380 = arith.maximumf %378, %379 : vector<16x1xf32>
    %381 = vector.broadcast %371 : vector<16x1xf32> to vector<16x128xf32>
    %382 = arith.subf %363, %381 : vector<16x128xf32>
    %cst_110 = arith.constant 9.99999974E-6 : f32
    %383 = vector.broadcast %cst_110 : f32 to vector<16x1xf32>
    %384 = arith.addf %380, %383 : vector<16x1xf32>
    %385 = math.rsqrt %384 : vector<16x1xf32>
    %386 = vector.broadcast %385 : vector<16x1xf32> to vector<16x128xf32>
    %387 = arith.mulf %382, %386 : vector<16x128xf32>
    %388 = vector.broadcast %365 : vector<1x128xf32> to vector<16x128xf32>
    %389 = arith.mulf %387, %388 : vector<16x128xf32>
    %390 = vector.broadcast %367 : vector<1x128xf32> to vector<16x128xf32>
    %391 = arith.addf %389, %390 : vector<16x128xf32>
    %c0_111 = arith.constant 0 : index
    %c0_112 = arith.constant 0 : index
    %392 = vector.load %arg27[%c0_111, %c0_112] : memref<16x128xf32, #tpu.memory_space<vmem>>, vector<16x128xf32>
    tpu.vector_store %arg27[%c0_111, %c0_112], %391 {strides = array<i32>} : memref<16x128xf32, #tpu.memory_space<vmem>>, vector<16x128xf32>,
    %c1_i32 = arith.constant 1 : i32
    %393 = arith.cmpi eq, %arg1, %c1_i32 : i32
    %394 = arith.extui %393 : i1 to i32
    %c0_i32_113 = arith.constant 0 : i32
    %395 = arith.cmpi ne, %394, %c0_i32_113 : i32
    scf.if %395 {
      %c0_114 = arith.constant 0 : index
      %c0_115 = arith.constant 0 : index
      %396 = vector.load %arg26[%c0_114, %c0_115] : memref<16x128xf32, #tpu.memory_space<vmem>>, vector<16x128xf32>
      tpu.vector_store %arg26[%c0_114, %c0_115], %391 {strides = array<i32>} : memref<16x128xf32, #tpu.memory_space<vmem>>, vector<16x128xf32>,
    } else {
    }
    return
  }
  func.func @transform_0(%arg0: i32, %arg1: i32) -> (i32, i32) {
    %c0_i32 = arith.constant 0 : i32
    %c0_i32_0 = arith.constant 0 : i32
    return %arg0, %c0_i32 : i32, i32
  }
  func.func @transform_1(%arg0: i32, %arg1: i32) -> (i32, i32) {
    %c0_i32 = arith.constant 0 : i32
    %c0_i32_0 = arith.constant 0 : i32
    return %arg0, %c0_i32 : i32, i32
  }
  func.func @transform_2(%arg0: i32, %arg1: i32) -> (i32, i32, i32) {
    %c0_i32 = arith.constant 0 : i32
    %c0_i32_0 = arith.constant 0 : i32
    %c0_i32_1 = arith.constant 0 : i32
    return %arg0, %c0_i32, %c0_i32_0 : i32, i32, i32
  }
  func.func @transform_3(%arg0: i32, %arg1: i32) -> (i32, i32, i32) {
    %c0_i32 = arith.constant 0 : i32
    %c0_i32_0 = arith.constant 0 : i32
    %c0_i32_1 = arith.constant 0 : i32
    return %arg0, %c0_i32, %c0_i32_0 : i32, i32, i32
  }
  func.func @transform_4(%arg0: i32, %arg1: i32) -> (i32, i32, i32) {
    %c0_i32 = arith.constant 0 : i32
    %c0_i32_0 = arith.constant 0 : i32
    %c0_i32_1 = arith.constant 0 : i32
    return %arg1, %c0_i32, %c0_i32_0 : i32, i32, i32
  }
  func.func @transform_5(%arg0: i32, %arg1: i32) -> (i32, i32, i32) {
    %c0_i32 = arith.constant 0 : i32
    %c0_i32_0 = arith.constant 0 : i32
    %c0_i32_1 = arith.constant 0 : i32
    return %arg1, %c0_i32, %c0_i32_0 : i32, i32, i32
  }
  func.func @transform_6(%arg0: i32, %arg1: i32) -> (i32, i32, i32) {
    %c0_i32 = arith.constant 0 : i32
    %c0_i32_0 = arith.constant 0 : i32
    %c0_i32_1 = arith.constant 0 : i32
    return %arg1, %c0_i32, %c0_i32_0 : i32, i32, i32
  }
  func.func @transform_7(%arg0: i32, %arg1: i32) -> (i32, i32, i32) {
    %c0_i32 = arith.constant 0 : i32
    %c0_i32_0 = arith.constant 0 : i32
    %c0_i32_1 = arith.constant 0 : i32
    return %arg1, %c0_i32, %c0_i32_0 : i32, i32, i32
  }
  func.func @transform_8(%arg0: i32, %arg1: i32) -> (i32, i32, i32) {
    %c0_i32 = arith.constant 0 : i32
    %c0_i32_0 = arith.constant 0 : i32
    %c0_i32_1 = arith.constant 0 : i32
    return %arg1, %c0_i32, %c0_i32_0 : i32, i32, i32
  }
  func.func @transform_9(%arg0: i32, %arg1: i32) -> (i32, i32, i32) {
    %c0_i32 = arith.constant 0 : i32
    %c0_i32_0 = arith.constant 0 : i32
    %c0_i32_1 = arith.constant 0 : i32
    return %arg1, %c0_i32, %c0_i32_0 : i32, i32, i32
  }
  func.func @transform_10(%arg0: i32, %arg1: i32) -> (i32, i32, i32) {
    %c0_i32 = arith.constant 0 : i32
    %c0_i32_0 = arith.constant 0 : i32
    %c0_i32_1 = arith.constant 0 : i32
    return %arg1, %c0_i32, %c0_i32_0 : i32, i32, i32
  }
  func.func @transform_11(%arg0: i32, %arg1: i32) -> (i32, i32, i32) {
    %c0_i32 = arith.constant 0 : i32
    %c0_i32_0 = arith.constant 0 : i32
    %c0_i32_1 = arith.constant 0 : i32
    return %arg1, %c0_i32, %c0_i32_0 : i32, i32, i32
  }
  func.func @transform_12(%arg0: i32, %arg1: i32) -> (i32, i32, i32) {
    %c0_i32 = arith.constant 0 : i32
    %c0_i32_0 = arith.constant 0 : i32
    %c0_i32_1 = arith.constant 0 : i32
    return %arg1, %c0_i32, %c0_i32_0 : i32, i32, i32
  }
  func.func @transform_13(%arg0: i32, %arg1: i32) -> (i32, i32, i32) {
    %c0_i32 = arith.constant 0 : i32
    %c0_i32_0 = arith.constant 0 : i32
    %c0_i32_1 = arith.constant 0 : i32
    return %arg1, %c0_i32, %c0_i32_0 : i32, i32, i32
  }
  func.func @transform_14(%arg0: i32, %arg1: i32) -> (i32, i32, i32) {
    %c0_i32 = arith.constant 0 : i32
    %c0_i32_0 = arith.constant 0 : i32
    %c0_i32_1 = arith.constant 0 : i32
    return %arg1, %c0_i32, %c0_i32_0 : i32, i32, i32
  }
  func.func @transform_15(%arg0: i32, %arg1: i32) -> (i32, i32, i32) {
    %c0_i32 = arith.constant 0 : i32
    %c0_i32_0 = arith.constant 0 : i32
    %c0_i32_1 = arith.constant 0 : i32
    return %arg1, %c0_i32, %c0_i32_0 : i32, i32, i32
  }
  func.func @transform_16(%arg0: i32, %arg1: i32) -> (i32, i32, i32) {
    %c0_i32 = arith.constant 0 : i32
    %c0_i32_0 = arith.constant 0 : i32
    %c0_i32_1 = arith.constant 0 : i32
    return %arg1, %c0_i32, %c0_i32_0 : i32, i32, i32
  }
  func.func @transform_17(%arg0: i32, %arg1: i32) -> (i32, i32, i32) {
    %c0_i32 = arith.constant 0 : i32
    %c0_i32_0 = arith.constant 0 : i32
    %c0_i32_1 = arith.constant 0 : i32
    return %arg1, %c0_i32, %c0_i32_0 : i32, i32, i32
  }
  func.func @transform_18(%arg0: i32, %arg1: i32) -> (i32, i32, i32) {
    %c0_i32 = arith.constant 0 : i32
    %c0_i32_0 = arith.constant 0 : i32
    %c0_i32_1 = arith.constant 0 : i32
    return %arg1, %c0_i32, %c0_i32_0 : i32, i32, i32
  }
  func.func @transform_19(%arg0: i32, %arg1: i32) -> (i32, i32, i32) {
    %c0_i32 = arith.constant 0 : i32
    %c0_i32_0 = arith.constant 0 : i32
    %c0_i32_1 = arith.constant 0 : i32
    return %arg1, %c0_i32, %c0_i32_0 : i32, i32, i32
  }
  func.func @transform_20(%arg0: i32, %arg1: i32) -> (i32, i32, i32) {
    %c0_i32 = arith.constant 0 : i32
    %c0_i32_0 = arith.constant 0 : i32
    %c0_i32_1 = arith.constant 0 : i32
    return %arg1, %c0_i32, %c0_i32_0 : i32, i32, i32
  }
  func.func @transform_21(%arg0: i32, %arg1: i32) -> (i32, i32, i32) {
    %c0_i32 = arith.constant 0 : i32
    %c0_i32_0 = arith.constant 0 : i32
    %c0_i32_1 = arith.constant 0 : i32
    return %arg1, %c0_i32, %c0_i32_0 : i32, i32, i32
  }
  func.func @transform_22(%arg0: i32, %arg1: i32) -> (i32, i32, i32) {
    %c0_i32 = arith.constant 0 : i32
    %c0_i32_0 = arith.constant 0 : i32
    %c0_i32_1 = arith.constant 0 : i32
    return %arg1, %c0_i32, %c0_i32_0 : i32, i32, i32
  }
  func.func @transform_23(%arg0: i32, %arg1: i32) -> (i32, i32, i32) {
    %c0_i32 = arith.constant 0 : i32
    %c0_i32_0 = arith.constant 0 : i32
    %c0_i32_1 = arith.constant 0 : i32
    return %arg1, %c0_i32, %c0_i32_0 : i32, i32, i32
  }
  func.func @transform_24(%arg0: i32, %arg1: i32) -> (i32, i32) {
    %c0_i32 = arith.constant 0 : i32
    %c0_i32_0 = arith.constant 0 : i32
    return %arg0, %c0_i32 : i32, i32
  }
}

</mosaic_0001>

<llo_original>
// kernel: tpu_custom_call.1
$region0: #{tpu_custom_call.1}
  #allocation0 [shape = 'u32[]', space=smem, size = 0x4, offset = 0x4, fixed_abs, tag = 'smem constant byte address 0x4 - core index']
  #allocation1 [shape = 'u32[144,128]{1,0:T(1,128)}', space=vmem, size = 0x12000, scoped, tag = 'internal scratch']
  #allocation2 [shape = 'f32[16,128]{1,0:T(8,128)}', space=vmem, size = 0x2000, scoped, tag = 'scratch operand']
  %s0 = inlined_call_operand.hbm [shape: f32[16,128], index: 0, kind: input, shape index: {}]
  %s1 = inlined_call_operand.hbm [shape: bf16[16,128], index: 1, kind: input, shape index: {}]
  %s2 = inlined_call_operand.hbm [shape: f32[2,8,8], index: 2, kind: input, shape index: {}]
  %s3 = inlined_call_operand.hbm [shape: f32[2,8,8], index: 3, kind: input, shape index: {}]
  %s4 = inlined_call_operand.hbm [shape: bf16[2,128,384], index: 4, kind: input, shape index: {}]
  %s5 = inlined_call_operand.vmem [shape: f32[2,1,384], index: 5, kind: input, shape index: {}]
  %s6 = inlined_call_operand.hbm [shape: bf16[2,128,128], index: 6, kind: input, shape index: {}]
  %s7 = inlined_call_operand.hbm [shape: f32[2,1,128], index: 7, kind: input, shape index: {}]
  %s8 = inlined_call_operand.hbm [shape: bf16[2,128,128], index: 8, kind: input, shape index: {}]
  %s9 = inlined_call_operand.vmem [shape: f32[2,1,128], index: 9, kind: input, shape index: {}]
  %s10 = inlined_call_operand.hbm [shape: bf16[2,128,256], index: 10, kind: input, shape index: {}]
  %s11 = inlined_call_operand.vmem [shape: f32[2,1,256], index: 11, kind: input, shape index: {}]
  %s12 = inlined_call_operand.hbm [shape: bf16[2,128,128], index: 12, kind: input, shape index: {}]
  %s13 = inlined_call_operand.vmem [shape: f32[2,1,128], index: 13, kind: input, shape index: {}]
  %s14 = inlined_call_operand.hbm [shape: bf16[2,128,256], index: 14, kind: input, shape index: {}]
  %s15 = inlined_call_operand.vmem [shape: f32[2,1,256], index: 15, kind: input, shape index: {}]
  %s16 = inlined_call_operand.hbm [shape: bf16[2,256,128], index: 16, kind: input, shape index: {}]
  %s17 = inlined_call_operand.vmem [shape: f32[2,1,128], index: 17, kind: input, shape index: {}]
  %s18 = inlined_call_operand.vmem [shape: f32[2,1,128], index: 18, kind: input, shape index: {}]
  %s19 = inlined_call_operand.vmem [shape: f32[2,1,128], index: 19, kind: input, shape index: {}]
  %s20 = inlined_call_operand.vmem [shape: f32[2,1,128], index: 20, kind: input, shape index: {}]
  %s21 = inlined_call_operand.vmem [shape: f32[2,1,128], index: 21, kind: input, shape index: {}]
  %s22 = inlined_call_operand.vmem [shape: f32[2,1,128], index: 22, kind: input, shape index: {}]
  %s23 = inlined_call_operand.vmem [shape: f32[2,1,128], index: 23, kind: input, shape index: {}]
  %s24 = inlined_call_operand.hbm [shape: f32[16,128], index: 24, kind: output, shape index: {}]
  %s25 = sld [smem:[#allocation0]]
  $region185: #{tpu_custom_call.1} parent=0
    _
  %s27 = ssub.s32 1, %s25
  %s28 = scalar_select 0, %s27, %s25
  $region1: #{tpu_custom_call.1} parent=0
    #allocation3 [shape = 'u8[8192]{0}', space=vmem, size = 0x2000, scoped, tag = 'input window, operand 0, single buffered']
    #allocation4 [shape = 's32[2]{0}', space=sflag, size = 0x8, scoped, tag = 'scoped memory for tpu_custom_call.1']
    #allocation5 [shape = 's32[2]{0}', space=sflag, size = 0x8, scoped, tag = 'scoped memory for tpu_custom_call.1']
    #allocation6 [shape = 'u8[4096]{0}', space=vmem, size = 0x1000, scoped, tag = 'input window, operand 1, single buffered']
    #allocation7 [shape = 's32[1]{0}', space=sflag, size = 0x4, scoped, tag = 'scoped memory for tpu_custom_call.1']
    #allocation8 [shape = 'u8[8192]{0}', space=vmem, size = 0x2000, scoped, tag = 'input window, operand 2, single buffered']
    #allocation9 [shape = 'u8[8192]{0}', space=vmem, size = 0x2000, scoped, tag = 'input window, operand 3, single buffered']
    #allocation10 [shape = 's32[1]{0}', space=sflag, size = 0x4, scoped, tag = 'scoped memory for tpu_custom_call.1']
    #allocation11 [shape = 'u8[196608]{0}', space=vmem, size = 0x30000, scoped, tag = 'input window, operand 4']
    #allocation12 [shape = 'u8[65536]{0}', space=vmem, size = 0x10000, scoped, tag = 'input window, operand 6']
    #allocation13 [shape = 'u8[1024]{0}', space=vmem, size = 0x400, scoped, tag = 'input window, operand 7']
    #allocation14 [shape = 'u8[65536]{0}', space=vmem, size = 0x10000, scoped, tag = 'input window, operand 8']
    #allocation15 [shape = 'u8[131072]{0}', space=vmem, size = 0x20000, scoped, tag = 'input window, operand 10']
    #allocation16 [shape = 'u8[65536]{0}', space=vmem, size = 0x10000, scoped, tag = 'input window, operand 12']
    #allocation17 [shape = 'u8[131072]{0}', space=vmem, size = 0x20000, scoped, tag = 'input window, operand 14']
    #allocation18 [shape = 'u8[131072]{0}', space=vmem, size = 0x20000, scoped, tag = 'input window, operand 16']
    #allocation19 [shape = 'u8[8192]{0}', space=vmem, size = 0x2000, scoped, tag = 'output window, operand 0, single buffered']
    %29 = vsyncpa [#allocation4], 0
    %30 = vsyncpa [#allocation7], 0
    %31 = vsyncpa [#allocation10], 0
    %32 = vsyncpa [#allocation5], 0
    loop: start=0, step=1, limit=4
    $region2: #{tpu_custom_call.1} parent=1 // loop_pre_header
      _
    $region3: #{tpu_custom_call.1} parent=1 // loop_header
      %s34 = sphi 0, %s38
      %p35 = scmp.ge.s32.totalorder %s34, 4
      %s41 = sphi 0, %s53
      %s42 = sphi 0, %s49
      %s43 = sphi 0, %s41
      %s44 = sphi 0, %s42
      %s45 = sphi 0, %s43
      %s46 = sphi 0, %s44
      %s56 = sphi 0, %s58
      %s59 = sphi 0, %s56
      %s60 = sphi 0, %s59
      %s76 = sphi 0, %s60
      %s82 = sphi 0, %s84
      %s85 = sphi 0, %s82
      %s86 = sphi 0, %s85
      %s102 = sphi 0, %s86
      %s108 = sphi 0, %s110
      %s111 = sphi 0, %s108
      %s112 = sphi 0, %s111
      %s128 = sphi 0, %s112
      %s134 = sphi 0, %s136
      %s137 = sphi 0, %s134
      %s138 = sphi 0, %s137
      %s154 = sphi 0, %s138
      %s160 = sphi 0, %s162
      %s163 = sphi 0, %s160
      %s164 = sphi 0, %s163
      %s180 = sphi 0, %s164
      %s186 = sphi 0, %s188
      %s189 = sphi 0, %s186
      %s190 = sphi 0, %s189
      %s206 = sphi 0, %s190
      %s212 = sphi 0, %s214
      %s215 = sphi 0, %s212
      %s216 = sphi 0, %s215
      %s232 = sphi 0, %s216
      %s238 = sphi 0, %s240
      %s241 = sphi 0, %s238
      %s242 = sphi 0, %s241
      %s258 = sphi 0, %s242
      %s264 = sphi 0, %s266
      %s267 = sphi 0, %s264
      %s268 = sphi 0, %s267
      %s284 = sphi 0, %s268
      %s290 = sphi 0, %s292
      %s293 = sphi 0, %s290
      %s294 = sphi 0, %s293
      %s310 = sphi 0, %s294
      %s316 = sphi 0, %s318
      %s319 = sphi 0, %s316
      %s320 = sphi 0, %s319
      %s336 = sphi 0, %s320
      %s342 = sphi 0, %s344
      %s345 = sphi 0, %s342
      %s346 = sphi 0, %s345
      %s362 = sphi 0, %s346
      %s368 = sphi 0, %s370
      %s371 = sphi 0, %s368
      %s372 = sphi 0, %s371
      %s388 = sphi 0, %s372
      %s394 = sphi 0, %s396
      %s397 = sphi 0, %s394
      %s398 = sphi 0, %s397
      %s414 = sphi 0, %s398
      %s420 = sphi 0, %s422
      %s423 = sphi 0, %s420
      %s424 = sphi 0, %s423
      %s440 = sphi 0, %s424
      %s446 = sphi 0, %s448
      %s449 = sphi 0, %s446
      %s450 = sphi 0, %s449
      %s466 = sphi 0, %s450
      %s472 = sphi 0, %s474
      %s475 = sphi 0, %s472
      %s476 = sphi 0, %s475
      %s492 = sphi 0, %s476
      %s498 = sphi 0, %s500
      %s501 = sphi 0, %s498
      %s502 = sphi 0, %s501
      %s518 = sphi 0, %s502
      %s524 = sphi 0, %s526
      %s527 = sphi 0, %s524
      %s528 = sphi 0, %s527
      %s544 = sphi 0, %s528
      %s550 = sphi 0, %s552
      %s553 = sphi 0, %s550
      %s554 = sphi 0, %s553
      %s570 = sphi 0, %s554
      %s576 = sphi 0, %s578
      %s579 = sphi 0, %s576
      %s580 = sphi 0, %s579
      %s596 = sphi 0, %s580
      %s602 = sphi 0, %s604
      %s605 = sphi 0, %s602
      %s606 = sphi 0, %s605
      %s622 = sphi 0, %s606
      %s628 = sphi 0, %s630
      %s631 = sphi 0, %s628
      %s632 = sphi 0, %s631
      %s648 = sphi 0, %s632
      %s654 = sphi 0, %s656
      %s657 = sphi 0, %s654
      %s658 = sphi 0, %s657
      %s674 = sphi 0, %s658
      %s680 = sphi 0, %s682
      %s683 = sphi 0, %s680
      %s684 = sphi 0, %s683
      %s700 = sphi 0, %s684
    $region4: #{tpu_custom_call.1} parent=1 // loop_header_branch
      %37 = sbr.rel (%p35) target = $region8
    $region5: #{tpu_custom_call.1} parent=1 // loop_body
      %s39 = ssub.s32 %s34, 1
      %s40 = ssub.s32 %s34, 2
      %s47 = sadd.s32 1, %s42
      %p48 = scmp.ge.s32.totalorder %s47, 2
      %s49 = scalar_select %p48, 0, %s47
      %s50 = sadd.s32 1, %s41
      %s51 = scalar_select %p48, %s50, %s41
      %p52 = scmp.ge.s32.totalorder %s51, 1
      %s53 = scalar_select %p52, 0, %s51
      %s54 = ssub.s32 %s41, %s53
      %p55 = scmp.eq.s32.totalorder %s54, 0
      %s57 = sadd.s32 %s56, 1
      %s58 = scalar_select %p55, %s56, %s57
      %p61 = pneg %p55
      %p62 = scmp.eq.s32.totalorder %s34, 1
      %p63 = por %p61, %p62
      %p64 = scmp.ne.s32.totalorder %s56, %s59
      %p65 = scmp.eq.s32.totalorder %s34, 0
      %p66 = por %p64, %p65
      %p67 = scmp.ne.s32.totalorder %s56, %s59
      %p68 = scmp.eq.s32.totalorder %s39, 1
      %p69 = por %p67, %p68
      %p70 = scmp.ne.s32.totalorder %s59, %s60
      %p71 = scmp.eq.s32.totalorder %s39, 0
      %p72 = por %p70, %p71
      %p73 = scmp.ne.s32.totalorder %s59, %s60
      %p74 = scmp.eq.s32.totalorder %s40, 1
      %p75 = por %p73, %p74
      %p77 = scmp.ne.s32.totalorder %s60, %s76
      %p78 = scmp.eq.s32.totalorder %s40, 0
      %p79 = por %p77, %p78
      %s80 = ssub.s32 %s41, %s53
      %p81 = scmp.eq.s32.totalorder %s80, 0
      %s83 = sadd.s32 %s82, 1
      %s84 = scalar_select %p81, %s82, %s83
      %p87 = pneg %p81
      %p88 = scmp.eq.s32.totalorder %s34, 1
      %p89 = por %p87, %p88
      %p90 = scmp.ne.s32.totalorder %s82, %s85
      %p91 = scmp.eq.s32.totalorder %s34, 0
      %p92 = por %p90, %p91
      %p93 = scmp.ne.s32.totalorder %s82, %s85
      %p94 = scmp.eq.s32.totalorder %s39, 1
      %p95 = por %p93, %p94
      %p96 = scmp.ne.s32.totalorder %s85, %s86
      %p97 = scmp.eq.s32.totalorder %s39, 0
      %p98 = por %p96, %p97
      %p99 = scmp.ne.s32.totalorder %s85, %s86
      %p100 = scmp.eq.s32.totalorder %s40, 1
      %p101 = por %p99, %p100
      %p103 = scmp.ne.s32.totalorder %s86, %s102
      %p104 = scmp.eq.s32.totalorder %s40, 0
      %p105 = por %p103, %p104
      %s106 = ssub.s32 %s41, %s53
      %p107 = scmp.eq.s32.totalorder %s106, 0
      %s109 = sadd.s32 %s108, 1
      %s110 = scalar_select %p107, %s108, %s109
      %p113 = pneg %p107
      %p114 = scmp.eq.s32.totalorder %s34, 1
      %p115 = por %p113, %p114
      %p116 = scmp.ne.s32.totalorder %s108, %s111
      %p117 = scmp.eq.s32.totalorder %s34, 0
      %p118 = por %p116, %p117
      %p119 = scmp.ne.s32.totalorder %s108, %s111
      %p120 = scmp.eq.s32.totalorder %s39, 1
      %p121 = por %p119, %p120
      %p122 = scmp.ne.s32.totalorder %s111, %s112
      %p123 = scmp.eq.s32.totalorder %s39, 0
      %p124 = por %p122, %p123
      %p125 = scmp.ne.s32.totalorder %s111, %s112
      %p126 = scmp.eq.s32.totalorder %s40, 1
      %p127 = por %p125, %p126
      %p129 = scmp.ne.s32.totalorder %s112, %s128
      %p130 = scmp.eq.s32.totalorder %s40, 0
      %p131 = por %p129, %p130
      %s132 = ssub.s32 %s41, %s53
      %p133 = scmp.eq.s32.totalorder %s132, 0
      %s135 = sadd.s32 %s134, 1
      %s136 = scalar_select %p133, %s134, %s135
      %p139 = pneg %p133
      %p140 = scmp.eq.s32.totalorder %s34, 1
      %p141 = por %p139, %p140
      %p142 = scmp.ne.s32.totalorder %s134, %s137
      %p143 = scmp.eq.s32.totalorder %s34, 0
      %p144 = por %p142, %p143
      %p145 = scmp.ne.s32.totalorder %s134, %s137
      %p146 = scmp.eq.s32.totalorder %s39, 1
      %p147 = por %p145, %p146
      %p148 = scmp.ne.s32.totalorder %s137, %s138
      %p149 = scmp.eq.s32.totalorder %s39, 0
      %p150 = por %p148, %p149
      %p151 = scmp.ne.s32.totalorder %s137, %s138
      %p152 = scmp.eq.s32.totalorder %s40, 1
      %p153 = por %p151, %p152
      %p155 = scmp.ne.s32.totalorder %s138, %s154
      %p156 = scmp.eq.s32.totalorder %s40, 0
      %p157 = por %p155, %p156
      %s158 = ssub.s32 %s42, %s49
      %p159 = scmp.eq.s32.totalorder %s158, 0
      %s161 = sadd.s32 %s160, 1
      %s162 = scalar_select %p159, %s160, %s161
      %p165 = pneg %p159
      %p166 = scmp.eq.s32.totalorder %s34, 1
      %p167 = por %p165, %p166
      %p168 = scmp.ne.s32.totalorder %s160, %s163
      %p169 = scmp.eq.s32.totalorder %s34, 0
      %p170 = por %p168, %p169
      %p171 = scmp.ne.s32.totalorder %s160, %s163
      %p172 = scmp.eq.s32.totalorder %s39, 1
      %p173 = por %p171, %p172
      %p174 = scmp.ne.s32.totalorder %s163, %s164
      %p175 = scmp.eq.s32.totalorder %s39, 0
      %p176 = por %p174, %p175
      %p177 = scmp.ne.s32.totalorder %s163, %s164
      %p178 = scmp.eq.s32.totalorder %s40, 1
      %p179 = por %p177, %p178
      %p181 = scmp.ne.s32.totalorder %s164, %s180
      %p182 = scmp.eq.s32.totalorder %s40, 0
      %p183 = por %p181, %p182
      %s184 = ssub.s32 %s42, %s49
      %p185 = scmp.eq.s32.totalorder %s184, 0
      %s187 = sadd.s32 %s186, 1
      %s188 = scalar_select %p185, %s186, %s187
      %p191 = pneg %p185
      %p192 = scmp.eq.s32.totalorder %s34, 1
      %p193 = por %p191, %p192
      %p194 = scmp.ne.s32.totalorder %s186, %s189
      %p195 = scmp.eq.s32.totalorder %s34, 0
      %p196 = por %p194, %p195
      %p197 = scmp.ne.s32.totalorder %s186, %s189
      %p198 = scmp.eq.s32.totalorder %s39, 1
      %p199 = por %p197, %p198
      %p200 = scmp.ne.s32.totalorder %s189, %s190
      %p201 = scmp.eq.s32.totalorder %s39, 0
      %p202 = por %p200, %p201
      %p203 = scmp.ne.s32.totalorder %s189, %s190
      %p204 = scmp.eq.s32.totalorder %s40, 1
      %p205 = por %p203, %p204
      %p207 = scmp.ne.s32.totalorder %s190, %s206
      %p208 = scmp.eq.s32.totalorder %s40, 0
      %p209 = por %p207, %p208
      %s210 = ssub.s32 %s42, %s49
      %p211 = scmp.eq.s32.totalorder %s210, 0
      %s213 = sadd.s32 %s212, 1
      %s214 = scalar_select %p211, %s212, %s213
      %p217 = pneg %p211
      %p218 = scmp.eq.s32.totalorder %s34, 1
      %p219 = por %p217, %p218
      %p220 = scmp.ne.s32.totalorder %s212, %s215
      %p221 = scmp.eq.s32.totalorder %s34, 0
      %p222 = por %p220, %p221
      %p223 = scmp.ne.s32.totalorder %s212, %s215
      %p224 = scmp.eq.s32.totalorder %s39, 1
      %p225 = por %p223, %p224
      %p226 = scmp.ne.s32.totalorder %s215, %s216
      %p227 = scmp.eq.s32.totalorder %s39, 0
      %p228 = por %p226, %p227
      %p229 = scmp.ne.s32.totalorder %s215, %s216
      %p230 = scmp.eq.s32.totalorder %s40, 1
      %p231 = por %p229, %p230
      %p233 = scmp.ne.s32.totalorder %s216, %s232
      %p234 = scmp.eq.s32.totalorder %s40, 0
      %p235 = por %p233, %p234
      %s236 = ssub.s32 %s42, %s49
      %p237 = scmp.eq.s32.totalorder %s236, 0
      %s239 = sadd.s32 %s238, 1
      %s240 = scalar_select %p237, %s238, %s239
      %p243 = pneg %p237
      %p244 = scmp.eq.s32.totalorder %s34, 1
      %p245 = por %p243, %p244
      %p246 = scmp.ne.s32.totalorder %s238, %s241
      %p247 = scmp.eq.s32.totalorder %s34, 0
      %p248 = por %p246, %p247
      %p249 = scmp.ne.s32.totalorder %s238, %s241
      %p250 = scmp.eq.s32.totalorder %s39, 1
      %p251 = por %p249, %p250
      %p252 = scmp.ne.s32.totalorder %s241, %s242
      %p253 = scmp.eq.s32.totalorder %s39, 0
      %p254 = por %p252, %p253
      %p255 = scmp.ne.s32.totalorder %s241, %s242
      %p256 = scmp.eq.s32.totalorder %s40, 1
      %p257 = por %p255, %p256
      %p259 = scmp.ne.s32.totalorder %s242, %s258
      %p260 = scmp.eq.s32.totalorder %s40, 0
      %p261 = por %p259, %p260
      %s262 = ssub.s32 %s42, %s49
      %p263 = scmp.eq.s32.totalorder %s262, 0
      %s265 = sadd.s32 %s264, 1
      %s266 = scalar_select %p263, %s264, %s265
      %p269 = pneg %p263
      %p270 = scmp.eq.s32.totalorder %s34, 1
      %p271 = por %p269, %p270
      %p272 = scmp.ne.s32.totalorder %s264, %s267
      %p273 = scmp.eq.s32.totalorder %s34, 0
      %p274 = por %p272, %p273
      %p275 = scmp.ne.s32.totalorder %s264, %s267
      %p276 = scmp.eq.s32.totalorder %s39, 1
      %p277 = por %p275, %p276
      %p278 = scmp.ne.s32.totalorder %s267, %s268
      %p279 = scmp.eq.s32.totalorder %s39, 0
      %p280 = por %p278, %p279
      %p281 = scmp.ne.s32.totalorder %s267, %s268
      %p282 = scmp.eq.s32.totalorder %s40, 1
      %p283 = por %p281, %p282
      %p285 = scmp.ne.s32.totalorder %s268, %s284
      %p286 = scmp.eq.s32.totalorder %s40, 0
      %p287 = por %p285, %p286
      %s288 = ssub.s32 %s42, %s49
      %p289 = scmp.eq.s32.totalorder %s288, 0
      %s291 = sadd.s32 %s290, 1
      %s292 = scalar_select %p289, %s290, %s291
      %p295 = pneg %p289
      %p296 = scmp.eq.s32.totalorder %s34, 1
      %p297 = por %p295, %p296
      %p298 = scmp.ne.s32.totalorder %s290, %s293
      %p299 = scmp.eq.s32.totalorder %s34, 0
      %p300 = por %p298, %p299
      %p301 = scmp.ne.s32.totalorder %s290, %s293
      %p302 = scmp.eq.s32.totalorder %s39, 1
      %p303 = por %p301, %p302
      %p304 = scmp.ne.s32.totalorder %s293, %s294
      %p305 = scmp.eq.s32.totalorder %s39, 0
      %p306 = por %p304, %p305
      %p307 = scmp.ne.s32.totalorder %s293, %s294
      %p308 = scmp.eq.s32.totalorder %s40, 1
      %p309 = por %p307, %p308
      %p311 = scmp.ne.s32.totalorder %s294, %s310
      %p312 = scmp.eq.s32.totalorder %s40, 0
      %p313 = por %p311, %p312
      %s314 = ssub.s32 %s42, %s49
      %p315 = scmp.eq.s32.totalorder %s314, 0
      %s317 = sadd.s32 %s316, 1
      %s318 = scalar_select %p315, %s316, %s317
      %p321 = pneg %p315
      %p322 = scmp.eq.s32.totalorder %s34, 1
      %p323 = por %p321, %p322
      %p324 = scmp.ne.s32.totalorder %s316, %s319
      %p325 = scmp.eq.s32.totalorder %s34, 0
      %p326 = por %p324, %p325
      %p327 = scmp.ne.s32.totalorder %s316, %s319
      %p328 = scmp.eq.s32.totalorder %s39, 1
      %p329 = por %p327, %p328
      %p330 = scmp.ne.s32.totalorder %s319, %s320
      %p331 = scmp.eq.s32.totalorder %s39, 0
      %p332 = por %p330, %p331
      %p333 = scmp.ne.s32.totalorder %s319, %s320
      %p334 = scmp.eq.s32.totalorder %s40, 1
      %p335 = por %p333, %p334
      %p337 = scmp.ne.s32.totalorder %s320, %s336
      %p338 = scmp.eq.s32.totalorder %s40, 0
      %p339 = por %p337, %p338
      %s340 = ssub.s32 %s42, %s49
      %p341 = scmp.eq.s32.totalorder %s340, 0
      %s343 = sadd.s32 %s342, 1
      %s344 = scalar_select %p341, %s342, %s343
      %p347 = pneg %p341
      %p348 = scmp.eq.s32.totalorder %s34, 1
      %p349 = por %p347, %p348
      %p350 = scmp.ne.s32.totalorder %s342, %s345
      %p351 = scmp.eq.s32.totalorder %s34, 0
      %p352 = por %p350, %p351
      %p353 = scmp.ne.s32.totalorder %s342, %s345
      %p354 = scmp.eq.s32.totalorder %s39, 1
      %p355 = por %p353, %p354
      %p356 = scmp.ne.s32.totalorder %s345, %s346
      %p357 = scmp.eq.s32.totalorder %s39, 0
      %p358 = por %p356, %p357
      %p359 = scmp.ne.s32.totalorder %s345, %s346
      %p360 = scmp.eq.s32.totalorder %s40, 1
      %p361 = por %p359, %p360
      %p363 = scmp.ne.s32.totalorder %s346, %s362
      %p364 = scmp.eq.s32.totalorder %s40, 0
      %p365 = por %p363, %p364
      %s366 = ssub.s32 %s42, %s49
      %p367 = scmp.eq.s32.totalorder %s366, 0
      %s369 = sadd.s32 %s368, 1
      %s370 = scalar_select %p367, %s368, %s369
      %p373 = pneg %p367
      %p374 = scmp.eq.s32.totalorder %s34, 1
      %p375 = por %p373, %p374
      %p376 = scmp.ne.s32.totalorder %s368, %s371
      %p377 = scmp.eq.s32.totalorder %s34, 0
      %p378 = por %p376, %p377
      %p379 = scmp.ne.s32.totalorder %s368, %s371
      %p380 = scmp.eq.s32.totalorder %s39, 1
      %p381 = por %p379, %p380
      %p382 = scmp.ne.s32.totalorder %s371, %s372
      %p383 = scmp.eq.s32.totalorder %s39, 0
      %p384 = por %p382, %p383
      %p385 = scmp.ne.s32.totalorder %s371, %s372
      %p386 = scmp.eq.s32.totalorder %s40, 1
      %p387 = por %p385, %p386
      %p389 = scmp.ne.s32.totalorder %s372, %s388
      %p390 = scmp.eq.s32.totalorder %s40, 0
      %p391 = por %p389, %p390
      %s392 = ssub.s32 %s42, %s49
      %p393 = scmp.eq.s32.totalorder %s392, 0
      %s395 = sadd.s32 %s394, 1
      %s396 = scalar_select %p393, %s394, %s395
      %p399 = pneg %p393
      %p400 = scmp.eq.s32.totalorder %s34, 1
      %p401 = por %p399, %p400
      %p402 = scmp.ne.s32.totalorder %s394, %s397
      %p403 = scmp.eq.s32.totalorder %s34, 0
      %p404 = por %p402, %p403
      %p405 = scmp.ne.s32.totalorder %s394, %s397
      %p406 = scmp.eq.s32.totalorder %s39, 1
      %p407 = por %p405, %p406
      %p408 = scmp.ne.s32.totalorder %s397, %s398
      %p409 = scmp.eq.s32.totalorder %s39, 0
      %p410 = por %p408, %p409
      %p411 = scmp.ne.s32.totalorder %s397, %s398
      %p412 = scmp.eq.s32.totalorder %s40, 1
      %p413 = por %p411, %p412
      %p415 = scmp.ne.s32.totalorder %s398, %s414
      %p416 = scmp.eq.s32.totalorder %s40, 0
      %p417 = por %p415, %p416
      %s418 = ssub.s32 %s42, %s49
      %p419 = scmp.eq.s32.totalorder %s418, 0
      %s421 = sadd.s32 %s420, 1
      %s422 = scalar_select %p419, %s420, %s421
      %p425 = pneg %p419
      %p426 = scmp.eq.s32.totalorder %s34, 1
      %p427 = por %p425, %p426
      %p428 = scmp.ne.s32.totalorder %s420, %s423
      %p429 = scmp.eq.s32.totalorder %s34, 0
      %p430 = por %p428, %p429
      %p431 = scmp.ne.s32.totalorder %s420, %s423
      %p432 = scmp.eq.s32.totalorder %s39, 1
      %p433 = por %p431, %p432
      %p434 = scmp.ne.s32.totalorder %s423, %s424
      %p435 = scmp.eq.s32.totalorder %s39, 0
      %p436 = por %p434, %p435
      %p437 = scmp.ne.s32.totalorder %s423, %s424
      %p438 = scmp.eq.s32.totalorder %s40, 1
      %p439 = por %p437, %p438
      %p441 = scmp.ne.s32.totalorder %s424, %s440
      %p442 = scmp.eq.s32.totalorder %s40, 0
      %p443 = por %p441, %p442
      %s444 = ssub.s32 %s42, %s49
      %p445 = scmp.eq.s32.totalorder %s444, 0
      %s447 = sadd.s32 %s446, 1
      %s448 = scalar_select %p445, %s446, %s447
      %p451 = pneg %p445
      %p452 = scmp.eq.s32.totalorder %s34, 1
      %p453 = por %p451, %p452
      %p454 = scmp.ne.s32.totalorder %s446, %s449
      %p455 = scmp.eq.s32.totalorder %s34, 0
      %p456 = por %p454, %p455
      %p457 = scmp.ne.s32.totalorder %s446, %s449
      %p458 = scmp.eq.s32.totalorder %s39, 1
      %p459 = por %p457, %p458
      %p460 = scmp.ne.s32.totalorder %s449, %s450
      %p461 = scmp.eq.s32.totalorder %s39, 0
      %p462 = por %p460, %p461
      %p463 = scmp.ne.s32.totalorder %s449, %s450
      %p464 = scmp.eq.s32.totalorder %s40, 1
      %p465 = por %p463, %p464
      %p467 = scmp.ne.s32.totalorder %s450, %s466
      %p468 = scmp.eq.s32.totalorder %s40, 0
      %p469 = por %p467, %p468
      %s470 = ssub.s32 %s42, %s49
      %p471 = scmp.eq.s32.totalorder %s470, 0
      %s473 = sadd.s32 %s472, 1
      %s474 = scalar_select %p471, %s472, %s473
      %p477 = pneg %p471
      %p478 = scmp.eq.s32.totalorder %s34, 1
      %p479 = por %p477, %p478
      %p480 = scmp.ne.s32.totalorder %s472, %s475
      %p481 = scmp.eq.s32.totalorder %s34, 0
      %p482 = por %p480, %p481
      %p483 = scmp.ne.s32.totalorder %s472, %s475
      %p484 = scmp.eq.s32.totalorder %s39, 1
      %p485 = por %p483, %p484
      %p486 = scmp.ne.s32.totalorder %s475, %s476
      %p487 = scmp.eq.s32.totalorder %s39, 0
      %p488 = por %p486, %p487
      %p489 = scmp.ne.s32.totalorder %s475, %s476
      %p490 = scmp.eq.s32.totalorder %s40, 1
      %p491 = por %p489, %p490
      %p493 = scmp.ne.s32.totalorder %s476, %s492
      %p494 = scmp.eq.s32.totalorder %s40, 0
      %p495 = por %p493, %p494
      %s496 = ssub.s32 %s42, %s49
      %p497 = scmp.eq.s32.totalorder %s496, 0
      %s499 = sadd.s32 %s498, 1
      %s500 = scalar_select %p497, %s498, %s499
      %p503 = pneg %p497
      %p504 = scmp.eq.s32.totalorder %s34, 1
      %p505 = por %p503, %p504
      %p506 = scmp.ne.s32.totalorder %s498, %s501
      %p507 = scmp.eq.s32.totalorder %s34, 0
      %p508 = por %p506, %p507
      %p509 = scmp.ne.s32.totalorder %s498, %s501
      %p510 = scmp.eq.s32.totalorder %s39, 1
      %p511 = por %p509, %p510
      %p512 = scmp.ne.s32.totalorder %s501, %s502
      %p513 = scmp.eq.s32.totalorder %s39, 0
      %p514 = por %p512, %p513
      %p515 = scmp.ne.s32.totalorder %s501, %s502
      %p516 = scmp.eq.s32.totalorder %s40, 1
      %p517 = por %p515, %p516
      %p519 = scmp.ne.s32.totalorder %s502, %s518
      %p520 = scmp.eq.s32.totalorder %s40, 0
      %p521 = por %p519, %p520
      %s522 = ssub.s32 %s42, %s49
      %p523 = scmp.eq.s32.totalorder %s522, 0
      %s525 = sadd.s32 %s524, 1
      %s526 = scalar_select %p523, %s524, %s525
      %p529 = pneg %p523
      %p530 = scmp.eq.s32.totalorder %s34, 1
      %p531 = por %p529, %p530
      %p532 = scmp.ne.s32.totalorder %s524, %s527
      %p533 = scmp.eq.s32.totalorder %s34, 0
      %p534 = por %p532, %p533
      %p535 = scmp.ne.s32.totalorder %s524, %s527
      %p536 = scmp.eq.s32.totalorder %s39, 1
      %p537 = por %p535, %p536
      %p538 = scmp.ne.s32.totalorder %s527, %s528
      %p539 = scmp.eq.s32.totalorder %s39, 0
      %p540 = por %p538, %p539
      %p541 = scmp.ne.s32.totalorder %s527, %s528
      %p542 = scmp.eq.s32.totalorder %s40, 1
      %p543 = por %p541, %p542
      %p545 = scmp.ne.s32.totalorder %s528, %s544
      %p546 = scmp.eq.s32.totalorder %s40, 0
      %p547 = por %p545, %p546
      %s548 = ssub.s32 %s42, %s49
      %p549 = scmp.eq.s32.totalorder %s548, 0
      %s551 = sadd.s32 %s550, 1
      %s552 = scalar_select %p549, %s550, %s551
      %p555 = pneg %p549
      %p556 = scmp.eq.s32.totalorder %s34, 1
      %p557 = por %p555, %p556
      %p558 = scmp.ne.s32.totalorder %s550, %s553
      %p559 = scmp.eq.s32.totalorder %s34, 0
      %p560 = por %p558, %p559
      %p561 = scmp.ne.s32.totalorder %s550, %s553
      %p562 = scmp.eq.s32.totalorder %s39, 1
      %p563 = por %p561, %p562
      %p564 = scmp.ne.s32.totalorder %s553, %s554
      %p565 = scmp.eq.s32.totalorder %s39, 0
      %p566 = por %p564, %p565
      %p567 = scmp.ne.s32.totalorder %s553, %s554
      %p568 = scmp.eq.s32.totalorder %s40, 1
      %p569 = por %p567, %p568
      %p571 = scmp.ne.s32.totalorder %s554, %s570
      %p572 = scmp.eq.s32.totalorder %s40, 0
      %p573 = por %p571, %p572
      %s574 = ssub.s32 %s42, %s49
      %p575 = scmp.eq.s32.totalorder %s574, 0
      %s577 = sadd.s32 %s576, 1
      %s578 = scalar_select %p575, %s576, %s577
      %p581 = pneg %p575
      %p582 = scmp.eq.s32.totalorder %s34, 1
      %p583 = por %p581, %p582
      %p584 = scmp.ne.s32.totalorder %s576, %s579
      %p585 = scmp.eq.s32.totalorder %s34, 0
      %p586 = por %p584, %p585
      %p587 = scmp.ne.s32.totalorder %s576, %s579
      %p588 = scmp.eq.s32.totalorder %s39, 1
      %p589 = por %p587, %p588
      %p590 = scmp.ne.s32.totalorder %s579, %s580
      %p591 = scmp.eq.s32.totalorder %s39, 0
      %p592 = por %p590, %p591
      %p593 = scmp.ne.s32.totalorder %s579, %s580
      %p594 = scmp.eq.s32.totalorder %s40, 1
      %p595 = por %p593, %p594
      %p597 = scmp.ne.s32.totalorder %s580, %s596
      %p598 = scmp.eq.s32.totalorder %s40, 0
      %p599 = por %p597, %p598
      %s600 = ssub.s32 %s42, %s49
      %p601 = scmp.eq.s32.totalorder %s600, 0
      %s603 = sadd.s32 %s602, 1
      %s604 = scalar_select %p601, %s602, %s603
      %p607 = pneg %p601
      %p608 = scmp.eq.s32.totalorder %s34, 1
      %p609 = por %p607, %p608
      %p610 = scmp.ne.s32.totalorder %s602, %s605
      %p611 = scmp.eq.s32.totalorder %s34, 0
      %p612 = por %p610, %p611
      %p613 = scmp.ne.s32.totalorder %s602, %s605
      %p614 = scmp.eq.s32.totalorder %s39, 1
      %p615 = por %p613, %p614
      %p616 = scmp.ne.s32.totalorder %s605, %s606
      %p617 = scmp.eq.s32.totalorder %s39, 0
      %p618 = por %p616, %p617
      %p619 = scmp.ne.s32.totalorder %s605, %s606
      %p620 = scmp.eq.s32.totalorder %s40, 1
      %p621 = por %p619, %p620
      %p623 = scmp.ne.s32.totalorder %s606, %s622
      %p624 = scmp.eq.s32.totalorder %s40, 0
      %p625 = por %p623, %p624
      %s626 = ssub.s32 %s42, %s49
      %p627 = scmp.eq.s32.totalorder %s626, 0
      %s629 = sadd.s32 %s628, 1
      %s630 = scalar_select %p627, %s628, %s629
      %p633 = pneg %p627
      %p634 = scmp.eq.s32.totalorder %s34, 1
      %p635 = por %p633, %p634
      %p636 = scmp.ne.s32.totalorder %s628, %s631
      %p637 = scmp.eq.s32.totalorder %s34, 0
      %p638 = por %p636, %p637
      %p639 = scmp.ne.s32.totalorder %s628, %s631
      %p640 = scmp.eq.s32.totalorder %s39, 1
      %p641 = por %p639, %p640
      %p642 = scmp.ne.s32.totalorder %s631, %s632
      %p643 = scmp.eq.s32.totalorder %s39, 0
      %p644 = por %p642, %p643
      %p645 = scmp.ne.s32.totalorder %s631, %s632
      %p646 = scmp.eq.s32.totalorder %s40, 1
      %p647 = por %p645, %p646
      %p649 = scmp.ne.s32.totalorder %s632, %s648
      %p650 = scmp.eq.s32.totalorder %s40, 0
      %p651 = por %p649, %p650
      %s652 = ssub.s32 %s42, %s49
      %p653 = scmp.eq.s32.totalorder %s652, 0
      %s655 = sadd.s32 %s654, 1
      %s656 = scalar_select %p653, %s654, %s655
      %p659 = pneg %p653
      %p660 = scmp.eq.s32.totalorder %s34, 1
      %p661 = por %p659, %p660
      %p662 = scmp.ne.s32.totalorder %s654, %s657
      %p663 = scmp.eq.s32.totalorder %s34, 0
      %p664 = por %p662, %p663
      %p665 = scmp.ne.s32.totalorder %s654, %s657
      %p666 = scmp.eq.s32.totalorder %s39, 1
      %p667 = por %p665, %p666
      %p668 = scmp.ne.s32.totalorder %s657, %s658
      %p669 = scmp.eq.s32.totalorder %s39, 0
      %p670 = por %p668, %p669
      %p671 = scmp.ne.s32.totalorder %s657, %s658
      %p672 = scmp.eq.s32.totalorder %s40, 1
      %p673 = por %p671, %p672
      %p675 = scmp.ne.s32.totalorder %s658, %s674
      %p676 = scmp.eq.s32.totalorder %s40, 0
      %p677 = por %p675, %p676
      %s678 = ssub.s32 %s41, %s53
      %p679 = scmp.eq.s32.totalorder %s678, 0
      %s681 = sadd.s32 %s680, 1
      %s682 = scalar_select %p679, %s680, %s681
      %p685 = pneg %p679
      %p686 = scmp.eq.s32.totalorder %s34, 1
      %p687 = por %p685, %p686
      %p688 = scmp.ne.s32.totalorder %s680, %s683
      %p689 = scmp.eq.s32.totalorder %s34, 0
      %p690 = por %p688, %p689
      %p691 = scmp.ne.s32.totalorder %s680, %s683
      %p692 = scmp.eq.s32.totalorder %s39, 1
      %p693 = por %p691, %p692
      %p694 = scmp.ne.s32.totalorder %s683, %s684
      %p695 = scmp.eq.s32.totalorder %s39, 0
      %p696 = por %p694, %p695
      %p697 = scmp.ne.s32.totalorder %s683, %s684
      %p698 = scmp.eq.s32.totalorder %s40, 1
      %p699 = por %p697, %p698
      %p701 = scmp.ne.s32.totalorder %s684, %s700
      %p702 = scmp.eq.s32.totalorder %s40, 0
      %p703 = por %p701, %p702
      %p704 = scmp.le.s32.totalorder 1, %s34
      %p705 = scmp.lt.s32.totalorder %s34, 3
      %p706 = pnand %p704, %p705
      %p707 = pneg %p706
      // Predicated region
      $region9: #{tpu_custom_call.1} parent=5 // pred_check
        _
      $region10: #{tpu_custom_call.1} parent=5 // pred_check_branch
        %709 = sbr.rel (%p706) target = $region12
      $region11: #{tpu_custom_call.1} parent=5 // pred_region
        %s710 = ssub.s32 %s34, 1
        // Predicated region
        $region13: #{tpu_custom_call.1} parent=11 // pred_check
          %p711 = pneg %p72
        $region14: #{tpu_custom_call.1} parent=11 // pred_check_branch
          %713 = sbr.rel (%p711) target = $region16
        $region15: #{tpu_custom_call.1} parent=11 // pred_region
          %s714 = smul.u32 2, %s43
          %s716 = ssub.s32 256, 256
          %717 = vsyncadd [#allocation4], %s716
          %s718 = smul.addr %s714, 128
          %s719 = scalar_lea.hbm %s0, %s718
          %s720 = sshll.u32 [#allocation3], 4
          %s721 = int_to_ptr.vmem [resolvable:$true] %s720
          %726 = dma.hbm_to_vmem [thread:$0]  %s719, 256, %s721, [#allocation4], 128, 128, 8
        $region16: #{tpu_custom_call.1} parent=11 // pred_fallthru
          _
        // Predicated region
        $region17: #{tpu_custom_call.1} parent=11 // pred_check
          %p727 = pneg %p98
        $region18: #{tpu_custom_call.1} parent=11 // pred_check_branch
          %729 = sbr.rel (%p727) target = $region20
        $region19: #{tpu_custom_call.1} parent=11 // pred_region
          %s730 = smul.u32 2, %s43
          %s732 = ssub.s32 128, 128
          %733 = vsyncadd [#allocation7], %s732
          %s734 = smul.addr %s730, 64
          %s735 = scalar_lea.hbm %s1, %s734
          %s736 = sshll.u32 [#allocation6], 4
          %s737 = int_to_ptr.vmem [resolvable:$true] %s736
          %742 = dma.hbm_to_vmem [thread:$0]  %s735, 128, %s737, [#allocation7], 64, 64, 4
        $region20: #{tpu_custom_call.1} parent=11 // pred_fallthru
          _
        // Predicated region
        $region21: #{tpu_custom_call.1} parent=11 // pred_check
          %p743 = pneg %p124
        $region22: #{tpu_custom_call.1} parent=11 // pred_check_branch
          %745 = sbr.rel (%p743) target = $region24
        $region23: #{tpu_custom_call.1} parent=11 // pred_region
          %s746 = smul.u32 2, %s43
          %s748 = ssub.s32 256, 256
          %749 = vsyncadd [#allocation7], %s748
          %s750 = smul.addr %s746, 128
          %s751 = scalar_lea.hbm %s2, %s750
          %s752 = sshll.u32 [#allocation8], 4
          %s753 = int_to_ptr.vmem [resolvable:$true] %s752
          %758 = dma.hbm_to_vmem [thread:$0]  %s751, 256, %s753, [#allocation7], 128, 128, 8
        $region24: #{tpu_custom_call.1} parent=11 // pred_fallthru
          _
        // Predicated region
        $region25: #{tpu_custom_call.1} parent=11 // pred_check
          %p759 = pneg %p150
        $region26: #{tpu_custom_call.1} parent=11 // pred_check_branch
          %761 = sbr.rel (%p759) target = $region28
        $region27: #{tpu_custom_call.1} parent=11 // pred_region
          %s762 = smul.u32 2, %s43
          %s764 = ssub.s32 256, 256
          %765 = vsyncadd [#allocation10], %s764
          %s766 = smul.addr %s762, 128
          %s767 = scalar_lea.hbm %s3, %s766
          %s768 = sshll.u32 [#allocation9], 4
          %s769 = int_to_ptr.vmem [resolvable:$true] %s768
          %774 = dma.hbm_to_vmem [thread:$0]  %s767, 256, %s769, [#allocation10], 128, 128, 8
        $region28: #{tpu_custom_call.1} parent=11 // pred_fallthru
          _
      $region12: #{tpu_custom_call.1} parent=5 // pred_fallthru
        _
      %p775 = scmp.lt.s32.totalorder %s34, 2
      // Predicated region
      $region29: #{tpu_custom_call.1} parent=5 // pred_check
        %p776 = pneg %p775
      $region30: #{tpu_custom_call.1} parent=5 // pred_check_branch
        %778 = sbr.rel (%p776) target = $region32
      $region31: #{tpu_custom_call.1} parent=5 // pred_region
        // Predicated region
        $region33: #{tpu_custom_call.1} parent=31 // pred_check
          %p779 = pneg %p170
        $region34: #{tpu_custom_call.1} parent=31 // pred_check_branch
          %781 = sbr.rel (%p779) target = $region36
        $region35: #{tpu_custom_call.1} parent=31 // pred_region
          %s782 = sand.u32 %s34, 1
          %s783 = scalar_lea.sflag [#allocation4], %s782
          %s784 = sand.u32 %s160, 1
          %s785 = smul.addr %s784, 192
          %s786 = scalar_lea.vmem [#allocation11], %s785
          %s788 = ssub.s32 3072, 3072
          %789 = vsyncadd %s783, %s788
          %s790 = smul.addr %s42, 48
          %s791 = smul.addr %s790, 64
          %s792 = scalar_lea.hbm %s4, %s791
          %s793 = sshll.u32 %s786, 4
          %s794 = int_to_ptr.vmem [resolvable:$true] %s793
          %799 = dma.hbm_to_vmem [thread:$0]  %s792, 3072, %s794, %s783, 192, 192, 12
        $region36: #{tpu_custom_call.1} parent=31 // pred_fallthru
          _
        // Predicated region
        $region37: #{tpu_custom_call.1} parent=31 // pred_check
          %p800 = pneg %p196
        $region38: #{tpu_custom_call.1} parent=31 // pred_check_branch
          %802 = sbr.rel (%p800) target = $region40
        $region39: #{tpu_custom_call.1} parent=31 // pred_region
          %p803 = scmp.lt.s32.totalorder %s42, 1
          %s804 = scalar_select %p803, %s42, 1
          %s805 = smul.addr %s804, 3
          %s806 = scalar_lea.vmem %s5, %s805
        $region40: #{tpu_custom_call.1} parent=31 // pred_fallthru
          _
        // Predicated region
        $region41: #{tpu_custom_call.1} parent=31 // pred_check
          %p807 = pneg %p222
        $region42: #{tpu_custom_call.1} parent=31 // pred_check_branch
          %809 = sbr.rel (%p807) target = $region44
        $region43: #{tpu_custom_call.1} parent=31 // pred_region
          %s810 = sand.u32 %s34, 1
          %s811 = scalar_lea.sflag [#allocation4], %s810
          %s812 = sand.u32 %s212, 1
          %s813 = smul.addr %s812, 64
          %s814 = scalar_lea.vmem [#allocation12], %s813
          %s816 = ssub.s32 1024, 1024
          %817 = vsyncadd %s811, %s816
          %s818 = smul.addr %s42, 16
          %s819 = smul.addr %s818, 64
          %s820 = scalar_lea.hbm %s6, %s819
          %s821 = sshll.u32 %s814, 4
          %s822 = int_to_ptr.vmem [resolvable:$true] %s821
          %827 = dma.hbm_to_vmem [thread:$0]  %s820, 1024, %s822, %s811, 64, 64, 4
        $region44: #{tpu_custom_call.1} parent=31 // pred_fallthru
          _
        // Predicated region
        $region45: #{tpu_custom_call.1} parent=31 // pred_check
          %p828 = pneg %p248
        $region46: #{tpu_custom_call.1} parent=31 // pred_check_branch
          %830 = sbr.rel (%p828) target = $region48
        $region47: #{tpu_custom_call.1} parent=31 // pred_region
          %s831 = sand.u32 %s34, 1
          %s832 = scalar_lea.sflag [#allocation4], %s831
          %s833 = sand.u32 %s238, 1
          %s834 = scalar_lea.vmem [#allocation13], %s833
          %s836 = ssub.s32 16, 16
          %837 = vsyncadd %s832, %s836
          %s838 = smul.addr %s42, 16
          %s839 = scalar_lea.hbm %s7, %s838
          %s841 = sshll.u32 %s834, 4
          %s842 = int_to_ptr.vmem [resolvable:$true] %s841
          %844 = dma.hbm_to_vmem [thread:$0]  %s839, 16, %s842, %s832
        $region48: #{tpu_custom_call.1} parent=31 // pred_fallthru
          _
        // Predicated region
        $region49: #{tpu_custom_call.1} parent=31 // pred_check
          %p845 = pneg %p274
        $region50: #{tpu_custom_call.1} parent=31 // pred_check_branch
          %847 = sbr.rel (%p845) target = $region52
        $region51: #{tpu_custom_call.1} parent=31 // pred_region
          %s848 = sand.u32 %s34, 1
          %s849 = scalar_lea.sflag [#allocation4], %s848
          %s850 = sand.u32 %s264, 1
          %s851 = smul.addr %s850, 64
          %s852 = scalar_lea.vmem [#allocation14], %s851
          %s854 = ssub.s32 1024, 1024
          %855 = vsyncadd %s849, %s854
          %s856 = smul.addr %s42, 16
          %s857 = smul.addr %s856, 64
          %s858 = scalar_lea.hbm %s8, %s857
          %s859 = sshll.u32 %s852, 4
          %s860 = int_to_ptr.vmem [resolvable:$true] %s859
          %865 = dma.hbm_to_vmem [thread:$0]  %s858, 1024, %s860, %s849, 64, 64, 4
        $region52: #{tpu_custom_call.1} parent=31 // pred_fallthru
          _
        // Predicated region
        $region53: #{tpu_custom_call.1} parent=31 // pred_check
          %p866 = pneg %p300
        $region54: #{tpu_custom_call.1} parent=31 // pred_check_branch
          %868 = sbr.rel (%p866) target = $region56
        $region55: #{tpu_custom_call.1} parent=31 // pred_region
          %p869 = scmp.lt.s32.totalorder %s42, 1
          %s870 = scalar_select %p869, %s42, 1
          %s871 = scalar_lea.vmem %s9, %s870
        $region56: #{tpu_custom_call.1} parent=31 // pred_fallthru
          _
        // Predicated region
        $region57: #{tpu_custom_call.1} parent=31 // pred_check
          %p872 = pneg %p326
        $region58: #{tpu_custom_call.1} parent=31 // pred_check_branch
          %874 = sbr.rel (%p872) target = $region60
        $region59: #{tpu_custom_call.1} parent=31 // pred_region
          %s875 = sand.u32 %s34, 1
          %s876 = scalar_lea.sflag [#allocation4], %s875
          %s877 = sand.u32 %s316, 1
          %s878 = smul.addr %s877, 128
          %s879 = scalar_lea.vmem [#allocation15], %s878
          %s881 = ssub.s32 2048, 2048
          %882 = vsyncadd %s876, %s881
          %s883 = smul.addr %s42, 32
          %s884 = smul.addr %s883, 64
          %s885 = scalar_lea.hbm %s10, %s884
          %s886 = sshll.u32 %s879, 4
          %s887 = int_to_ptr.vmem [resolvable:$true] %s886
          %892 = dma.hbm_to_vmem [thread:$0]  %s885, 2048, %s887, %s876, 128, 128, 8
        $region60: #{tpu_custom_call.1} parent=31 // pred_fallthru
          _
        // Predicated region
        $region61: #{tpu_custom_call.1} parent=31 // pred_check
          %p893 = pneg %p352
        $region62: #{tpu_custom_call.1} parent=31 // pred_check_branch
          %895 = sbr.rel (%p893) target = $region64
        $region63: #{tpu_custom_call.1} parent=31 // pred_region
          %p896 = scmp.lt.s32.totalorder %s42, 1
          %s897 = scalar_select %p896, %s42, 1
          %s898 = smul.addr %s897, 2
          %s899 = scalar_lea.vmem %s11, %s898
        $region64: #{tpu_custom_call.1} parent=31 // pred_fallthru
          _
        // Predicated region
        $region65: #{tpu_custom_call.1} parent=31 // pred_check
          %p900 = pneg %p378
        $region66: #{tpu_custom_call.1} parent=31 // pred_check_branch
          %902 = sbr.rel (%p900) target = $region68
        $region67: #{tpu_custom_call.1} parent=31 // pred_region
          %s903 = sand.u32 %s34, 1
          %s904 = scalar_lea.sflag [#allocation4], %s903
          %s905 = sand.u32 %s368, 1
          %s906 = smul.addr %s905, 64
          %s907 = scalar_lea.vmem [#allocation16], %s906
          %s909 = ssub.s32 1024, 1024
          %910 = vsyncadd %s904, %s909
          %s911 = smul.addr %s42, 16
          %s912 = smul.addr %s911, 64
          %s913 = scalar_lea.hbm %s12, %s912
          %s914 = sshll.u32 %s907, 4
          %s915 = int_to_ptr.vmem [resolvable:$true] %s914
          %920 = dma.hbm_to_vmem [thread:$0]  %s913, 1024, %s915, %s904, 64, 64, 4
        $region68: #{tpu_custom_call.1} parent=31 // pred_fallthru
          _
        // Predicated region
        $region69: #{tpu_custom_call.1} parent=31 // pred_check
          %p921 = pneg %p404
        $region70: #{tpu_custom_call.1} parent=31 // pred_check_branch
          %923 = sbr.rel (%p921) target = $region72
        $region71: #{tpu_custom_call.1} parent=31 // pred_region
          %p924 = scmp.lt.s32.totalorder %s42, 1
          %s925 = scalar_select %p924, %s42, 1
          %s926 = scalar_lea.vmem %s13, %s925
        $region72: #{tpu_custom_call.1} parent=31 // pred_fallthru
          _
        // Predicated region
        $region73: #{tpu_custom_call.1} parent=31 // pred_check
          %p927 = pneg %p430
        $region74: #{tpu_custom_call.1} parent=31 // pred_check_branch
          %929 = sbr.rel (%p927) target = $region76
        $region75: #{tpu_custom_call.1} parent=31 // pred_region
          %s930 = sand.u32 %s34, 1
          %s931 = scalar_lea.sflag [#allocation4], %s930
          %s932 = sand.u32 %s420, 1
          %s933 = smul.addr %s932, 128
          %s934 = scalar_lea.vmem [#allocation17], %s933
          %s936 = ssub.s32 2048, 2048
          %937 = vsyncadd %s931, %s936
          %s938 = smul.addr %s42, 32
          %s939 = smul.addr %s938, 64
          %s940 = scalar_lea.hbm %s14, %s939
          %s941 = sshll.u32 %s934, 4
          %s942 = int_to_ptr.vmem [resolvable:$true] %s941
          %947 = dma.hbm_to_vmem [thread:$0]  %s940, 2048, %s942, %s931, 128, 128, 8
        $region76: #{tpu_custom_call.1} parent=31 // pred_fallthru
          _
        // Predicated region
        $region77: #{tpu_custom_call.1} parent=31 // pred_check
          %p948 = pneg %p456
        $region78: #{tpu_custom_call.1} parent=31 // pred_check_branch
          %950 = sbr.rel (%p948) target = $region80
        $region79: #{tpu_custom_call.1} parent=31 // pred_region
          %p951 = scmp.lt.s32.totalorder %s42, 1
          %s952 = scalar_select %p951, %s42, 1
          %s953 = smul.addr %s952, 2
          %s954 = scalar_lea.vmem %s15, %s953
        $region80: #{tpu_custom_call.1} parent=31 // pred_fallthru
          _
        // Predicated region
        $region81: #{tpu_custom_call.1} parent=31 // pred_check
          %p955 = pneg %p482
        $region82: #{tpu_custom_call.1} parent=31 // pred_check_branch
          %957 = sbr.rel (%p955) target = $region84
        $region83: #{tpu_custom_call.1} parent=31 // pred_region
          %s958 = sand.u32 %s34, 1
          %s959 = scalar_lea.sflag [#allocation4], %s958
          %s960 = sand.u32 %s472, 1
          %s961 = smul.addr %s960, 128
          %s962 = scalar_lea.vmem [#allocation18], %s961
          %s964 = ssub.s32 2048, 2048
          %965 = vsyncadd %s959, %s964
          %s966 = smul.addr %s42, 32
          %s967 = smul.addr %s966, 64
          %s968 = scalar_lea.hbm %s16, %s967
          %s969 = sshll.u32 %s962, 4
          %s970 = int_to_ptr.vmem [resolvable:$true] %s969
          %975 = dma.hbm_to_vmem [thread:$0]  %s968, 2048, %s970, %s959, 64, 64, 4
        $region84: #{tpu_custom_call.1} parent=31 // pred_fallthru
          _
        // Predicated region
        $region85: #{tpu_custom_call.1} parent=31 // pred_check
          %p976 = pneg %p508
        $region86: #{tpu_custom_call.1} parent=31 // pred_check_branch
          %978 = sbr.rel (%p976) target = $region88
        $region87: #{tpu_custom_call.1} parent=31 // pred_region
          %p979 = scmp.lt.s32.totalorder %s42, 1
          %s980 = scalar_select %p979, %s42, 1
          %s981 = scalar_lea.vmem %s17, %s980
        $region88: #{tpu_custom_call.1} parent=31 // pred_fallthru
          _
        // Predicated region
        $region89: #{tpu_custom_call.1} parent=31 // pred_check
          %p982 = pneg %p534
        $region90: #{tpu_custom_call.1} parent=31 // pred_check_branch
          %984 = sbr.rel (%p982) target = $region92
        $region91: #{tpu_custom_call.1} parent=31 // pred_region
          %p985 = scmp.lt.s32.totalorder %s42, 1
          %s986 = scalar_select %p985, %s42, 1
          %s987 = scalar_lea.vmem %s18, %s986
        $region92: #{tpu_custom_call.1} parent=31 // pred_fallthru
          _
        // Predicated region
        $region93: #{tpu_custom_call.1} parent=31 // pred_check
          %p988 = pneg %p560
        $region94: #{tpu_custom_call.1} parent=31 // pred_check_branch
          %990 = sbr.rel (%p988) target = $region96
        $region95: #{tpu_custom_call.1} parent=31 // pred_region
          %p991 = scmp.lt.s32.totalorder %s42, 1
          %s992 = scalar_select %p991, %s42, 1
          %s993 = scalar_lea.vmem %s19, %s992
        $region96: #{tpu_custom_call.1} parent=31 // pred_fallthru
          _
        // Predicated region
        $region97: #{tpu_custom_call.1} parent=31 // pred_check
          %p994 = pneg %p586
        $region98: #{tpu_custom_call.1} parent=31 // pred_check_branch
          %996 = sbr.rel (%p994) target = $region100
        $region99: #{tpu_custom_call.1} parent=31 // pred_region
          %p997 = scmp.lt.s32.totalorder %s42, 1
          %s998 = scalar_select %p997, %s42, 1
          %s999 = scalar_lea.vmem %s20, %s998
        $region100: #{tpu_custom_call.1} parent=31 // pred_fallthru
          _
        // Predicated region
        $region101: #{tpu_custom_call.1} parent=31 // pred_check
          %p1000 = pneg %p612
        $region102: #{tpu_custom_call.1} parent=31 // pred_check_branch
          %1002 = sbr.rel (%p1000) target = $region104
        $region103: #{tpu_custom_call.1} parent=31 // pred_region
          %p1003 = scmp.lt.s32.totalorder %s42, 1
          %s1004 = scalar_select %p1003, %s42, 1
          %s1005 = scalar_lea.vmem %s21, %s1004
        $region104: #{tpu_custom_call.1} parent=31 // pred_fallthru
          _
        // Predicated region
        $region105: #{tpu_custom_call.1} parent=31 // pred_check
          %p1006 = pneg %p638
        $region106: #{tpu_custom_call.1} parent=31 // pred_check_branch
          %1008 = sbr.rel (%p1006) target = $region108
        $region107: #{tpu_custom_call.1} parent=31 // pred_region
          %p1009 = scmp.lt.s32.totalorder %s42, 1
          %s1010 = scalar_select %p1009, %s42, 1
          %s1011 = scalar_lea.vmem %s22, %s1010
        $region108: #{tpu_custom_call.1} parent=31 // pred_fallthru
          _
        // Predicated region
        $region109: #{tpu_custom_call.1} parent=31 // pred_check
          %p1012 = pneg %p664
        $region110: #{tpu_custom_call.1} parent=31 // pred_check_branch
          %1014 = sbr.rel (%p1012) target = $region112
        $region111: #{tpu_custom_call.1} parent=31 // pred_region
          %p1015 = scmp.lt.s32.totalorder %s42, 1
          %s1016 = scalar_select %p1015, %s42, 1
          %s1017 = scalar_lea.vmem %s23, %s1016
        $region112: #{tpu_custom_call.1} parent=31 // pred_fallthru
          _
      $region32: #{tpu_custom_call.1} parent=5 // pred_fallthru
        _
      %p1018 = scmp.le.s32.totalorder 1, %s34
      %p1019 = scmp.lt.s32.totalorder %s34, 3
      %p1020 = pnand %p1018, %p1019
      %p1021 = pneg %p1020
      // Predicated region
      $region113: #{tpu_custom_call.1} parent=5 // pred_check
        _
      $region114: #{tpu_custom_call.1} parent=5 // pred_check_branch
        %1023 = sbr.rel (%p1020) target = $region116
      $region115: #{tpu_custom_call.1} parent=5 // pred_region
        %s1024 = ssub.s32 %s34, 1
        // Predicated region
        $region117: #{tpu_custom_call.1} parent=115 // pred_check
          %p1025 = pneg %p72
        $region118: #{tpu_custom_call.1} parent=115 // pred_check_branch
          %1027 = sbr.rel (%p1025) target = $region120
        $region119: #{tpu_custom_call.1} parent=115 // pred_region
          %1028 = dma.done [#allocation4], 256
        $region120: #{tpu_custom_call.1} parent=115 // pred_fallthru
          _
        // Predicated region
        $region121: #{tpu_custom_call.1} parent=115 // pred_check
          %p1029 = pneg %p98
        $region122: #{tpu_custom_call.1} parent=115 // pred_check_branch
          %1031 = sbr.rel (%p1029) target = $region124
        $region123: #{tpu_custom_call.1} parent=115 // pred_region
          %1032 = dma.done [#allocation7], 128
        $region124: #{tpu_custom_call.1} parent=115 // pred_fallthru
          _
        // Predicated region
        $region125: #{tpu_custom_call.1} parent=115 // pred_check
          %p1033 = pneg %p124
        $region126: #{tpu_custom_call.1} parent=115 // pred_check_branch
          %1035 = sbr.rel (%p1033) target = $region128
        $region127: #{tpu_custom_call.1} parent=115 // pred_region
          %1036 = dma.done [#allocation7], 256
        $region128: #{tpu_custom_call.1} parent=115 // pred_fallthru
          _
        // Predicated region
        $region129: #{tpu_custom_call.1} parent=115 // pred_check
          %p1037 = pneg %p150
        $region130: #{tpu_custom_call.1} parent=115 // pred_check_branch
          %1039 = sbr.rel (%p1037) target = $region132
        $region131: #{tpu_custom_call.1} parent=115 // pred_region
          %1040 = dma.done [#allocation10], 256
        $region132: #{tpu_custom_call.1} parent=115 // pred_fallthru
          _
        %s1041 = sand.u32 %s39, 1
        %s1042 = scalar_lea.sflag [#allocation4], %s1041
        %s1043 = sand.u32 %s163, 1
        %s1044 = smul.addr %s1043, 192
        %s1045 = scalar_lea.vmem [#allocation11], %s1044
        // Predicated region
        $region133: #{tpu_custom_call.1} parent=115 // pred_check
          %p1046 = pneg %p176
        $region134: #{tpu_custom_call.1} parent=115 // pred_check_branch
          %1048 = sbr.rel (%p1046) target = $region136
        $region135: #{tpu_custom_call.1} parent=115 // pred_region
          %1049 = dma.done %s1042, 3072
        $region136: #{tpu_custom_call.1} parent=115 // pred_fallthru
          _
        %s1050 = sand.u32 %s39, 1
        %s1051 = scalar_lea.sflag [#allocation4], %s1050
        %s1052 = sand.u32 %s215, 1
        %s1053 = smul.addr %s1052, 64
        %s1054 = scalar_lea.vmem [#allocation12], %s1053
        // Predicated region
        $region137: #{tpu_custom_call.1} parent=115 // pred_check
          %p1055 = pneg %p228
        $region138: #{tpu_custom_call.1} parent=115 // pred_check_branch
          %1057 = sbr.rel (%p1055) target = $region140
        $region139: #{tpu_custom_call.1} parent=115 // pred_region
          %1058 = dma.done %s1051, 1024
        $region140: #{tpu_custom_call.1} parent=115 // pred_fallthru
          _
        %s1059 = sand.u32 %s39, 1
        %s1060 = scalar_lea.sflag [#allocation4], %s1059
        %s1061 = sand.u32 %s241, 1
        %s1062 = scalar_lea.vmem [#allocation13], %s1061
        // Predicated region
        $region141: #{tpu_custom_call.1} parent=115 // pred_check
          %p1063 = pneg %p254
        $region142: #{tpu_custom_call.1} parent=115 // pred_check_branch
          %1065 = sbr.rel (%p1063) target = $region144
        $region143: #{tpu_custom_call.1} parent=115 // pred_region
          %1066 = dma.done %s1060, 16
        $region144: #{tpu_custom_call.1} parent=115 // pred_fallthru
          _
        %s1067 = sand.u32 %s39, 1
        %s1068 = scalar_lea.sflag [#allocation4], %s1067
        %s1069 = sand.u32 %s267, 1
        %s1070 = smul.addr %s1069, 64
        %s1071 = scalar_lea.vmem [#allocation14], %s1070
        // Predicated region
        $region145: #{tpu_custom_call.1} parent=115 // pred_check
          %p1072 = pneg %p280
        $region146: #{tpu_custom_call.1} parent=115 // pred_check_branch
          %1074 = sbr.rel (%p1072) target = $region148
        $region147: #{tpu_custom_call.1} parent=115 // pred_region
          %1075 = dma.done %s1068, 1024
        $region148: #{tpu_custom_call.1} parent=115 // pred_fallthru
          _
        %s1076 = sand.u32 %s39, 1
        %s1077 = scalar_lea.sflag [#allocation4], %s1076
        %s1078 = sand.u32 %s319, 1
        %s1079 = smul.addr %s1078, 128
        %s1080 = scalar_lea.vmem [#allocation15], %s1079
        // Predicated region
        $region149: #{tpu_custom_call.1} parent=115 // pred_check
          %p1081 = pneg %p332
        $region150: #{tpu_custom_call.1} parent=115 // pred_check_branch
          %1083 = sbr.rel (%p1081) target = $region152
        $region151: #{tpu_custom_call.1} parent=115 // pred_region
          %1084 = dma.done %s1077, 2048
        $region152: #{tpu_custom_call.1} parent=115 // pred_fallthru
          _
        %s1085 = sand.u32 %s39, 1
        %s1086 = scalar_lea.sflag [#allocation4], %s1085
        %s1087 = sand.u32 %s371, 1
        %s1088 = smul.addr %s1087, 64
        %s1089 = scalar_lea.vmem [#allocation16], %s1088
        // Predicated region
        $region153: #{tpu_custom_call.1} parent=115 // pred_check
          %p1090 = pneg %p384
        $region154: #{tpu_custom_call.1} parent=115 // pred_check_branch
          %1092 = sbr.rel (%p1090) target = $region156
        $region155: #{tpu_custom_call.1} parent=115 // pred_region
          %1093 = dma.done %s1086, 1024
        $region156: #{tpu_custom_call.1} parent=115 // pred_fallthru
          _
        %s1094 = sand.u32 %s39, 1
        %s1095 = scalar_lea.sflag [#allocation4], %s1094
        %s1096 = sand.u32 %s423, 1
        %s1097 = smul.addr %s1096, 128
        %s1098 = scalar_lea.vmem [#allocation17], %s1097
        // Predicated region
        $region157: #{tpu_custom_call.1} parent=115 // pred_check
          %p1099 = pneg %p436
        $region158: #{tpu_custom_call.1} parent=115 // pred_check_branch
          %1101 = sbr.rel (%p1099) target = $region160
        $region159: #{tpu_custom_call.1} parent=115 // pred_region
          %1102 = dma.done %s1095, 2048
        $region160: #{tpu_custom_call.1} parent=115 // pred_fallthru
          _
        %s1103 = sand.u32 %s39, 1
        %s1104 = scalar_lea.sflag [#allocation4], %s1103
        %s1105 = sand.u32 %s475, 1
        %s1106 = smul.addr %s1105, 128
        %s1107 = scalar_lea.vmem [#allocation18], %s1106
        // Predicated region
        $region161: #{tpu_custom_call.1} parent=115 // pred_check
          %p1108 = pneg %p488
        $region162: #{tpu_custom_call.1} parent=115 // pred_check_branch
          %1110 = sbr.rel (%p1108) target = $region164
        $region163: #{tpu_custom_call.1} parent=115 // pred_region
          %1111 = dma.done %s1104, 2048
        $region164: #{tpu_custom_call.1} parent=115 // pred_fallthru
          _
        %p1112 = pneg %p72
        %p1113 = pneg %p69
        %p1114 = pneg %p98
        %p1115 = pneg %p95
        %p1116 = pneg %p124
        %p1117 = pneg %p121
        %p1118 = pneg %p150
        %p1119 = pneg %p147
        %s1120 = sand.u32 %s39, 1
        %s1121 = scalar_lea.sflag [#allocation4], %s1120
        %s1122 = sand.u32 %s163, 1
        %s1123 = smul.addr %s1122, 192
        %s1124 = scalar_lea.vmem [#allocation11], %s1123
        %p1125 = pneg %p176
        %p1126 = pneg %p173
        %p1127 = scmp.lt.s32.totalorder %s44, 1
        %s1128 = scalar_select %p1127, %s44, 1
        %s1129 = smul.addr %s1128, 3
        %s1130 = scalar_lea.vmem %s5, %s1129
        %p1131 = pneg %p202
        %p1132 = pneg %p199
        %s1133 = sand.u32 %s39, 1
        %s1134 = scalar_lea.sflag [#allocation4], %s1133
        %s1135 = sand.u32 %s215, 1
        %s1136 = smul.addr %s1135, 64
        %s1137 = scalar_lea.vmem [#allocation12], %s1136
        %p1138 = pneg %p228
        %p1139 = pneg %p225
        %s1140 = sand.u32 %s39, 1
        %s1141 = scalar_lea.sflag [#allocation4], %s1140
        %s1142 = sand.u32 %s241, 1
        %s1143 = scalar_lea.vmem [#allocation13], %s1142
        %p1144 = pneg %p254
        %p1145 = pneg %p251
        %s1146 = sand.u32 %s39, 1
        %s1147 = scalar_lea.sflag [#allocation4], %s1146
        %s1148 = sand.u32 %s267, 1
        %s1149 = smul.addr %s1148, 64
        %s1150 = scalar_lea.vmem [#allocation14], %s1149
        %p1151 = pneg %p280
        %p1152 = pneg %p277
        %p1153 = scmp.lt.s32.totalorder %s44, 1
        %s1154 = scalar_select %p1153, %s44, 1
        %s1155 = scalar_lea.vmem %s9, %s1154
        %p1156 = pneg %p306
        %p1157 = pneg %p303
        %s1158 = sand.u32 %s39, 1
        %s1159 = scalar_lea.sflag [#allocation4], %s1158
        %s1160 = sand.u32 %s319, 1
        %s1161 = smul.addr %s1160, 128
        %s1162 = scalar_lea.vmem [#allocation15], %s1161
        %p1163 = pneg %p332
        %p1164 = pneg %p329
        %p1165 = scmp.lt.s32.totalorder %s44, 1
        %s1166 = scalar_select %p1165, %s44, 1
        %s1167 = smul.addr %s1166, 2
        %s1168 = scalar_lea.vmem %s11, %s1167
        %p1169 = pneg %p358
        %p1170 = pneg %p355
        %s1171 = sand.u32 %s39, 1
        %s1172 = scalar_lea.sflag [#allocation4], %s1171
        %s1173 = sand.u32 %s371, 1
        %s1174 = smul.addr %s1173, 64
        %s1175 = scalar_lea.vmem [#allocation16], %s1174
        %p1176 = pneg %p384
        %p1177 = pneg %p381
        %p1178 = scmp.lt.s32.totalorder %s44, 1
        %s1179 = scalar_select %p1178, %s44, 1
        %s1180 = scalar_lea.vmem %s13, %s1179
        %p1181 = pneg %p410
        %p1182 = pneg %p407
        %s1183 = sand.u32 %s39, 1
        %s1184 = scalar_lea.sflag [#allocation4], %s1183
        %s1185 = sand.u32 %s423, 1
        %s1186 = smul.addr %s1185, 128
        %s1187 = scalar_lea.vmem [#allocation17], %s1186
        %p1188 = pneg %p436
        %p1189 = pneg %p433
        %p1190 = scmp.lt.s32.totalorder %s44, 1
        %s1191 = scalar_select %p1190, %s44, 1
        %s1192 = smul.addr %s1191, 2
        %s1193 = scalar_lea.vmem %s15, %s1192
        %p1194 = pneg %p462
        %p1195 = pneg %p459
        %s1196 = sand.u32 %s39, 1
        %s1197 = scalar_lea.sflag [#allocation4], %s1196
        %s1198 = sand.u32 %s475, 1
        %s1199 = smul.addr %s1198, 128
        %s1200 = scalar_lea.vmem [#allocation18], %s1199
        %p1201 = pneg %p488
        %p1202 = pneg %p485
        %p1203 = scmp.lt.s32.totalorder %s44, 1
        %s1204 = scalar_select %p1203, %s44, 1
        %s1205 = scalar_lea.vmem %s17, %s1204
        %p1206 = pneg %p514
        %p1207 = pneg %p511
        %p1208 = scmp.lt.s32.totalorder %s44, 1
        %s1209 = scalar_select %p1208, %s44, 1
        %s1210 = scalar_lea.vmem %s18, %s1209
        %p1211 = pneg %p540
        %p1212 = pneg %p537
        %p1213 = scmp.lt.s32.totalorder %s44, 1
        %s1214 = scalar_select %p1213, %s44, 1
        %s1215 = scalar_lea.vmem %s19, %s1214
        %p1216 = pneg %p566
        %p1217 = pneg %p563
        %p1218 = scmp.lt.s32.totalorder %s44, 1
        %s1219 = scalar_select %p1218, %s44, 1
        %s1220 = scalar_lea.vmem %s20, %s1219
        %p1221 = pneg %p592
        %p1222 = pneg %p589
        %p1223 = scmp.lt.s32.totalorder %s44, 1
        %s1224 = scalar_select %p1223, %s44, 1
        %s1225 = scalar_lea.vmem %s21, %s1224
        %p1226 = pneg %p618
        %p1227 = pneg %p615
        %p1228 = scmp.lt.s32.totalorder %s44, 1
        %s1229 = scalar_select %p1228, %s44, 1
        %s1230 = scalar_lea.vmem %s22, %s1229
        %p1231 = pneg %p644
        %p1232 = pneg %p641
        %p1233 = scmp.lt.s32.totalorder %s44, 1
        %s1234 = scalar_select %p1233, %s44, 1
        %s1235 = scalar_lea.vmem %s23, %s1234
        %p1236 = pneg %p670
        %p1237 = pneg %p667
        %p1238 = pneg %p696
        %p1239 = pneg %p693
        %s1240 = smul.u32 2, %s43
        %s1241 = smul.u32 2, %s43
        %s1242 = smul.u32 2, %s43
        %s1243 = smul.u32 2, %s43
        %p1244 = scmp.lt.s32.totalorder %s44, 1
        %s1245 = scalar_select %p1244, %s44, 1
        %s1246 = smul.addr %s1245, 3
        %s1247 = scalar_lea.vmem %s5, %s1246
        %p1248 = scmp.lt.s32.totalorder %s44, 1
        %s1249 = scalar_select %p1248, %s44, 1
        %s1250 = scalar_lea.vmem %s9, %s1249
        %p1251 = scmp.lt.s32.totalorder %s44, 1
        %s1252 = scalar_select %p1251, %s44, 1
        %s1253 = smul.addr %s1252, 2
        %s1254 = scalar_lea.vmem %s11, %s1253
        %p1255 = scmp.lt.s32.totalorder %s44, 1
        %s1256 = scalar_select %p1255, %s44, 1
        %s1257 = scalar_lea.vmem %s13, %s1256
        %p1258 = scmp.lt.s32.totalorder %s44, 1
        %s1259 = scalar_select %p1258, %s44, 1
        %s1260 = smul.addr %s1259, 2
        %s1261 = scalar_lea.vmem %s15, %s1260
        %p1262 = scmp.lt.s32.totalorder %s44, 1
        %s1263 = scalar_select %p1262, %s44, 1
        %s1264 = scalar_lea.vmem %s17, %s1263
        %p1265 = scmp.lt.s32.totalorder %s44, 1
        %s1266 = scalar_select %p1265, %s44, 1
        %s1267 = scalar_lea.vmem %s18, %s1266
        %p1268 = scmp.lt.s32.totalorder %s44, 1
        %s1269 = scalar_select %p1268, %s44, 1
        %s1270 = scalar_lea.vmem %s19, %s1269
        %p1271 = scmp.lt.s32.totalorder %s44, 1
        %s1272 = scalar_select %p1271, %s44, 1
        %s1273 = scalar_lea.vmem %s20, %s1272
        %p1274 = scmp.lt.s32.totalorder %s44, 1
        %s1275 = scalar_select %p1274, %s44, 1
        %s1276 = scalar_lea.vmem %s21, %s1275
        %p1277 = scmp.lt.s32.totalorder %s44, 1
        %s1278 = scalar_select %p1277, %s44, 1
        %s1279 = scalar_lea.vmem %s22, %s1278
        %p1280 = scmp.lt.s32.totalorder %s44, 1
        %s1281 = scalar_select %p1280, %s44, 1
        %s1282 = scalar_lea.vmem %s23, %s1281
        %s1283 = smul.u32 2, %s43
        %p1285 = scmp.eq.s32.totalorder %s44, 0
        // Predicated region
        $region165: #{tpu_custom_call.1} parent=115 // pred_check
          %p1286 = pneg %p1285
        $region166: #{tpu_custom_call.1} parent=115 // pred_check_branch
          %1288 = sbr.rel (%p1286) target = $region168
        $region167: #{tpu_custom_call.1} parent=115 // pred_region
          %v1289 = vld [vmem:[#allocation3] sm:$0xff]
          %v1290 = vld [vmem:[#allocation3 + $0x8] sm:$0xff]
          %1291 = vst [vmem:[#allocation2] sm:$0xff] %v1289
          %1292 = vst [vmem:[#allocation2 + $0x8] sm:$0xff] %v1290
        $region168: #{tpu_custom_call.1} parent=115 // pred_fallthru
          _
        %v1293 = vld [vmem:[#allocation2] sm:$0xff]
        %v1294 = vld [vmem:[#allocation2 + $0x8] sm:$0xff]
        %v1295 = vld [vmem:[#allocation6] sm:$0xf]
        %v1296 = vld [vmem:[#allocation6 + $0x4] sm:$0xf]
        %v1297 = vpack.c.bf16 %v1294, %v1293
        %v1298 = vld [vmem:[%s1045] sm:$0xff]
        %v1299 = vld [vmem:[%s1045 + $0x8] sm:$0xf]
        %v1300 = vld [vmem:[%s1045 + $0xc] sm:$0xff]
        %v1301 = vld [vmem:[%s1045 + $0x14] sm:$0xf]
        %v1302 = vld [vmem:[%s1045 + $0x18] sm:$0xff]
        %v1303 = vld [vmem:[%s1045 + $0x20] sm:$0xf]
        %v1304 = vld [vmem:[%s1045 + $0x24] sm:$0xff]
        %v1305 = vld [vmem:[%s1045 + $0x2c] sm:$0xf]
        %v1306 = vld [vmem:[%s1045 + $0x30] sm:$0xff]
        %v1307 = vld [vmem:[%s1045 + $0x38] sm:$0xf]
        %v1308 = vld [vmem:[%s1045 + $0x3c] sm:$0xff]
        %v1309 = vld [vmem:[%s1045 + $0x44] sm:$0xf]
        %v1310 = vld [vmem:[%s1045 + $0x48] sm:$0xff]
        %v1311 = vld [vmem:[%s1045 + $0x50] sm:$0xf]
        %v1312 = vld [vmem:[%s1045 + $0x54] sm:$0xff]
        %v1313 = vld [vmem:[%s1045 + $0x5c] sm:$0xf]
        %v1314 = vld [vmem:[%s1045 + $0x60] sm:$0xff]
        %v1315 = vld [vmem:[%s1045 + $0x68] sm:$0xf]
        %v1316 = vld [vmem:[%s1045 + $0x6c] sm:$0xff]
        %v1317 = vld [vmem:[%s1045 + $0x74] sm:$0xf]
        %v1318 = vld [vmem:[%s1045 + $0x78] sm:$0xff]
        %v1319 = vld [vmem:[%s1045 + $0x80] sm:$0xf]
        %v1320 = vld [vmem:[%s1045 + $0x84] sm:$0xff]
        %v1321 = vld [vmem:[%s1045 + $0x8c] sm:$0xf]
        %v1322 = vld [vmem:[%s1045 + $0x90] sm:$0xff]
        %v1323 = vld [vmem:[%s1045 + $0x98] sm:$0xf]
        %v1324 = vld [vmem:[%s1045 + $0x9c] sm:$0xff]
        %v1325 = vld [vmem:[%s1045 + $0xa4] sm:$0xf]
        %v1326 = vld [vmem:[%s1045 + $0xa8] sm:$0xff]
        %v1327 = vld [vmem:[%s1045 + $0xb0] sm:$0xf]
        %v1328 = vld [vmem:[%s1045 + $0xb4] sm:$0xff]
        %v1329 = vld [vmem:[%s1045 + $0xbc] sm:$0xf]
        %v1330 = vld [vmem:[%s1247] sm:$0x7]
        %v1332 = vlaneseq
        %v1333 = vshrl.u32 %v1332, 7
        %v1334 = vsub.s32 0, %v1333
        %v1335 = vrot.slane %v1330, %v1334
        %v1336 = vlaneseq
        %v1337 = vshrl.u32 %v1336, 7
        %v1338 = vsub.s32 1, %v1337
        %v1339 = vrot.slane %v1330, %v1338
        %v1340 = vlaneseq
        %v1341 = vshrl.u32 %v1340, 7
        %v1342 = vsub.s32 2, %v1341
        %v1343 = vrot.slane %v1330, %v1342
        %v1379 = vunpack.c.l.b16 %v1298
        %v1380 = vunpack.c.h.b16 %v1298
        %v1381 = vunpack.c.l.b16 %v1299
        %v1382 = vunpack.c.l.b16 %v1300
        %v1383 = vunpack.c.h.b16 %v1300
        %v1384 = vunpack.c.l.b16 %v1301
        %v1385 = vunpack.c.l.b16 %v1302
        %v1386 = vunpack.c.h.b16 %v1302
        %v1387 = vunpack.c.l.b16 %v1303
        %v1388 = vunpack.c.l.b16 %v1304
        %v1389 = vunpack.c.h.b16 %v1304
        %v1390 = vunpack.c.l.b16 %v1305
        %v1391 = vunpack.c.l.b16 %v1306
        %v1392 = vunpack.c.h.b16 %v1306
        %v1393 = vunpack.c.l.b16 %v1307
        %v1394 = vunpack.c.l.b16 %v1308
        %v1395 = vunpack.c.h.b16 %v1308
        %v1396 = vunpack.c.l.b16 %v1309
        %v1397 = vunpack.c.l.b16 %v1310
        %v1398 = vunpack.c.h.b16 %v1310
        %v1399 = vunpack.c.l.b16 %v1311
        %v1400 = vunpack.c.l.b16 %v1312
        %v1401 = vunpack.c.h.b16 %v1312
        %v1402 = vunpack.c.l.b16 %v1313
        %v1403 = vunpack.c.l.b16 %v1314
        %v1404 = vunpack.c.h.b16 %v1314
        %v1405 = vunpack.c.l.b16 %v1315
        %v1406 = vunpack.c.l.b16 %v1316
        %v1407 = vunpack.c.h.b16 %v1316
        %v1408 = vunpack.c.l.b16 %v1317
        %v1409 = vunpack.c.l.b16 %v1318
        %v1410 = vunpack.c.h.b16 %v1318
        %v1411 = vunpack.c.l.b16 %v1319
        %v1412 = vunpack.c.l.b16 %v1320
        %v1413 = vunpack.c.h.b16 %v1320
        %v1414 = vunpack.c.l.b16 %v1321
        %v1415 = vunpack.c.l.b16 %v1322
        %v1416 = vunpack.c.h.b16 %v1322
        %v1417 = vunpack.c.l.b16 %v1323
        %v1418 = vunpack.c.l.b16 %v1324
        %v1419 = vunpack.c.h.b16 %v1324
        %v1420 = vunpack.c.l.b16 %v1325
        %v1421 = vunpack.c.l.b16 %v1326
        %v1422 = vunpack.c.h.b16 %v1326
        %v1423 = vunpack.c.l.b16 %v1327
        %v1424 = vunpack.c.l.b16 %v1328
        %v1425 = vunpack.c.h.b16 %v1328
        %v1426 = vunpack.c.l.b16 %v1329
        %v1427 = vpack.c.b16 %v1382, %v1379
        %v1428 = vpack.c.b16 %v1383, %v1380
        %v1429 = vpack.c.b16 %v1384, %v1381
        %v1430 = vpack.c.b16 %v1388, %v1385
        %v1431 = vpack.c.b16 %v1389, %v1386
        %v1432 = vpack.c.b16 %v1390, %v1387
        %v1433 = vpack.c.b16 %v1394, %v1391
        %v1434 = vpack.c.b16 %v1395, %v1392
        %v1435 = vpack.c.b16 %v1396, %v1393
        %v1436 = vpack.c.b16 %v1400, %v1397
        %v1437 = vpack.c.b16 %v1401, %v1398
        %v1438 = vpack.c.b16 %v1402, %v1399
        %v1439 = vpack.c.b16 %v1406, %v1403
        %v1440 = vpack.c.b16 %v1407, %v1404
        %v1441 = vpack.c.b16 %v1408, %v1405
        %v1442 = vpack.c.b16 %v1412, %v1409
        %v1443 = vpack.c.b16 %v1413, %v1410
        %v1444 = vpack.c.b16 %v1414, %v1411
        %v1445 = vpack.c.b16 %v1418, %v1415
        %v1446 = vpack.c.b16 %v1419, %v1416
        %v1447 = vpack.c.b16 %v1420, %v1417
        %v1448 = vpack.c.b16 %v1424, %v1421
        %v1449 = vpack.c.b16 %v1425, %v1422
        %v1450 = vpack.c.b16 %v1426, %v1423
        %1475 = vmatprep.subr.bf16.mxu0 %v1449
        %1476 = vmatpush1.bf16.msra.mxu0 %v1448
        %1477 = vmatprep.subr.bf16.mxu0 %v1446
        %1478 = vmatpush1.bf16.msra.mxu0 %v1445
        %1479 = vmatprep.subr.bf16.mxu0 %v1443
        %1480 = vmatpush1.bf16.msra.mxu0 %v1442
        %1481 = vmatprep.subr.bf16.mxu0 %v1440
        %1482 = vmatpush1.bf16.msra.mxu0 %v1439
        %1483 = vmatprep.subr.bf16.mxu0 %v1437
        %1484 = vmatpush1.bf16.msra.mxu0 %v1436
        %1485 = vmatprep.subr.bf16.mxu0 %v1434
        %1486 = vmatpush1.bf16.msra.mxu0 %v1433
        %1487 = vmatprep.subr.bf16.mxu0 %v1431
        %1488 = vmatpush1.bf16.msra.mxu0 %v1430
        %1489 = vmatprep.subr.bf16.mxu0 %v1428
        %1490 = vmatpush1.bf16.msra.mxu0 %v1427
        %1491 = vmatprep.subr.bf16.mxu0 0
        %1492 = vmatpush2.bf16.msra.mxu0 0
        %1493 = vmatprep.subr.bf16.mxu0 0
        %1494 = vmatpush2.bf16.msra.mxu0 0
        %1495 = vmatprep.subr.bf16.mxu0 0
        %1496 = vmatpush2.bf16.msra.mxu0 0
        %1497 = vmatprep.subr.bf16.mxu0 0
        %1498 = vmatpush2.bf16.msra.mxu0 0
        %1499 = vmatprep.subr.bf16.mxu0 0
        %1500 = vmatpush2.bf16.msra.mxu0 0
        %1501 = vmatprep.subr.bf16.mxu0 0
        %1502 = vmatpush2.bf16.msra.mxu0 0
        %1503 = vmatprep.subr.bf16.mxu0 0
        %1504 = vmatpush2.bf16.msra.mxu0 0
        %1505 = vmatprep.subr.bf16.mxu0 0
        %1506 = vmatpush2.bf16.msra.mxu0 0
        %1507 = vmatprep.mubr.bf16.mxu0 0
        %1508 = vmatmul.mubr.bf16.gmra.mxu0 %v1297
        %v1509 = vpop.f32.mrf.mxu0
        %v1510 = vadd.f32 %v1335, %v1509
        %v1511 = vpop.f32.mrf.mxu0
        %v1512 = vadd.f32 %v1339, %v1511
        %v1513 = vpop.f32.mrf.mxu0
        %v1514 = vadd.f32 %v1335, %v1513
        %v1515 = vpop.f32.mrf.mxu0
        %v1516 = vadd.f32 %v1339, %v1515
        %1517 = vdwg.mxu0
        %1518 = vmatprep.subr.bf16.mxu0 0
        %1519 = vmatpush1.bf16.msra.mxu0 %v1450
        %1520 = vmatprep.subr.bf16.mxu0 0
        %1521 = vmatpush1.bf16.msra.mxu0 %v1447
        %1522 = vmatprep.subr.bf16.mxu0 0
        %1523 = vmatpush1.bf16.msra.mxu0 %v1444
        %1524 = vmatprep.subr.bf16.mxu0 0
        %1525 = vmatpush1.bf16.msra.mxu0 %v1441
        %1526 = vmatprep.subr.bf16.mxu0 0
        %1527 = vmatpush1.bf16.msra.mxu0 %v1438
        %1528 = vmatprep.subr.bf16.mxu0 0
        %1529 = vmatpush1.bf16.msra.mxu0 %v1435
        %1530 = vmatprep.subr.bf16.mxu0 0
        %1531 = vmatpush1.bf16.msra.mxu0 %v1432
        %1532 = vmatprep.subr.bf16.mxu0 0
        %1533 = vmatpush1.bf16.msra.mxu0 %v1429
        %1534 = vmatprep.subr.bf16.mxu0 0
        %1535 = vmatpush2.bf16.msra.mxu0 0
        %1536 = vmatprep.subr.bf16.mxu0 0
        %1537 = vmatpush2.bf16.msra.mxu0 0
        %1538 = vmatprep.subr.bf16.mxu0 0
        %1539 = vmatpush2.bf16.msra.mxu0 0
        %1540 = vmatprep.subr.bf16.mxu0 0
        %1541 = vmatpush2.bf16.msra.mxu0 0
        %1542 = vmatprep.subr.bf16.mxu0 0
        %1543 = vmatpush2.bf16.msra.mxu0 0
        %1544 = vmatprep.subr.bf16.mxu0 0
        %1545 = vmatpush2.bf16.msra.mxu0 0
        %1546 = vmatprep.subr.bf16.mxu0 0
        %1547 = vmatpush2.bf16.msra.mxu0 0
        %1548 = vmatprep.subr.bf16.mxu0 0
        %1549 = vmatpush2.bf16.msra.mxu0 0
        %1550 = vmatprep.mubr.bf16.mxu0 0
        %1551 = vmatmul.mubr.bf16.gmra.mxu0 %v1297
        %v1552 = vpop.f32.mrf.mxu0
        %v1553 = vadd.f32 %v1343, %v1552
        %v1554 = vpop.f32.mrf.mxu0
        %v1555 = vpop.f32.mrf.mxu0
        %v1556 = vadd.f32 %v1343, %v1555
        %v1557 = vpop.f32.mrf.mxu0
        %1558 = vdwg.mxu0
        %v1559 = vld [vmem:[#allocation8] sm:$0xff]
        %v1560 = vld [vmem:[#allocation8 + $0x8] sm:$0xff]
        %v1561 = vpack.c.bf16 %v1514, %v1510
        %v1562 = vpack.c.bf16 %v1516, %v1512
        %v1563 = vpack.c.bf16 %v1556, %v1553
        %1565 = vrot.lane.b32.xlu0 %v1561, 96
        %v1566 = vpop.permute.xlu0 %1565
        %1567 = vrot.lane.b32.xlu0 %v1561, 64
        %v1568 = vpop.permute.xlu0 %1567
        %1569 = vrot.lane.b32.xlu0 %v1561, 32
        %v1570 = vpop.permute.xlu0 %1569
        %1572 = vrot.lane.b32.xlu0 %v1562, 96
        %v1573 = vpop.permute.xlu0 %1572
        %1574 = vrot.lane.b32.xlu0 %v1562, 64
        %v1575 = vpop.permute.xlu0 %1574
        %1576 = vrot.lane.b32.xlu0 %v1562, 32
        %v1577 = vpop.permute.xlu0 %1576
        %1579 = vrot.lane.b32.xlu0 %v1563, 96
        %v1580 = vpop.permute.xlu0 %1579
        %1581 = vrot.lane.b32.xlu0 %v1563, 64
        %v1582 = vpop.permute.xlu0 %1581
        %1583 = vrot.lane.b32.xlu0 %v1563, 32
        %v1584 = vpop.permute.xlu0 %1583
        %vm1585 = vcmask 261120
        %v1587 = vsel %vm1585, %v1561, 0
        %v1590 = vsel %vm1585, %v1562, 0
        %1592 = vmatprep.subr.bf16.mxu0 0
        %1593 = vmatpush1.bf16.xpose.msra.mxu0 0
        %1594 = vmatprep.subr.bf16.mxu0 0
        %1595 = vmatpush1.bf16.xpose.msra.mxu0 0
        %1596 = vmatprep.subr.bf16.mxu0 0
        %1597 = vmatpush1.bf16.xpose.msra.mxu0 0
        %1598 = vmatprep.subr.bf16.mxu0 0
        %1599 = vmatpush1.bf16.xpose.msra.mxu0 0
        %1600 = vmatprep.subr.bf16.mxu0 0
        %1601 = vmatpush1.bf16.xpose.msra.mxu0 0
        %1602 = vmatprep.subr.bf16.mxu0 0
        %1603 = vmatpush1.bf16.xpose.msra.mxu0 0
        %1604 = vmatprep.subr.bf16.mxu0 0
        %1605 = vmatpush1.bf16.xpose.msra.mxu0 0
        %1606 = vmatprep.subr.bf16.mxu0 0
        %1607 = vmatpush1.bf16.xpose.msra.mxu0 %v1590
        %1608 = vmatprep.subr.bf16.mxu0 0
        %1609 = vmatpush2.bf16.xpose.msra.mxu0 0
        %1610 = vmatprep.subr.bf16.mxu0 0
        %1611 = vmatpush2.bf16.xpose.msra.mxu0 0
        %1612 = vmatprep.subr.bf16.mxu0 0
        %1613 = vmatpush2.bf16.xpose.msra.mxu0 0
        %1614 = vmatprep.subr.bf16.mxu0 0
        %1615 = vmatpush2.bf16.xpose.msra.mxu0 0
        %1616 = vmatprep.subr.bf16.mxu0 0
        %1617 = vmatpush2.bf16.xpose.msra.mxu0 0
        %1618 = vmatprep.subr.bf16.mxu0 0
        %1619 = vmatpush2.bf16.xpose.msra.mxu0 0
        %1620 = vmatprep.subr.bf16.mxu0 0
        %1621 = vmatpush2.bf16.xpose.msra.mxu0 0
        %1622 = vmatprep.subr.bf16.mxu0 0
        %1623 = vmatpush2.bf16.xpose.msra.mxu0 0
        %1624 = vmatprep.mubr.bf16.mxu0 0
        %1625 = vmatmul.mubr.bf16.gmra.mxu0 %v1587
        %v1626 = vpop.f32.mrf.mxu0
        %v1627 = vadd.f32 %v1559, %v1626
        %v1628 = vpop.f32.mrf.mxu0
        %v1629 = vpop.f32.mrf.mxu0
        %v1630 = vpop.f32.mrf.mxu0
        %1631 = vdwg.mxu0
        %v1633 = vsel %vm1585, %v1566, 0
        %v1636 = vsel %vm1585, %v1573, 0
        %1638 = vmatprep.subr.bf16.mxu0 0
        %1639 = vmatpush1.bf16.xpose.msra.mxu0 0
        %1640 = vmatprep.subr.bf16.mxu0 0
        %1641 = vmatpush1.bf16.xpose.msra.mxu0 0
        %1642 = vmatprep.subr.bf16.mxu0 0
        %1643 = vmatpush1.bf16.xpose.msra.mxu0 0
        %1644 = vmatprep.subr.bf16.mxu0 0
        %1645 = vmatpush1.bf16.xpose.msra.mxu0 0
        %1646 = vmatprep.subr.bf16.mxu0 0
        %1647 = vmatpush1.bf16.xpose.msra.mxu0 0
        %1648 = vmatprep.subr.bf16.mxu0 0
        %1649 = vmatpush1.bf16.xpose.msra.mxu0 0
        %1650 = vmatprep.subr.bf16.mxu0 0
        %1651 = vmatpush1.bf16.xpose.msra.mxu0 0
        %1652 = vmatprep.subr.bf16.mxu0 0
        %1653 = vmatpush1.bf16.xpose.msra.mxu0 %v1636
        %1654 = vmatprep.subr.bf16.mxu0 0
        %1655 = vmatpush2.bf16.xpose.msra.mxu0 0
        %1656 = vmatprep.subr.bf16.mxu0 0
        %1657 = vmatpush2.bf16.xpose.msra.mxu0 0
        %1658 = vmatprep.subr.bf16.mxu0 0
        %1659 = vmatpush2.bf16.xpose.msra.mxu0 0
        %1660 = vmatprep.subr.bf16.mxu0 0
        %1661 = vmatpush2.bf16.xpose.msra.mxu0 0
        %1662 = vmatprep.subr.bf16.mxu0 0
        %1663 = vmatpush2.bf16.xpose.msra.mxu0 0
        %1664 = vmatprep.subr.bf16.mxu0 0
        %1665 = vmatpush2.bf16.xpose.msra.mxu0 0
        %1666 = vmatprep.subr.bf16.mxu0 0
        %1667 = vmatpush2.bf16.xpose.msra.mxu0 0
        %1668 = vmatprep.subr.bf16.mxu0 0
        %1669 = vmatpush2.bf16.xpose.msra.mxu0 0
        %1670 = vmatprep.mubr.bf16.mxu0 0
        %1671 = vmatmul.mubr.bf16.gmra.mxu0 %v1633
        %v1672 = vpop.f32.mrf.mxu0
        %v1673 = vadd.f32 %v1559, %v1672
        %v1674 = vpop.f32.mrf.mxu0
        %v1675 = vpop.f32.mrf.mxu0
        %v1676 = vpop.f32.mrf.mxu0
        %1677 = vdwg.mxu0
        %v1679 = vsel %vm1585, %v1568, 0
        %v1682 = vsel %vm1585, %v1575, 0
        %1684 = vmatprep.subr.bf16.mxu0 0
        %1685 = vmatpush1.bf16.xpose.msra.mxu0 0
        %1686 = vmatprep.subr.bf16.mxu0 0
        %1687 = vmatpush1.bf16.xpose.msra.mxu0 0
        %1688 = vmatprep.subr.bf16.mxu0 0
        %1689 = vmatpush1.bf16.xpose.msra.mxu0 0
        %1690 = vmatprep.subr.bf16.mxu0 0
        %1691 = vmatpush1.bf16.xpose.msra.mxu0 0
        %1692 = vmatprep.subr.bf16.mxu0 0
        %1693 = vmatpush1.bf16.xpose.msra.mxu0 0
        %1694 = vmatprep.subr.bf16.mxu0 0
        %1695 = vmatpush1.bf16.xpose.msra.mxu0 0
        %1696 = vmatprep.subr.bf16.mxu0 0
        %1697 = vmatpush1.bf16.xpose.msra.mxu0 0
        %1698 = vmatprep.subr.bf16.mxu0 0
        %1699 = vmatpush1.bf16.xpose.msra.mxu0 %v1682
        %1700 = vmatprep.subr.bf16.mxu0 0
        %1701 = vmatpush2.bf16.xpose.msra.mxu0 0
        %1702 = vmatprep.subr.bf16.mxu0 0
        %1703 = vmatpush2.bf16.xpose.msra.mxu0 0
        %1704 = vmatprep.subr.bf16.mxu0 0
        %1705 = vmatpush2.bf16.xpose.msra.mxu0 0
        %1706 = vmatprep.subr.bf16.mxu0 0
        %1707 = vmatpush2.bf16.xpose.msra.mxu0 0
        %1708 = vmatprep.subr.bf16.mxu0 0
        %1709 = vmatpush2.bf16.xpose.msra.mxu0 0
        %1710 = vmatprep.subr.bf16.mxu0 0
        %1711 = vmatpush2.bf16.xpose.msra.mxu0 0
        %1712 = vmatprep.subr.bf16.mxu0 0
        %1713 = vmatpush2.bf16.xpose.msra.mxu0 0
        %1714 = vmatprep.subr.bf16.mxu0 0
        %1715 = vmatpush2.bf16.xpose.msra.mxu0 0
        %1716 = vmatprep.mubr.bf16.mxu0 0
        %1717 = vmatmul.mubr.bf16.gmra.mxu0 %v1679
        %v1718 = vpop.f32.mrf.mxu0
        %v1719 = vadd.f32 %v1559, %v1718
        %v1720 = vpop.f32.mrf.mxu0
        %v1721 = vpop.f32.mrf.mxu0
        %v1722 = vpop.f32.mrf.mxu0
        %1723 = vdwg.mxu0
        %v1725 = vsel %vm1585, %v1570, 0
        %v1728 = vsel %vm1585, %v1577, 0
        %1730 = vmatprep.subr.bf16.mxu0 0
        %1731 = vmatpush1.bf16.xpose.msra.mxu0 0
        %1732 = vmatprep.subr.bf16.mxu0 0
        %1733 = vmatpush1.bf16.xpose.msra.mxu0 0
        %1734 = vmatprep.subr.bf16.mxu0 0
        %1735 = vmatpush1.bf16.xpose.msra.mxu0 0
        %1736 = vmatprep.subr.bf16.mxu0 0
        %1737 = vmatpush1.bf16.xpose.msra.mxu0 0
        %1738 = vmatprep.subr.bf16.mxu0 0
        %1739 = vmatpush1.bf16.xpose.msra.mxu0 0
        %1740 = vmatprep.subr.bf16.mxu0 0
        %1741 = vmatpush1.bf16.xpose.msra.mxu0 0
        %1742 = vmatprep.subr.bf16.mxu0 0
        %1743 = vmatpush1.bf16.xpose.msra.mxu0 0
        %1744 = vmatprep.subr.bf16.mxu0 0
        %1745 = vmatpush1.bf16.xpose.msra.mxu0 %v1728
        %1746 = vmatprep.subr.bf16.mxu0 0
        %1747 = vmatpush2.bf16.xpose.msra.mxu0 0
        %1748 = vmatprep.subr.bf16.mxu0 0
        %1749 = vmatpush2.bf16.xpose.msra.mxu0 0
        %1750 = vmatprep.subr.bf16.mxu0 0
        %1751 = vmatpush2.bf16.xpose.msra.mxu0 0
        %1752 = vmatprep.subr.bf16.mxu0 0
        %1753 = vmatpush2.bf16.xpose.msra.mxu0 0
        %1754 = vmatprep.subr.bf16.mxu0 0
        %1755 = vmatpush2.bf16.xpose.msra.mxu0 0
        %1756 = vmatprep.subr.bf16.mxu0 0
        %1757 = vmatpush2.bf16.xpose.msra.mxu0 0
        %1758 = vmatprep.subr.bf16.mxu0 0
        %1759 = vmatpush2.bf16.xpose.msra.mxu0 0
        %1760 = vmatprep.subr.bf16.mxu0 0
        %1761 = vmatpush2.bf16.xpose.msra.mxu0 0
        %1762 = vmatprep.mubr.bf16.mxu0 0
        %1763 = vmatmul.mubr.bf16.gmra.mxu0 %v1725
        %v1764 = vpop.f32.mrf.mxu0
        %v1765 = vadd.f32 %v1559, %v1764
        %v1766 = vpop.f32.mrf.mxu0
        %v1767 = vpop.f32.mrf.mxu0
        %v1768 = vpop.f32.mrf.mxu0
        %1769 = vdwg.mxu0
        %vm1770 = vcmask 64512
        %v1771 = vsel %vm1770, %v1627, -inf
        %1772 = vmax.xlane.f32.xlu0 %v1771
        %v1773 = vpop.xlane.xlu0 %1772
        %v1774 = vsel %vm1770, %v1673, -inf
        %1775 = vmax.xlane.f32.xlu0 %v1774
        %v1776 = vpop.xlane.xlu0 %1775
        %v1777 = vsel %vm1770, %v1719, -inf
        %1778 = vmax.xlane.f32.xlu0 %v1777
        %v1779 = vpop.xlane.xlu0 %1778
        %v1780 = vsel %vm1770, %v1765, -inf
        %1781 = vmax.xlane.f32.xlu0 %v1780
        %v1782 = vpop.xlane.xlu0 %1781
        %v1783 = vsub.f32 %v1627, %v1773
        %v1784 = vsub.f32 %v1673, %v1776
        %v1785 = vsub.f32 %v1719, %v1779
        %v1786 = vsub.f32 %v1765, %v1782
        %v1787 = vmul.f32 %v1783, 1.442695
        %v1788 = vpow.pop %v1787
        %v1789 = vmul.f32 %v1784, 1.442695
        %v1790 = vpow.pop %v1789
        %v1791 = vmul.f32 %v1785, 1.442695
        %v1792 = vpow.pop %v1791
        %v1793 = vmul.f32 %v1786, 1.442695
        %v1794 = vpow.pop %v1793
        %v1795 = vsel %vm1770, %v1788, 0.0
        %1796 = vadd.xlane.f32.xlu0 %v1795
        %v1797 = vpop.xlane.xlu0 %1796
        %v1798 = vsel %vm1770, %v1790, 0.0
        %1799 = vadd.xlane.f32.xlu0 %v1798
        %v1800 = vpop.xlane.xlu0 %1799
        %v1801 = vsel %vm1770, %v1792, 0.0
        %1802 = vadd.xlane.f32.xlu0 %v1801
        %v1803 = vpop.xlane.xlu0 %1802
        %v1804 = vsel %vm1770, %v1794, 0.0
        %1805 = vadd.xlane.f32.xlu0 %v1804
        %v1806 = vpop.xlane.xlu0 %1805
        %v1807 = vrcp.pop %v1797
        %v1808 = vrcp.pop %v1800
        %v1809 = vrcp.pop %v1803
        %v1810 = vrcp.pop %v1806
        %v1811 = vmul.f32 %v1788, %v1807
        %v1812 = vmul.f32 %v1790, %v1808
        %v1813 = vmul.f32 %v1792, %v1809
        %v1814 = vmul.f32 %v1794, %v1810
        %v1815 = vpack.c.bf16 %v1811, %v1811
        %v1816 = vpack.c.bf16 %v1812, %v1812
        %v1817 = vpack.c.bf16 %v1813, %v1813
        %v1818 = vpack.c.bf16 %v1814, %v1814
        %v1820 = vsel %vm1770, %v1815, 0
        %vm1822 = vcmask 1043456
        %v1824 = vsel %vm1822, %v1563, 0
        %1826 = vmatprep.subr.bf16.mxu0 0
        %1827 = vmatpush1.bf16.msra.mxu0 0
        %1828 = vmatprep.subr.bf16.mxu0 0
        %1829 = vmatpush1.bf16.msra.mxu0 0
        %1830 = vmatprep.subr.bf16.mxu0 0
        %1831 = vmatpush1.bf16.msra.mxu0 0
        %1832 = vmatprep.subr.bf16.mxu0 0
        %1833 = vmatpush1.bf16.msra.mxu0 0
        %1834 = vmatprep.subr.bf16.mxu0 0
        %1835 = vmatpush1.bf16.msra.mxu0 0
        %1836 = vmatprep.subr.bf16.mxu0 0
        %1837 = vmatpush1.bf16.msra.mxu0 0
        %1838 = vmatprep.subr.bf16.mxu0 0
        %1839 = vmatpush1.bf16.msra.mxu0 0
        %1840 = vmatprep.subr.bf16.mxu0 0
        %1841 = vmatpush1.bf16.msra.mxu0 %v1824
        %1842 = vmatprep.subr.bf16.mxu0 0
        %1843 = vmatpush2.bf16.msra.mxu0 0
        %1844 = vmatprep.subr.bf16.mxu0 0
        %1845 = vmatpush2.bf16.msra.mxu0 0
        %1846 = vmatprep.subr.bf16.mxu0 0
        %1847 = vmatpush2.bf16.msra.mxu0 0
        %1848 = vmatprep.subr.bf16.mxu0 0
        %1849 = vmatpush2.bf16.msra.mxu0 0
        %1850 = vmatprep.subr.bf16.mxu0 0
        %1851 = vmatpush2.bf16.msra.mxu0 0
        %1852 = vmatprep.subr.bf16.mxu0 0
        %1853 = vmatpush2.bf16.msra.mxu0 0
        %1854 = vmatprep.subr.bf16.mxu0 0
        %1855 = vmatpush2.bf16.msra.mxu0 0
        %1856 = vmatprep.subr.bf16.mxu0 0
        %1857 = vmatpush2.bf16.msra.mxu0 0
        %1858 = vmatprep.mubr.bf16.mxu0 0
        %1859 = vmatmul.mubr.bf16.gmra.mxu0 %v1820
        %v1860 = vpop.f32.mrf.mxu0
        %v1861 = vadd.f32 0.0, %v1860
        %v1862 = vpop.f32.mrf.mxu0
        %v1863 = vpop.f32.mrf.mxu0
        %v1864 = vpop.f32.mrf.mxu0
        %1865 = vdwg.mxu0
        %v1867 = vsel %vm1770, %v1816, 0
        %v1870 = vsel %vm1822, %v1580, 0
        %1872 = vmatprep.subr.bf16.mxu0 0
        %1873 = vmatpush1.bf16.msra.mxu0 0
        %1874 = vmatprep.subr.bf16.mxu0 0
        %1875 = vmatpush1.bf16.msra.mxu0 0
        %1876 = vmatprep.subr.bf16.mxu0 0
        %1877 = vmatpush1.bf16.msra.mxu0 0
        %1878 = vmatprep.subr.bf16.mxu0 0
        %1879 = vmatpush1.bf16.msra.mxu0 0
        %1880 = vmatprep.subr.bf16.mxu0 0
        %1881 = vmatpush1.bf16.msra.mxu0 0
        %1882 = vmatprep.subr.bf16.mxu0 0
        %1883 = vmatpush1.bf16.msra.mxu0 0
        %1884 = vmatprep.subr.bf16.mxu0 0
        %1885 = vmatpush1.bf16.msra.mxu0 0
        %1886 = vmatprep.subr.bf16.mxu0 0
        %1887 = vmatpush1.bf16.msra.mxu0 %v1870
        %1888 = vmatprep.subr.bf16.mxu0 0
        %1889 = vmatpush2.bf16.msra.mxu0 0
        %1890 = vmatprep.subr.bf16.mxu0 0
        %1891 = vmatpush2.bf16.msra.mxu0 0
        %1892 = vmatprep.subr.bf16.mxu0 0
        %1893 = vmatpush2.bf16.msra.mxu0 0
        %1894 = vmatprep.subr.bf16.mxu0 0
        %1895 = vmatpush2.bf16.msra.mxu0 0
        %1896 = vmatprep.subr.bf16.mxu0 0
        %1897 = vmatpush2.bf16.msra.mxu0 0
        %1898 = vmatprep.subr.bf16.mxu0 0
        %1899 = vmatpush2.bf16.msra.mxu0 0
        %1900 = vmatprep.subr.bf16.mxu0 0
        %1901 = vmatpush2.bf16.msra.mxu0 0
        %1902 = vmatprep.subr.bf16.mxu0 0
        %1903 = vmatpush2.bf16.msra.mxu0 0
        %1904 = vmatprep.mubr.bf16.mxu0 0
        %1905 = vmatmul.mubr.bf16.gmra.mxu0 %v1867
        %v1906 = vpop.f32.mrf.mxu0
        %v1907 = vadd.f32 0.0, %v1906
        %v1908 = vpop.f32.mrf.mxu0
        %v1909 = vpop.f32.mrf.mxu0
        %v1910 = vpop.f32.mrf.mxu0
        %1911 = vdwg.mxu0
        %v1913 = vsel %vm1770, %v1817, 0
        %v1916 = vsel %vm1822, %v1582, 0
        %1918 = vmatprep.subr.bf16.mxu0 0
        %1919 = vmatpush1.bf16.msra.mxu0 0
        %1920 = vmatprep.subr.bf16.mxu0 0
        %1921 = vmatpush1.bf16.msra.mxu0 0
        %1922 = vmatprep.subr.bf16.mxu0 0
        %1923 = vmatpush1.bf16.msra.mxu0 0
        %1924 = vmatprep.subr.bf16.mxu0 0
        %1925 = vmatpush1.bf16.msra.mxu0 0
        %1926 = vmatprep.subr.bf16.mxu0 0
        %1927 = vmatpush1.bf16.msra.mxu0 0
        %1928 = vmatprep.subr.bf16.mxu0 0
        %1929 = vmatpush1.bf16.msra.mxu0 0
        %1930 = vmatprep.subr.bf16.mxu0 0
        %1931 = vmatpush1.bf16.msra.mxu0 0
        %1932 = vmatprep.subr.bf16.mxu0 0
        %1933 = vmatpush1.bf16.msra.mxu0 %v1916
        %1934 = vmatprep.subr.bf16.mxu0 0
        %1935 = vmatpush2.bf16.msra.mxu0 0
        %1936 = vmatprep.subr.bf16.mxu0 0
        %1937 = vmatpush2.bf16.msra.mxu0 0
        %1938 = vmatprep.subr.bf16.mxu0 0
        %1939 = vmatpush2.bf16.msra.mxu0 0
        %1940 = vmatprep.subr.bf16.mxu0 0
        %1941 = vmatpush2.bf16.msra.mxu0 0
        %1942 = vmatprep.subr.bf16.mxu0 0
        %1943 = vmatpush2.bf16.msra.mxu0 0
        %1944 = vmatprep.subr.bf16.mxu0 0
        %1945 = vmatpush2.bf16.msra.mxu0 0
        %1946 = vmatprep.subr.bf16.mxu0 0
        %1947 = vmatpush2.bf16.msra.mxu0 0
        %1948 = vmatprep.subr.bf16.mxu0 0
        %1949 = vmatpush2.bf16.msra.mxu0 0
        %1950 = vmatprep.mubr.bf16.mxu0 0
        %1951 = vmatmul.mubr.bf16.gmra.mxu0 %v1913
        %v1952 = vpop.f32.mrf.mxu0
        %v1953 = vadd.f32 0.0, %v1952
        %v1954 = vpop.f32.mrf.mxu0
        %v1955 = vpop.f32.mrf.mxu0
        %v1956 = vpop.f32.mrf.mxu0
        %1957 = vdwg.mxu0
        %v1959 = vsel %vm1770, %v1818, 0
        %v1962 = vsel %vm1822, %v1584, 0
        %1964 = vmatprep.subr.bf16.mxu0 0
        %1965 = vmatpush1.bf16.msra.mxu0 0
        %1966 = vmatprep.subr.bf16.mxu0 0
        %1967 = vmatpush1.bf16.msra.mxu0 0
        %1968 = vmatprep.subr.bf16.mxu0 0
        %1969 = vmatpush1.bf16.msra.mxu0 0
        %1970 = vmatprep.subr.bf16.mxu0 0
        %1971 = vmatpush1.bf16.msra.mxu0 0
        %1972 = vmatprep.subr.bf16.mxu0 0
        %1973 = vmatpush1.bf16.msra.mxu0 0
        %1974 = vmatprep.subr.bf16.mxu0 0
        %1975 = vmatpush1.bf16.msra.mxu0 0
        %1976 = vmatprep.subr.bf16.mxu0 0
        %1977 = vmatpush1.bf16.msra.mxu0 0
        %1978 = vmatprep.subr.bf16.mxu0 0
        %1979 = vmatpush1.bf16.msra.mxu0 %v1962
        %1980 = vmatprep.subr.bf16.mxu0 0
        %1981 = vmatpush2.bf16.msra.mxu0 0
        %1982 = vmatprep.subr.bf16.mxu0 0
        %1983 = vmatpush2.bf16.msra.mxu0 0
        %1984 = vmatprep.subr.bf16.mxu0 0
        %1985 = vmatpush2.bf16.msra.mxu0 0
        %1986 = vmatprep.subr.bf16.mxu0 0
        %1987 = vmatpush2.bf16.msra.mxu0 0
        %1988 = vmatprep.subr.bf16.mxu0 0
        %1989 = vmatpush2.bf16.msra.mxu0 0
        %1990 = vmatprep.subr.bf16.mxu0 0
        %1991 = vmatpush2.bf16.msra.mxu0 0
        %1992 = vmatprep.subr.bf16.mxu0 0
        %1993 = vmatpush2.bf16.msra.mxu0 0
        %1994 = vmatprep.subr.bf16.mxu0 0
        %1995 = vmatpush2.bf16.msra.mxu0 0
        %1996 = vmatprep.mubr.bf16.mxu0 0
        %1997 = vmatmul.mubr.bf16.gmra.mxu0 %v1959
        %v1998 = vpop.f32.mrf.mxu0
        %v1999 = vadd.f32 0.0, %v1998
        %v2000 = vpop.f32.mrf.mxu0
        %v2001 = vpop.f32.mrf.mxu0
        %v2002 = vpop.f32.mrf.mxu0
        %2003 = vdwg.mxu0
        %2005 = vrot.lane.b32.xlu0 %v1907, 32
        %v2006 = vpop.permute.xlu0 %2005
        %2009 = vrot.lane.b32.xlu0 %v1953, 64
        %v2010 = vpop.permute.xlu0 %2009
        %2013 = vrot.lane.b32.xlu0 %v1999, 96
        %v2014 = vpop.permute.xlu0 %2013
        %v2016 = vsel %vm1585, %v1861, %v2006
        %vm2017 = vcmask 523264
        %v2018 = vsel %vm2017, %v2016, %v2010
        %vm2019 = vcmask 785408
        %v2020 = vsel %vm2019, %v2018, %v2014
        %v2021 = vrot.slane %v1561, 4
        %v2022 = vrot.slane %v1562, 4
        %v2024 = vsel %vm1585, %v2021, 0
        %v2027 = vsel %vm1585, %v2022, 0
        %2029 = vmatprep.subr.bf16.mxu0 0
        %2030 = vmatpush1.bf16.xpose.msra.mxu0 0
        %2031 = vmatprep.subr.bf16.mxu0 0
        %2032 = vmatpush1.bf16.xpose.msra.mxu0 0
        %2033 = vmatprep.subr.bf16.mxu0 0
        %2034 = vmatpush1.bf16.xpose.msra.mxu0 0
        %2035 = vmatprep.subr.bf16.mxu0 0
        %2036 = vmatpush1.bf16.xpose.msra.mxu0 0
        %2037 = vmatprep.subr.bf16.mxu0 0
        %2038 = vmatpush1.bf16.xpose.msra.mxu0 0
        %2039 = vmatprep.subr.bf16.mxu0 0
        %2040 = vmatpush1.bf16.xpose.msra.mxu0 0
        %2041 = vmatprep.subr.bf16.mxu0 0
        %2042 = vmatpush1.bf16.xpose.msra.mxu0 0
        %2043 = vmatprep.subr.bf16.mxu0 0
        %2044 = vmatpush1.bf16.xpose.msra.mxu0 %v2027
        %2045 = vmatprep.subr.bf16.mxu0 0
        %2046 = vmatpush2.bf16.xpose.msra.mxu0 0
        %2047 = vmatprep.subr.bf16.mxu0 0
        %2048 = vmatpush2.bf16.xpose.msra.mxu0 0
        %2049 = vmatprep.subr.bf16.mxu0 0
        %2050 = vmatpush2.bf16.xpose.msra.mxu0 0
        %2051 = vmatprep.subr.bf16.mxu0 0
        %2052 = vmatpush2.bf16.xpose.msra.mxu0 0
        %2053 = vmatprep.subr.bf16.mxu0 0
        %2054 = vmatpush2.bf16.xpose.msra.mxu0 0
        %2055 = vmatprep.subr.bf16.mxu0 0
        %2056 = vmatpush2.bf16.xpose.msra.mxu0 0
        %2057 = vmatprep.subr.bf16.mxu0 0
        %2058 = vmatpush2.bf16.xpose.msra.mxu0 0
        %2059 = vmatprep.subr.bf16.mxu0 0
        %2060 = vmatpush2.bf16.xpose.msra.mxu0 0
        %2061 = vmatprep.mubr.bf16.mxu0 0
        %2062 = vmatmul.mubr.bf16.gmra.mxu0 %v2024
        %v2063 = vpop.f32.mrf.mxu0
        %v2064 = vadd.f32 %v1560, %v2063
        %v2065 = vpop.f32.mrf.mxu0
        %v2066 = vpop.f32.mrf.mxu0
        %v2067 = vpop.f32.mrf.mxu0
        %2068 = vdwg.mxu0
        %v2069 = vrot.slane %v1566, 4
        %v2070 = vrot.slane %v1573, 4
        %v2072 = vsel %vm1585, %v2069, 0
        %v2075 = vsel %vm1585, %v2070, 0
        %2077 = vmatprep.subr.bf16.mxu0 0
        %2078 = vmatpush1.bf16.xpose.msra.mxu0 0
        %2079 = vmatprep.subr.bf16.mxu0 0
        %2080 = vmatpush1.bf16.xpose.msra.mxu0 0
        %2081 = vmatprep.subr.bf16.mxu0 0
        %2082 = vmatpush1.bf16.xpose.msra.mxu0 0
        %2083 = vmatprep.subr.bf16.mxu0 0
        %2084 = vmatpush1.bf16.xpose.msra.mxu0 0
        %2085 = vmatprep.subr.bf16.mxu0 0
        %2086 = vmatpush1.bf16.xpose.msra.mxu0 0
        %2087 = vmatprep.subr.bf16.mxu0 0
        %2088 = vmatpush1.bf16.xpose.msra.mxu0 0
        %2089 = vmatprep.subr.bf16.mxu0 0
        %2090 = vmatpush1.bf16.xpose.msra.mxu0 0
        %2091 = vmatprep.subr.bf16.mxu0 0
        %2092 = vmatpush1.bf16.xpose.msra.mxu0 %v2075
        %2093 = vmatprep.subr.bf16.mxu0 0
        %2094 = vmatpush2.bf16.xpose.msra.mxu0 0
        %2095 = vmatprep.subr.bf16.mxu0 0
        %2096 = vmatpush2.bf16.xpose.msra.mxu0 0
        %2097 = vmatprep.subr.bf16.mxu0 0
        %2098 = vmatpush2.bf16.xpose.msra.mxu0 0
        %2099 = vmatprep.subr.bf16.mxu0 0
        %2100 = vmatpush2.bf16.xpose.msra.mxu0 0
        %2101 = vmatprep.subr.bf16.mxu0 0
        %2102 = vmatpush2.bf16.xpose.msra.mxu0 0
        %2103 = vmatprep.subr.bf16.mxu0 0
        %2104 = vmatpush2.bf16.xpose.msra.mxu0 0
        %2105 = vmatprep.subr.bf16.mxu0 0
        %2106 = vmatpush2.bf16.xpose.msra.mxu0 0
        %2107 = vmatprep.subr.bf16.mxu0 0
        %2108 = vmatpush2.bf16.xpose.msra.mxu0 0
        %2109 = vmatprep.mubr.bf16.mxu0 0
        %2110 = vmatmul.mubr.bf16.gmra.mxu0 %v2072
        %v2111 = vpop.f32.mrf.mxu0
        %v2112 = vadd.f32 %v1560, %v2111
        %v2113 = vpop.f32.mrf.mxu0
        %v2114 = vpop.f32.mrf.mxu0
        %v2115 = vpop.f32.mrf.mxu0
        %2116 = vdwg.mxu0
        %v2117 = vrot.slane %v1568, 4
        %v2118 = vrot.slane %v1575, 4
        %v2120 = vsel %vm1585, %v2117, 0
        %v2123 = vsel %vm1585, %v2118, 0
        %2125 = vmatprep.subr.bf16.mxu0 0
        %2126 = vmatpush1.bf16.xpose.msra.mxu0 0
        %2127 = vmatprep.subr.bf16.mxu0 0
        %2128 = vmatpush1.bf16.xpose.msra.mxu0 0
        %2129 = vmatprep.subr.bf16.mxu0 0
        %2130 = vmatpush1.bf16.xpose.msra.mxu0 0
        %2131 = vmatprep.subr.bf16.mxu0 0
        %2132 = vmatpush1.bf16.xpose.msra.mxu0 0
        %2133 = vmatprep.subr.bf16.mxu0 0
        %2134 = vmatpush1.bf16.xpose.msra.mxu0 0
        %2135 = vmatprep.subr.bf16.mxu0 0
        %2136 = vmatpush1.bf16.xpose.msra.mxu0 0
        %2137 = vmatprep.subr.bf16.mxu0 0
        %2138 = vmatpush1.bf16.xpose.msra.mxu0 0
        %2139 = vmatprep.subr.bf16.mxu0 0
        %2140 = vmatpush1.bf16.xpose.msra.mxu0 %v2123
        %2141 = vmatprep.subr.bf16.mxu0 0
        %2142 = vmatpush2.bf16.xpose.msra.mxu0 0
        %2143 = vmatprep.subr.bf16.mxu0 0
        %2144 = vmatpush2.bf16.xpose.msra.mxu0 0
        %2145 = vmatprep.subr.bf16.mxu0 0
        %2146 = vmatpush2.bf16.xpose.msra.mxu0 0
        %2147 = vmatprep.subr.bf16.mxu0 0
        %2148 = vmatpush2.bf16.xpose.msra.mxu0 0
        %2149 = vmatprep.subr.bf16.mxu0 0
        %2150 = vmatpush2.bf16.xpose.msra.mxu0 0
        %2151 = vmatprep.subr.bf16.mxu0 0
        %2152 = vmatpush2.bf16.xpose.msra.mxu0 0
        %2153 = vmatprep.subr.bf16.mxu0 0
        %2154 = vmatpush2.bf16.xpose.msra.mxu0 0
        %2155 = vmatprep.subr.bf16.mxu0 0
        %2156 = vmatpush2.bf16.xpose.msra.mxu0 0
        %2157 = vmatprep.mubr.bf16.mxu0 0
        %2158 = vmatmul.mubr.bf16.gmra.mxu0 %v2120
        %v2159 = vpop.f32.mrf.mxu0
        %v2160 = vadd.f32 %v1560, %v2159
        %v2161 = vpop.f32.mrf.mxu0
        %v2162 = vpop.f32.mrf.mxu0
        %v2163 = vpop.f32.mrf.mxu0
        %2164 = vdwg.mxu0
        %v2165 = vrot.slane %v1570, 4
        %v2166 = vrot.slane %v1577, 4
        %v2168 = vsel %vm1585, %v2165, 0
        %v2171 = vsel %vm1585, %v2166, 0
        %2173 = vmatprep.subr.bf16.mxu0 0
        %2174 = vmatpush1.bf16.xpose.msra.mxu0 0
        %2175 = vmatprep.subr.bf16.mxu0 0
        %2176 = vmatpush1.bf16.xpose.msra.mxu0 0
        %2177 = vmatprep.subr.bf16.mxu0 0
        %2178 = vmatpush1.bf16.xpose.msra.mxu0 0
        %2179 = vmatprep.subr.bf16.mxu0 0
        %2180 = vmatpush1.bf16.xpose.msra.mxu0 0
        %2181 = vmatprep.subr.bf16.mxu0 0
        %2182 = vmatpush1.bf16.xpose.msra.mxu0 0
        %2183 = vmatprep.subr.bf16.mxu0 0
        %2184 = vmatpush1.bf16.xpose.msra.mxu0 0
        %2185 = vmatprep.subr.bf16.mxu0 0
        %2186 = vmatpush1.bf16.xpose.msra.mxu0 0
        %2187 = vmatprep.subr.bf16.mxu0 0
        %2188 = vmatpush1.bf16.xpose.msra.mxu0 %v2171
        %2189 = vmatprep.subr.bf16.mxu0 0
        %2190 = vmatpush2.bf16.xpose.msra.mxu0 0
        %2191 = vmatprep.subr.bf16.mxu0 0
        %2192 = vmatpush2.bf16.xpose.msra.mxu0 0
        %2193 = vmatprep.subr.bf16.mxu0 0
        %2194 = vmatpush2.bf16.xpose.msra.mxu0 0
        %2195 = vmatprep.subr.bf16.mxu0 0
        %2196 = vmatpush2.bf16.xpose.msra.mxu0 0
        %2197 = vmatprep.subr.bf16.mxu0 0
        %2198 = vmatpush2.bf16.xpose.msra.mxu0 0
        %2199 = vmatprep.subr.bf16.mxu0 0
        %2200 = vmatpush2.bf16.xpose.msra.mxu0 0
        %2201 = vmatprep.subr.bf16.mxu0 0
        %2202 = vmatpush2.bf16.xpose.msra.mxu0 0
        %2203 = vmatprep.subr.bf16.mxu0 0
        %2204 = vmatpush2.bf16.xpose.msra.mxu0 0
        %2205 = vmatprep.mubr.bf16.mxu0 0
        %2206 = vmatmul.mubr.bf16.gmra.mxu0 %v2168
        %v2207 = vpop.f32.mrf.mxu0
        %v2208 = vadd.f32 %v1560, %v2207
        %v2209 = vpop.f32.mrf.mxu0
        %v2210 = vpop.f32.mrf.mxu0
        %v2211 = vpop.f32.mrf.mxu0
        %2212 = vdwg.mxu0
        %v2213 = vsel %vm1770, %v2064, -inf
        %2214 = vmax.xlane.f32.xlu0 %v2213
        %v2215 = vpop.xlane.xlu0 %2214
        %v2216 = vsel %vm1770, %v2112, -inf
        %2217 = vmax.xlane.f32.xlu0 %v2216
        %v2218 = vpop.xlane.xlu0 %2217
        %v2219 = vsel %vm1770, %v2160, -inf
        %2220 = vmax.xlane.f32.xlu0 %v2219
        %v2221 = vpop.xlane.xlu0 %2220
        %v2222 = vsel %vm1770, %v2208, -inf
        %2223 = vmax.xlane.f32.xlu0 %v2222
        %v2224 = vpop.xlane.xlu0 %2223
        %v2225 = vsub.f32 %v2064, %v2215
        %v2226 = vsub.f32 %v2112, %v2218
        %v2227 = vsub.f32 %v2160, %v2221
        %v2228 = vsub.f32 %v2208, %v2224
        %v2229 = vmul.f32 %v2225, 1.442695
        %v2230 = vpow.pop %v2229
        %v2231 = vmul.f32 %v2226, 1.442695
        %v2232 = vpow.pop %v2231
        %v2233 = vmul.f32 %v2227, 1.442695
        %v2234 = vpow.pop %v2233
        %v2235 = vmul.f32 %v2228, 1.442695
        %v2236 = vpow.pop %v2235
        %v2237 = vsel %vm1770, %v2230, 0.0
        %2238 = vadd.xlane.f32.xlu0 %v2237
        %v2239 = vpop.xlane.xlu0 %2238
        %v2240 = vsel %vm1770, %v2232, 0.0
        %2241 = vadd.xlane.f32.xlu0 %v2240
        %v2242 = vpop.xlane.xlu0 %2241
        %v2243 = vsel %vm1770, %v2234, 0.0
        %2244 = vadd.xlane.f32.xlu0 %v2243
        %v2245 = vpop.xlane.xlu0 %2244
        %v2246 = vsel %vm1770, %v2236, 0.0
        %2247 = vadd.xlane.f32.xlu0 %v2246
        %v2248 = vpop.xlane.xlu0 %2247
        %v2249 = vrcp.pop %v2239
        %v2250 = vrcp.pop %v2242
        %v2251 = vrcp.pop %v2245
        %v2252 = vrcp.pop %v2248
        %v2253 = vmul.f32 %v2230, %v2249
        %v2254 = vmul.f32 %v2232, %v2250
        %v2255 = vmul.f32 %v2234, %v2251
        %v2256 = vmul.f32 %v2236, %v2252
        %v2257 = vpack.c.bf16 %v2253, %v2253
        %v2258 = vpack.c.bf16 %v2254, %v2254
        %v2259 = vpack.c.bf16 %v2255, %v2255
        %v2260 = vpack.c.bf16 %v2256, %v2256
        %v2261 = vrot.slane %v1563, 4
        %v2263 = vsel %vm1770, %v2257, 0
        %v2266 = vsel %vm1822, %v2261, 0
        %2268 = vmatprep.subr.bf16.mxu0 0
        %2269 = vmatpush1.bf16.msra.mxu0 0
        %2270 = vmatprep.subr.bf16.mxu0 0
        %2271 = vmatpush1.bf16.msra.mxu0 0
        %2272 = vmatprep.subr.bf16.mxu0 0
        %2273 = vmatpush1.bf16.msra.mxu0 0
        %2274 = vmatprep.subr.bf16.mxu0 0
        %2275 = vmatpush1.bf16.msra.mxu0 0
        %2276 = vmatprep.subr.bf16.mxu0 0
        %2277 = vmatpush1.bf16.msra.mxu0 0
        %2278 = vmatprep.subr.bf16.mxu0 0
        %2279 = vmatpush1.bf16.msra.mxu0 0
        %2280 = vmatprep.subr.bf16.mxu0 0
        %2281 = vmatpush1.bf16.msra.mxu0 0
        %2282 = vmatprep.subr.bf16.mxu0 0
        %2283 = vmatpush1.bf16.msra.mxu0 %v2266
        %2284 = vmatprep.subr.bf16.mxu0 0
        %2285 = vmatpush2.bf16.msra.mxu0 0
        %2286 = vmatprep.subr.bf16.mxu0 0
        %2287 = vmatpush2.bf16.msra.mxu0 0
        %2288 = vmatprep.subr.bf16.mxu0 0
        %2289 = vmatpush2.bf16.msra.mxu0 0
        %2290 = vmatprep.subr.bf16.mxu0 0
        %2291 = vmatpush2.bf16.msra.mxu0 0
        %2292 = vmatprep.subr.bf16.mxu0 0
        %2293 = vmatpush2.bf16.msra.mxu0 0
        %2294 = vmatprep.subr.bf16.mxu0 0
        %2295 = vmatpush2.bf16.msra.mxu0 0
        %2296 = vmatprep.subr.bf16.mxu0 0
        %2297 = vmatpush2.bf16.msra.mxu0 0
        %2298 = vmatprep.subr.bf16.mxu0 0
        %2299 = vmatpush2.bf16.msra.mxu0 0
        %2300 = vmatprep.mubr.bf16.mxu0 0
        %2301 = vmatmul.mubr.bf16.gmra.mxu0 %v2263
        %v2302 = vpop.f32.mrf.mxu0
        %v2303 = vadd.f32 0.0, %v2302
        %v2304 = vpop.f32.mrf.mxu0
        %v2305 = vpop.f32.mrf.mxu0
        %v2306 = vpop.f32.mrf.mxu0
        %2307 = vdwg.mxu0
        %v2308 = vrot.slane %v1580, 4
        %v2310 = vsel %vm1770, %v2258, 0
        %v2313 = vsel %vm1822, %v2308, 0
        %2315 = vmatprep.subr.bf16.mxu0 0
        %2316 = vmatpush1.bf16.msra.mxu0 0
        %2317 = vmatprep.subr.bf16.mxu0 0
        %2318 = vmatpush1.bf16.msra.mxu0 0
        %2319 = vmatprep.subr.bf16.mxu0 0
        %2320 = vmatpush1.bf16.msra.mxu0 0
        %2321 = vmatprep.subr.bf16.mxu0 0
        %2322 = vmatpush1.bf16.msra.mxu0 0
        %2323 = vmatprep.subr.bf16.mxu0 0
        %2324 = vmatpush1.bf16.msra.mxu0 0
        %2325 = vmatprep.subr.bf16.mxu0 0
        %2326 = vmatpush1.bf16.msra.mxu0 0
        %2327 = vmatprep.subr.bf16.mxu0 0
        %2328 = vmatpush1.bf16.msra.mxu0 0
        %2329 = vmatprep.subr.bf16.mxu0 0
        %2330 = vmatpush1.bf16.msra.mxu0 %v2313
        %2331 = vmatprep.subr.bf16.mxu0 0
        %2332 = vmatpush2.bf16.msra.mxu0 0
        %2333 = vmatprep.subr.bf16.mxu0 0
        %2334 = vmatpush2.bf16.msra.mxu0 0
        %2335 = vmatprep.subr.bf16.mxu0 0
        %2336 = vmatpush2.bf16.msra.mxu0 0
        %2337 = vmatprep.subr.bf16.mxu0 0
        %2338 = vmatpush2.bf16.msra.mxu0 0
        %2339 = vmatprep.subr.bf16.mxu0 0
        %2340 = vmatpush2.bf16.msra.mxu0 0
        %2341 = vmatprep.subr.bf16.mxu0 0
        %2342 = vmatpush2.bf16.msra.mxu0 0
        %2343 = vmatprep.subr.bf16.mxu0 0
        %2344 = vmatpush2.bf16.msra.mxu0 0
        %2345 = vmatprep.subr.bf16.mxu0 0
        %2346 = vmatpush2.bf16.msra.mxu0 0
        %2347 = vmatprep.mubr.bf16.mxu0 0
        %2348 = vmatmul.mubr.bf16.gmra.mxu0 %v2310
        %v2349 = vpop.f32.mrf.mxu0
        %v2350 = vadd.f32 0.0, %v2349
        %v2351 = vpop.f32.mrf.mxu0
        %v2352 = vpop.f32.mrf.mxu0
        %v2353 = vpop.f32.mrf.mxu0
        %2354 = vdwg.mxu0
        %v2355 = vrot.slane %v1582, 4
        %v2357 = vsel %vm1770, %v2259, 0
        %v2360 = vsel %vm1822, %v2355, 0
        %2362 = vmatprep.subr.bf16.mxu0 0
        %2363 = vmatpush1.bf16.msra.mxu0 0
        %2364 = vmatprep.subr.bf16.mxu0 0
        %2365 = vmatpush1.bf16.msra.mxu0 0
        %2366 = vmatprep.subr.bf16.mxu0 0
        %2367 = vmatpush1.bf16.msra.mxu0 0
        %2368 = vmatprep.subr.bf16.mxu0 0
        %2369 = vmatpush1.bf16.msra.mxu0 0
        %2370 = vmatprep.subr.bf16.mxu0 0
        %2371 = vmatpush1.bf16.msra.mxu0 0
        %2372 = vmatprep.subr.bf16.mxu0 0
        %2373 = vmatpush1.bf16.msra.mxu0 0
        %2374 = vmatprep.subr.bf16.mxu0 0
        %2375 = vmatpush1.bf16.msra.mxu0 0
        %2376 = vmatprep.subr.bf16.mxu0 0
        %2377 = vmatpush1.bf16.msra.mxu0 %v2360
        %2378 = vmatprep.subr.bf16.mxu0 0
        %2379 = vmatpush2.bf16.msra.mxu0 0
        %2380 = vmatprep.subr.bf16.mxu0 0
        %2381 = vmatpush2.bf16.msra.mxu0 0
        %2382 = vmatprep.subr.bf16.mxu0 0
        %2383 = vmatpush2.bf16.msra.mxu0 0
        %2384 = vmatprep.subr.bf16.mxu0 0
        %2385 = vmatpush2.bf16.msra.mxu0 0
        %2386 = vmatprep.subr.bf16.mxu0 0
        %2387 = vmatpush2.bf16.msra.mxu0 0
        %2388 = vmatprep.subr.bf16.mxu0 0
        %2389 = vmatpush2.bf16.msra.mxu0 0
        %2390 = vmatprep.subr.bf16.mxu0 0
        %2391 = vmatpush2.bf16.msra.mxu0 0
        %2392 = vmatprep.subr.bf16.mxu0 0
        %2393 = vmatpush2.bf16.msra.mxu0 0
        %2394 = vmatprep.mubr.bf16.mxu0 0
        %2395 = vmatmul.mubr.bf16.gmra.mxu0 %v2357
        %v2396 = vpop.f32.mrf.mxu0
        %v2397 = vadd.f32 0.0, %v2396
        %v2398 = vpop.f32.mrf.mxu0
        %v2399 = vpop.f32.mrf.mxu0
        %v2400 = vpop.f32.mrf.mxu0
        %2401 = vdwg.mxu0
        %v2402 = vrot.slane %v1584, 4
        %v2404 = vsel %vm1770, %v2260, 0
        %v2407 = vsel %vm1822, %v2402, 0
        %2409 = vmatprep.subr.bf16.mxu0 0
        %2410 = vmatpush1.bf16.msra.mxu0 0
        %2411 = vmatprep.subr.bf16.mxu0 0
        %2412 = vmatpush1.bf16.msra.mxu0 0
        %2413 = vmatprep.subr.bf16.mxu0 0
        %2414 = vmatpush1.bf16.msra.mxu0 0
        %2415 = vmatprep.subr.bf16.mxu0 0
        %2416 = vmatpush1.bf16.msra.mxu0 0
        %2417 = vmatprep.subr.bf16.mxu0 0
        %2418 = vmatpush1.bf16.msra.mxu0 0
        %2419 = vmatprep.subr.bf16.mxu0 0
        %2420 = vmatpush1.bf16.msra.mxu0 0
        %2421 = vmatprep.subr.bf16.mxu0 0
        %2422 = vmatpush1.bf16.msra.mxu0 0
        %2423 = vmatprep.subr.bf16.mxu0 0
        %2424 = vmatpush1.bf16.msra.mxu0 %v2407
        %2425 = vmatprep.subr.bf16.mxu0 0
        %2426 = vmatpush2.bf16.msra.mxu0 0
        %2427 = vmatprep.subr.bf16.mxu0 0
        %2428 = vmatpush2.bf16.msra.mxu0 0
        %2429 = vmatprep.subr.bf16.mxu0 0
        %2430 = vmatpush2.bf16.msra.mxu0 0
        %2431 = vmatprep.subr.bf16.mxu0 0
        %2432 = vmatpush2.bf16.msra.mxu0 0
        %2433 = vmatprep.subr.bf16.mxu0 0
        %2434 = vmatpush2.bf16.msra.mxu0 0
        %2435 = vmatprep.subr.bf16.mxu0 0
        %2436 = vmatpush2.bf16.msra.mxu0 0
        %2437 = vmatprep.subr.bf16.mxu0 0
        %2438 = vmatpush2.bf16.msra.mxu0 0
        %2439 = vmatprep.subr.bf16.mxu0 0
        %2440 = vmatpush2.bf16.msra.mxu0 0
        %2441 = vmatprep.mubr.bf16.mxu0 0
        %2442 = vmatmul.mubr.bf16.gmra.mxu0 %v2404
        %v2443 = vpop.f32.mrf.mxu0
        %v2444 = vadd.f32 0.0, %v2443
        %v2445 = vpop.f32.mrf.mxu0
        %v2446 = vpop.f32.mrf.mxu0
        %v2447 = vpop.f32.mrf.mxu0
        %2448 = vdwg.mxu0
        %2450 = vrot.lane.b32.xlu0 %v2350, 32
        %v2451 = vpop.permute.xlu0 %2450
        %2454 = vrot.lane.b32.xlu0 %v2397, 64
        %v2455 = vpop.permute.xlu0 %2454
        %2458 = vrot.lane.b32.xlu0 %v2444, 96
        %v2459 = vpop.permute.xlu0 %2458
        %v2461 = vsel %vm1585, %v2303, %v2451
        %v2462 = vsel %vm2017, %v2461, %v2455
        %v2463 = vsel %vm2019, %v2462, %v2459
        %v2464 = vpack.c.bf16 %v2463, %v2020
        %v2465 = vld [vmem:[%s1054] sm:$0xf]
        %v2466 = vld [vmem:[%s1054 + $0x4] sm:$0xf]
        %v2467 = vld [vmem:[%s1054 + $0x8] sm:$0xf]
        %v2468 = vld [vmem:[%s1054 + $0xc] sm:$0xf]
        %v2469 = vld [vmem:[%s1054 + $0x10] sm:$0xf]
        %v2470 = vld [vmem:[%s1054 + $0x14] sm:$0xf]
        %v2471 = vld [vmem:[%s1054 + $0x18] sm:$0xf]
        %v2472 = vld [vmem:[%s1054 + $0x1c] sm:$0xf]
        %v2473 = vld [vmem:[%s1054 + $0x20] sm:$0xf]
        %v2474 = vld [vmem:[%s1054 + $0x24] sm:$0xf]
        %v2475 = vld [vmem:[%s1054 + $0x28] sm:$0xf]
        %v2476 = vld [vmem:[%s1054 + $0x2c] sm:$0xf]
        %v2477 = vld [vmem:[%s1054 + $0x30] sm:$0xf]
        %v2478 = vld [vmem:[%s1054 + $0x34] sm:$0xf]
        %v2479 = vld [vmem:[%s1054 + $0x38] sm:$0xf]
        %v2480 = vld [vmem:[%s1054 + $0x3c] sm:$0xf]
        %v2481 = vld [vmem:[%s1062] sm:$0x1]
        %v2483 = vlaneseq
        %v2484 = vshrl.u32 %v2483, 7
        %v2485 = vsub.s32 0, %v2484
        %v2486 = vrot.slane %v2481, %v2485
        %v2504 = vunpack.c.l.b16 %v2465
        %v2505 = vunpack.c.l.b16 %v2466
        %v2506 = vunpack.c.l.b16 %v2467
        %v2507 = vunpack.c.l.b16 %v2468
        %v2508 = vunpack.c.l.b16 %v2469
        %v2509 = vunpack.c.l.b16 %v2470
        %v2510 = vunpack.c.l.b16 %v2471
        %v2511 = vunpack.c.l.b16 %v2472
        %v2512 = vunpack.c.l.b16 %v2473
        %v2513 = vunpack.c.l.b16 %v2474
        %v2514 = vunpack.c.l.b16 %v2475
        %v2515 = vunpack.c.l.b16 %v2476
        %v2516 = vunpack.c.l.b16 %v2477
        %v2517 = vunpack.c.l.b16 %v2478
        %v2518 = vunpack.c.l.b16 %v2479
        %v2519 = vunpack.c.l.b16 %v2480
        %v2520 = vpack.c.b16 %v2505, %v2504
        %v2521 = vpack.c.b16 %v2507, %v2506
        %v2522 = vpack.c.b16 %v2509, %v2508
        %v2523 = vpack.c.b16 %v2511, %v2510
        %v2524 = vpack.c.b16 %v2513, %v2512
        %v2525 = vpack.c.b16 %v2515, %v2514
        %v2526 = vpack.c.b16 %v2517, %v2516
        %v2527 = vpack.c.b16 %v2519, %v2518
        %2536 = vmatprep.subr.bf16.mxu0 0
        %2537 = vmatpush1.bf16.msra.mxu0 %v2527
        %2538 = vmatprep.subr.bf16.mxu0 0
        %2539 = vmatpush1.bf16.msra.mxu0 %v2526
        %2540 = vmatprep.subr.bf16.mxu0 0
        %2541 = vmatpush1.bf16.msra.mxu0 %v2525
        %2542 = vmatprep.subr.bf16.mxu0 0
        %2543 = vmatpush1.bf16.msra.mxu0 %v2524
        %2544 = vmatprep.subr.bf16.mxu0 0
        %2545 = vmatpush1.bf16.msra.mxu0 %v2523
        %2546 = vmatprep.subr.bf16.mxu0 0
        %2547 = vmatpush1.bf16.msra.mxu0 %v2522
        %2548 = vmatprep.subr.bf16.mxu0 0
        %2549 = vmatpush1.bf16.msra.mxu0 %v2521
        %2550 = vmatprep.subr.bf16.mxu0 0
        %2551 = vmatpush1.bf16.msra.mxu0 %v2520
        %2552 = vmatprep.subr.bf16.mxu0 0
        %2553 = vmatpush2.bf16.msra.mxu0 0
        %2554 = vmatprep.subr.bf16.mxu0 0
        %2555 = vmatpush2.bf16.msra.mxu0 0
        %2556 = vmatprep.subr.bf16.mxu0 0
        %2557 = vmatpush2.bf16.msra.mxu0 0
        %2558 = vmatprep.subr.bf16.mxu0 0
        %2559 = vmatpush2.bf16.msra.mxu0 0
        %2560 = vmatprep.subr.bf16.mxu0 0
        %2561 = vmatpush2.bf16.msra.mxu0 0
        %2562 = vmatprep.subr.bf16.mxu0 0
        %2563 = vmatpush2.bf16.msra.mxu0 0
        %2564 = vmatprep.subr.bf16.mxu0 0
        %2565 = vmatpush2.bf16.msra.mxu0 0
        %2566 = vmatprep.subr.bf16.mxu0 0
        %2567 = vmatpush2.bf16.msra.mxu0 0
        %2568 = vmatprep.mubr.bf16.mxu0 0
        %2569 = vmatmul.mubr.bf16.gmra.mxu0 %v2464
        %v2570 = vpop.f32.mrf.mxu0
        %v2571 = vadd.f32 %v2486, %v2570
        %v2572 = vpop.f32.mrf.mxu0
        %v2573 = vpop.f32.mrf.mxu0
        %v2574 = vadd.f32 %v2486, %v2573
        %v2575 = vpop.f32.mrf.mxu0
        %2576 = vdwg.mxu0
        %v2577 = vadd.f32 %v1293, %v2571
        %v2578 = vadd.f32 %v1294, %v2574
        %v2579 = vld [vmem:[%s1267] sm:$0x1]
        %v2580 = vld [vmem:[%s1270] sm:$0x1]
        %2581 = vadd.xlane.f32.xlu0 %v2577
        %v2582 = vpop.xlane.xlu0 %2581
        %2583 = vadd.xlane.f32.xlu0 %v2578
        %v2584 = vpop.xlane.xlu0 %2583
        %v2585 = vrcp.pop 128.0
        %v2586 = vmul.f32 %v2582, %v2585
        %v2587 = vmul.f32 %v2584, %v2585
        %v2588 = vmul.f32 %v2577, %v2577
        %v2589 = vmul.f32 %v2578, %v2578
        %2590 = vadd.xlane.f32.xlu0 %v2588
        %v2591 = vpop.xlane.xlu0 %2590
        %2592 = vadd.xlane.f32.xlu0 %v2589
        %v2593 = vpop.xlane.xlu0 %2592
        %v2594 = vmul.f32 %v2591, %v2585
        %v2595 = vmul.f32 %v2593, %v2585
        %v2596 = vmul.f32 %v2586, %v2586
        %v2597 = vmul.f32 %v2587, %v2587
        %v2598 = vsub.f32 %v2594, %v2596
        %v2599 = vsub.f32 %v2595, %v2597
        %v2600 = vmax.f32 %v2598, 0.0
        %v2601 = vmax.f32 %v2599, 0.0
        %v2602 = vsub.f32 %v2577, %v2586
        %v2603 = vsub.f32 %v2578, %v2587
        %v2604 = vadd.f32 %v2600, 1e-05
        %v2605 = vadd.f32 %v2601, 1e-05
        %v2606 = vrsqrt.pop %v2604
        %v2607 = vrsqrt.pop %v2605
        %v2608 = vmul.f32 %v2602, %v2606
        %v2609 = vmul.f32 %v2603, %v2607
        %v2611 = vlaneseq
        %v2612 = vshrl.u32 %v2611, 7
        %v2613 = vsub.s32 0, %v2612
        %v2614 = vrot.slane %v2579, %v2613
        %v2616 = vmul.f32 %v2608, %v2614
        %v2617 = vmul.f32 %v2609, %v2614
        %v2619 = vlaneseq
        %v2620 = vshrl.u32 %v2619, 7
        %v2621 = vsub.s32 0, %v2620
        %v2622 = vrot.slane %v2580, %v2621
        %v2624 = vadd.f32 %v2616, %v2622
        %v2625 = vadd.f32 %v2617, %v2622
        %v2626 = vpack.c.bf16 %v2625, %v2624
        %v2627 = vld [vmem:[%s1071] sm:$0xf]
        %v2628 = vld [vmem:[%s1071 + $0x4] sm:$0xf]
        %v2629 = vld [vmem:[%s1071 + $0x8] sm:$0xf]
        %v2630 = vld [vmem:[%s1071 + $0xc] sm:$0xf]
        %v2631 = vld [vmem:[%s1071 + $0x10] sm:$0xf]
        %v2632 = vld [vmem:[%s1071 + $0x14] sm:$0xf]
        %v2633 = vld [vmem:[%s1071 + $0x18] sm:$0xf]
        %v2634 = vld [vmem:[%s1071 + $0x1c] sm:$0xf]
        %v2635 = vld [vmem:[%s1071 + $0x20] sm:$0xf]
        %v2636 = vld [vmem:[%s1071 + $0x24] sm:$0xf]
        %v2637 = vld [vmem:[%s1071 + $0x28] sm:$0xf]
        %v2638 = vld [vmem:[%s1071 + $0x2c] sm:$0xf]
        %v2639 = vld [vmem:[%s1071 + $0x30] sm:$0xf]
        %v2640 = vld [vmem:[%s1071 + $0x34] sm:$0xf]
        %v2641 = vld [vmem:[%s1071 + $0x38] sm:$0xf]
        %v2642 = vld [vmem:[%s1071 + $0x3c] sm:$0xf]
        %v2643 = vld [vmem:[%s1250] sm:$0x1]
        %v2645 = vlaneseq
        %v2646 = vshrl.u32 %v2645, 7
        %v2647 = vsub.s32 0, %v2646
        %v2648 = vrot.slane %v2643, %v2647
        %v2666 = vunpack.c.l.b16 %v2627
        %v2667 = vunpack.c.l.b16 %v2628
        %v2668 = vunpack.c.l.b16 %v2629
        %v2669 = vunpack.c.l.b16 %v2630
        %v2670 = vunpack.c.l.b16 %v2631
        %v2671 = vunpack.c.l.b16 %v2632
        %v2672 = vunpack.c.l.b16 %v2633
        %v2673 = vunpack.c.l.b16 %v2634
        %v2674 = vunpack.c.l.b16 %v2635
        %v2675 = vunpack.c.l.b16 %v2636
        %v2676 = vunpack.c.l.b16 %v2637
        %v2677 = vunpack.c.l.b16 %v2638
        %v2678 = vunpack.c.l.b16 %v2639
        %v2679 = vunpack.c.l.b16 %v2640
        %v2680 = vunpack.c.l.b16 %v2641
        %v2681 = vunpack.c.l.b16 %v2642
        %v2682 = vpack.c.b16 %v2667, %v2666
        %v2683 = vpack.c.b16 %v2669, %v2668
        %v2684 = vpack.c.b16 %v2671, %v2670
        %v2685 = vpack.c.b16 %v2673, %v2672
        %v2686 = vpack.c.b16 %v2675, %v2674
        %v2687 = vpack.c.b16 %v2677, %v2676
        %v2688 = vpack.c.b16 %v2679, %v2678
        %v2689 = vpack.c.b16 %v2681, %v2680
        %2698 = vmatprep.subr.bf16.mxu0 0
        %2699 = vmatpush1.bf16.msra.mxu0 %v2689
        %2700 = vmatprep.subr.bf16.mxu0 0
        %2701 = vmatpush1.bf16.msra.mxu0 %v2688
        %2702 = vmatprep.subr.bf16.mxu0 0
        %2703 = vmatpush1.bf16.msra.mxu0 %v2687
        %2704 = vmatprep.subr.bf16.mxu0 0
        %2705 = vmatpush1.bf16.msra.mxu0 %v2686
        %2706 = vmatprep.subr.bf16.mxu0 0
        %2707 = vmatpush1.bf16.msra.mxu0 %v2685
        %2708 = vmatprep.subr.bf16.mxu0 0
        %2709 = vmatpush1.bf16.msra.mxu0 %v2684
        %2710 = vmatprep.subr.bf16.mxu0 0
        %2711 = vmatpush1.bf16.msra.mxu0 %v2683
        %2712 = vmatprep.subr.bf16.mxu0 0
        %2713 = vmatpush1.bf16.msra.mxu0 %v2682
        %2714 = vmatprep.subr.bf16.mxu0 0
        %2715 = vmatpush2.bf16.msra.mxu0 0
        %2716 = vmatprep.subr.bf16.mxu0 0
        %2717 = vmatpush2.bf16.msra.mxu0 0
        %2718 = vmatprep.subr.bf16.mxu0 0
        %2719 = vmatpush2.bf16.msra.mxu0 0
        %2720 = vmatprep.subr.bf16.mxu0 0
        %2721 = vmatpush2.bf16.msra.mxu0 0
        %2722 = vmatprep.subr.bf16.mxu0 0
        %2723 = vmatpush2.bf16.msra.mxu0 0
        %2724 = vmatprep.subr.bf16.mxu0 0
        %2725 = vmatpush2.bf16.msra.mxu0 0
        %2726 = vmatprep.subr.bf16.mxu0 0
        %2727 = vmatpush2.bf16.msra.mxu0 0
        %2728 = vmatprep.subr.bf16.mxu0 0
        %2729 = vmatpush2.bf16.msra.mxu0 0
        %2730 = vmatprep.mubr.bf16.mxu0 0
        %2731 = vmatmul.mubr.bf16.gmra.mxu0 %v2626
        %v2732 = vpop.f32.mrf.mxu0
        %v2733 = vadd.f32 %v2648, %v2732
        %v2734 = vpop.f32.mrf.mxu0
        %v2735 = vpop.f32.mrf.mxu0
        %v2736 = vadd.f32 %v2648, %v2735
        %v2737 = vpop.f32.mrf.mxu0
        %2738 = vdwg.mxu0
        %v2739 = vld [vmem:[%s1080] sm:$0xff]
        %v2740 = vld [vmem:[%s1080 + $0x8] sm:$0xff]
        %v2741 = vld [vmem:[%s1080 + $0x10] sm:$0xff]
        %v2742 = vld [vmem:[%s1080 + $0x18] sm:$0xff]
        %v2743 = vld [vmem:[%s1080 + $0x20] sm:$0xff]
        %v2744 = vld [vmem:[%s1080 + $0x28] sm:$0xff]
        %v2745 = vld [vmem:[%s1080 + $0x30] sm:$0xff]
        %v2746 = vld [vmem:[%s1080 + $0x38] sm:$0xff]
        %v2747 = vld [vmem:[%s1080 + $0x40] sm:$0xff]
        %v2748 = vld [vmem:[%s1080 + $0x48] sm:$0xff]
        %v2749 = vld [vmem:[%s1080 + $0x50] sm:$0xff]
        %v2750 = vld [vmem:[%s1080 + $0x58] sm:$0xff]
        %v2751 = vld [vmem:[%s1080 + $0x60] sm:$0xff]
        %v2752 = vld [vmem:[%s1080 + $0x68] sm:$0xff]
        %v2753 = vld [vmem:[%s1080 + $0x70] sm:$0xff]
        %v2754 = vld [vmem:[%s1080 + $0x78] sm:$0xff]
        %v2755 = vld [vmem:[%s1254] sm:$0x3]
        %v2757 = vlaneseq
        %v2758 = vshrl.u32 %v2757, 7
        %v2759 = vsub.s32 0, %v2758
        %v2760 = vrot.slane %v2755, %v2759
        %v2761 = vlaneseq
        %v2762 = vshrl.u32 %v2761, 7
        %v2763 = vsub.s32 1, %v2762
        %v2764 = vrot.slane %v2755, %v2763
        %v2769 = vunpack.c.l.b16 %v1295
        %v2770 = vunpack.c.l.b16 %v1296
        %v2771 = vpack.c.b16 %v2770, %v2769
        %v2789 = vunpack.c.l.b16 %v2739
        %v2790 = vunpack.c.h.b16 %v2739
        %v2791 = vunpack.c.l.b16 %v2740
        %v2792 = vunpack.c.h.b16 %v2740
        %v2793 = vunpack.c.l.b16 %v2741
        %v2794 = vunpack.c.h.b16 %v2741
        %v2795 = vunpack.c.l.b16 %v2742
        %v2796 = vunpack.c.h.b16 %v2742
        %v2797 = vunpack.c.l.b16 %v2743
        %v2798 = vunpack.c.h.b16 %v2743
        %v2799 = vunpack.c.l.b16 %v2744
        %v2800 = vunpack.c.h.b16 %v2744
        %v2801 = vunpack.c.l.b16 %v2745
        %v2802 = vunpack.c.h.b16 %v2745
        %v2803 = vunpack.c.l.b16 %v2746
        %v2804 = vunpack.c.h.b16 %v2746
        %v2805 = vunpack.c.l.b16 %v2747
        %v2806 = vunpack.c.h.b16 %v2747
        %v2807 = vunpack.c.l.b16 %v2748
        %v2808 = vunpack.c.h.b16 %v2748
        %v2809 = vunpack.c.l.b16 %v2749
        %v2810 = vunpack.c.h.b16 %v2749
        %v2811 = vunpack.c.l.b16 %v2750
        %v2812 = vunpack.c.h.b16 %v2750
        %v2813 = vunpack.c.l.b16 %v2751
        %v2814 = vunpack.c.h.b16 %v2751
        %v2815 = vunpack.c.l.b16 %v2752
        %v2816 = vunpack.c.h.b16 %v2752
        %v2817 = vunpack.c.l.b16 %v2753
        %v2818 = vunpack.c.h.b16 %v2753
        %v2819 = vunpack.c.l.b16 %v2754
        %v2820 = vunpack.c.h.b16 %v2754
        %v2821 = vpack.c.b16 %v2791, %v2789
        %v2822 = vpack.c.b16 %v2792, %v2790
        %v2823 = vpack.c.b16 %v2795, %v2793
        %v2824 = vpack.c.b16 %v2796, %v2794
        %v2825 = vpack.c.b16 %v2799, %v2797
        %v2826 = vpack.c.b16 %v2800, %v2798
        %v2827 = vpack.c.b16 %v2803, %v2801
        %v2828 = vpack.c.b16 %v2804, %v2802
        %v2829 = vpack.c.b16 %v2807, %v2805
        %v2830 = vpack.c.b16 %v2808, %v2806
        %v2831 = vpack.c.b16 %v2811, %v2809
        %v2832 = vpack.c.b16 %v2812, %v2810
        %v2833 = vpack.c.b16 %v2815, %v2813
        %v2834 = vpack.c.b16 %v2816, %v2814
        %v2835 = vpack.c.b16 %v2819, %v2817
        %v2836 = vpack.c.b16 %v2820, %v2818
        %2853 = vmatprep.subr.bf16.mxu0 %v2836
        %2854 = vmatpush1.bf16.msra.mxu0 %v2835
        %2855 = vmatprep.subr.bf16.mxu0 %v2834
        %2856 = vmatpush1.bf16.msra.mxu0 %v2833
        %2857 = vmatprep.subr.bf16.mxu0 %v2832
        %2858 = vmatpush1.bf16.msra.mxu0 %v2831
        %2859 = vmatprep.subr.bf16.mxu0 %v2830
        %2860 = vmatpush1.bf16.msra.mxu0 %v2829
        %2861 = vmatprep.subr.bf16.mxu0 %v2828
        %2862 = vmatpush1.bf16.msra.mxu0 %v2827
        %2863 = vmatprep.subr.bf16.mxu0 %v2826
        %2864 = vmatpush1.bf16.msra.mxu0 %v2825
        %2865 = vmatprep.subr.bf16.mxu0 %v2824
        %2866 = vmatpush1.bf16.msra.mxu0 %v2823
        %2867 = vmatprep.subr.bf16.mxu0 %v2822
        %2868 = vmatpush1.bf16.msra.mxu0 %v2821
        %2869 = vmatprep.subr.bf16.mxu0 0
        %2870 = vmatpush2.bf16.msra.mxu0 0
        %2871 = vmatprep.subr.bf16.mxu0 0
        %2872 = vmatpush2.bf16.msra.mxu0 0
        %2873 = vmatprep.subr.bf16.mxu0 0
        %2874 = vmatpush2.bf16.msra.mxu0 0
        %2875 = vmatprep.subr.bf16.mxu0 0
        %2876 = vmatpush2.bf16.msra.mxu0 0
        %2877 = vmatprep.subr.bf16.mxu0 0
        %2878 = vmatpush2.bf16.msra.mxu0 0
        %2879 = vmatprep.subr.bf16.mxu0 0
        %2880 = vmatpush2.bf16.msra.mxu0 0
        %2881 = vmatprep.subr.bf16.mxu0 0
        %2882 = vmatpush2.bf16.msra.mxu0 0
        %2883 = vmatprep.subr.bf16.mxu0 0
        %2884 = vmatpush2.bf16.msra.mxu0 0
        %2885 = vmatprep.mubr.bf16.mxu0 0
        %2886 = vmatmul.mubr.bf16.gmra.mxu0 %v2771
        %v2887 = vpop.f32.mrf.mxu0
        %v2888 = vadd.f32 %v2760, %v2887
        %v2889 = vpop.f32.mrf.mxu0
        %v2890 = vadd.f32 %v2764, %v2889
        %v2891 = vpop.f32.mrf.mxu0
        %v2892 = vadd.f32 %v2760, %v2891
        %v2893 = vpop.f32.mrf.mxu0
        %v2894 = vadd.f32 %v2764, %v2893
        %2895 = vdwg.mxu0
        %v2896 = vld [vmem:[#allocation9] sm:$0xff]
        %v2897 = vld [vmem:[#allocation9 + $0x8] sm:$0xff]
        %v2898 = vpack.c.bf16 %v2736, %v2733
        %v2899 = vpack.c.bf16 %v2892, %v2888
        %v2900 = vpack.c.bf16 %v2894, %v2890
        %2902 = vrot.lane.b32.xlu0 %v2898, 96
        %v2903 = vpop.permute.xlu0 %2902
        %2904 = vrot.lane.b32.xlu0 %v2898, 64
        %v2905 = vpop.permute.xlu0 %2904
        %2906 = vrot.lane.b32.xlu0 %v2898, 32
        %v2907 = vpop.permute.xlu0 %2906
        %2909 = vrot.lane.b32.xlu0 %v2899, 96
        %v2910 = vpop.permute.xlu0 %2909
        %2911 = vrot.lane.b32.xlu0 %v2899, 64
        %v2912 = vpop.permute.xlu0 %2911
        %2913 = vrot.lane.b32.xlu0 %v2899, 32
        %v2914 = vpop.permute.xlu0 %2913
        %2916 = vrot.lane.b32.xlu0 %v2900, 96
        %v2917 = vpop.permute.xlu0 %2916
        %2918 = vrot.lane.b32.xlu0 %v2900, 64
        %v2919 = vpop.permute.xlu0 %2918
        %2920 = vrot.lane.b32.xlu0 %v2900, 32
        %v2921 = vpop.permute.xlu0 %2920
        %v2923 = vsel %vm1585, %v2898, 0
        %v2926 = vsel %vm1585, %v2899, 0
        %2928 = vmatprep.subr.bf16.mxu0 0
        %2929 = vmatpush1.bf16.xpose.msra.mxu0 0
        %2930 = vmatprep.subr.bf16.mxu0 0
        %2931 = vmatpush1.bf16.xpose.msra.mxu0 0
        %2932 = vmatprep.subr.bf16.mxu0 0
        %2933 = vmatpush1.bf16.xpose.msra.mxu0 0
        %2934 = vmatprep.subr.bf16.mxu0 0
        %2935 = vmatpush1.bf16.xpose.msra.mxu0 0
        %2936 = vmatprep.subr.bf16.mxu0 0
        %2937 = vmatpush1.bf16.xpose.msra.mxu0 0
        %2938 = vmatprep.subr.bf16.mxu0 0
        %2939 = vmatpush1.bf16.xpose.msra.mxu0 0
        %2940 = vmatprep.subr.bf16.mxu0 0
        %2941 = vmatpush1.bf16.xpose.msra.mxu0 0
        %2942 = vmatprep.subr.bf16.mxu0 0
        %2943 = vmatpush1.bf16.xpose.msra.mxu0 %v2926
        %2944 = vmatprep.subr.bf16.mxu0 0
        %2945 = vmatpush2.bf16.xpose.msra.mxu0 0
        %2946 = vmatprep.subr.bf16.mxu0 0
        %2947 = vmatpush2.bf16.xpose.msra.mxu0 0
        %2948 = vmatprep.subr.bf16.mxu0 0
        %2949 = vmatpush2.bf16.xpose.msra.mxu0 0
        %2950 = vmatprep.subr.bf16.mxu0 0
        %2951 = vmatpush2.bf16.xpose.msra.mxu0 0
        %2952 = vmatprep.subr.bf16.mxu0 0
        %2953 = vmatpush2.bf16.xpose.msra.mxu0 0
        %2954 = vmatprep.subr.bf16.mxu0 0
        %2955 = vmatpush2.bf16.xpose.msra.mxu0 0
        %2956 = vmatprep.subr.bf16.mxu0 0
        %2957 = vmatpush2.bf16.xpose.msra.mxu0 0
        %2958 = vmatprep.subr.bf16.mxu0 0
        %2959 = vmatpush2.bf16.xpose.msra.mxu0 0
        %2960 = vmatprep.mubr.bf16.mxu0 0
        %2961 = vmatmul.mubr.bf16.gmra.mxu0 %v2923
        %v2962 = vpop.f32.mrf.mxu0
        %v2963 = vadd.f32 %v2896, %v2962
        %v2964 = vpop.f32.mrf.mxu0
        %v2965 = vpop.f32.mrf.mxu0
        %v2966 = vpop.f32.mrf.mxu0
        %2967 = vdwg.mxu0
        %v2969 = vsel %vm1585, %v2903, 0
        %v2972 = vsel %vm1585, %v2910, 0
        %2974 = vmatprep.subr.bf16.mxu0 0
        %2975 = vmatpush1.bf16.xpose.msra.mxu0 0
        %2976 = vmatprep.subr.bf16.mxu0 0
        %2977 = vmatpush1.bf16.xpose.msra.mxu0 0
        %2978 = vmatprep.subr.bf16.mxu0 0
        %2979 = vmatpush1.bf16.xpose.msra.mxu0 0
        %2980 = vmatprep.subr.bf16.mxu0 0
        %2981 = vmatpush1.bf16.xpose.msra.mxu0 0
        %2982 = vmatprep.subr.bf16.mxu0 0
        %2983 = vmatpush1.bf16.xpose.msra.mxu0 0
        %2984 = vmatprep.subr.bf16.mxu0 0
        %2985 = vmatpush1.bf16.xpose.msra.mxu0 0
        %2986 = vmatprep.subr.bf16.mxu0 0
        %2987 = vmatpush1.bf16.xpose.msra.mxu0 0
        %2988 = vmatprep.subr.bf16.mxu0 0
        %2989 = vmatpush1.bf16.xpose.msra.mxu0 %v2972
        %2990 = vmatprep.subr.bf16.mxu0 0
        %2991 = vmatpush2.bf16.xpose.msra.mxu0 0
        %2992 = vmatprep.subr.bf16.mxu0 0
        %2993 = vmatpush2.bf16.xpose.msra.mxu0 0
        %2994 = vmatprep.subr.bf16.mxu0 0
        %2995 = vmatpush2.bf16.xpose.msra.mxu0 0
        %2996 = vmatprep.subr.bf16.mxu0 0
        %2997 = vmatpush2.bf16.xpose.msra.mxu0 0
        %2998 = vmatprep.subr.bf16.mxu0 0
        %2999 = vmatpush2.bf16.xpose.msra.mxu0 0
        %3000 = vmatprep.subr.bf16.mxu0 0
        %3001 = vmatpush2.bf16.xpose.msra.mxu0 0
        %3002 = vmatprep.subr.bf16.mxu0 0
        %3003 = vmatpush2.bf16.xpose.msra.mxu0 0
        %3004 = vmatprep.subr.bf16.mxu0 0
        %3005 = vmatpush2.bf16.xpose.msra.mxu0 0
        %3006 = vmatprep.mubr.bf16.mxu0 0
        %3007 = vmatmul.mubr.bf16.gmra.mxu0 %v2969
        %v3008 = vpop.f32.mrf.mxu0
        %v3009 = vadd.f32 %v2896, %v3008
        %v3010 = vpop.f32.mrf.mxu0
        %v3011 = vpop.f32.mrf.mxu0
        %v3012 = vpop.f32.mrf.mxu0
        %3013 = vdwg.mxu0
        %v3015 = vsel %vm1585, %v2905, 0
        %v3018 = vsel %vm1585, %v2912, 0
        %3020 = vmatprep.subr.bf16.mxu0 0
        %3021 = vmatpush1.bf16.xpose.msra.mxu0 0
        %3022 = vmatprep.subr.bf16.mxu0 0
        %3023 = vmatpush1.bf16.xpose.msra.mxu0 0
        %3024 = vmatprep.subr.bf16.mxu0 0
        %3025 = vmatpush1.bf16.xpose.msra.mxu0 0
        %3026 = vmatprep.subr.bf16.mxu0 0
        %3027 = vmatpush1.bf16.xpose.msra.mxu0 0
        %3028 = vmatprep.subr.bf16.mxu0 0
        %3029 = vmatpush1.bf16.xpose.msra.mxu0 0
        %3030 = vmatprep.subr.bf16.mxu0 0
        %3031 = vmatpush1.bf16.xpose.msra.mxu0 0
        %3032 = vmatprep.subr.bf16.mxu0 0
        %3033 = vmatpush1.bf16.xpose.msra.mxu0 0
        %3034 = vmatprep.subr.bf16.mxu0 0
        %3035 = vmatpush1.bf16.xpose.msra.mxu0 %v3018
        %3036 = vmatprep.subr.bf16.mxu0 0
        %3037 = vmatpush2.bf16.xpose.msra.mxu0 0
        %3038 = vmatprep.subr.bf16.mxu0 0
        %3039 = vmatpush2.bf16.xpose.msra.mxu0 0
        %3040 = vmatprep.subr.bf16.mxu0 0
        %3041 = vmatpush2.bf16.xpose.msra.mxu0 0
        %3042 = vmatprep.subr.bf16.mxu0 0
        %3043 = vmatpush2.bf16.xpose.msra.mxu0 0
        %3044 = vmatprep.subr.bf16.mxu0 0
        %3045 = vmatpush2.bf16.xpose.msra.mxu0 0
        %3046 = vmatprep.subr.bf16.mxu0 0
        %3047 = vmatpush2.bf16.xpose.msra.mxu0 0
        %3048 = vmatprep.subr.bf16.mxu0 0
        %3049 = vmatpush2.bf16.xpose.msra.mxu0 0
        %3050 = vmatprep.subr.bf16.mxu0 0
        %3051 = vmatpush2.bf16.xpose.msra.mxu0 0
        %3052 = vmatprep.mubr.bf16.mxu0 0
        %3053 = vmatmul.mubr.bf16.gmra.mxu0 %v3015
        %v3054 = vpop.f32.mrf.mxu0
        %v3055 = vadd.f32 %v2896, %v3054
        %v3056 = vpop.f32.mrf.mxu0
        %v3057 = vpop.f32.mrf.mxu0
        %v3058 = vpop.f32.mrf.mxu0
        %3059 = vdwg.mxu0
        %v3061 = vsel %vm1585, %v2907, 0
        %v3064 = vsel %vm1585, %v2914, 0
        %3066 = vmatprep.subr.bf16.mxu0 0
        %3067 = vmatpush1.bf16.xpose.msra.mxu0 0
        %3068 = vmatprep.subr.bf16.mxu0 0
        %3069 = vmatpush1.bf16.xpose.msra.mxu0 0
        %3070 = vmatprep.subr.bf16.mxu0 0
        %3071 = vmatpush1.bf16.xpose.msra.mxu0 0
        %3072 = vmatprep.subr.bf16.mxu0 0
        %3073 = vmatpush1.bf16.xpose.msra.mxu0 0
        %3074 = vmatprep.subr.bf16.mxu0 0
        %3075 = vmatpush1.bf16.xpose.msra.mxu0 0
        %3076 = vmatprep.subr.bf16.mxu0 0
        %3077 = vmatpush1.bf16.xpose.msra.mxu0 0
        %3078 = vmatprep.subr.bf16.mxu0 0
        %3079 = vmatpush1.bf16.xpose.msra.mxu0 0
        %3080 = vmatprep.subr.bf16.mxu0 0
        %3081 = vmatpush1.bf16.xpose.msra.mxu0 %v3064
        %3082 = vmatprep.subr.bf16.mxu0 0
        %3083 = vmatpush2.bf16.xpose.msra.mxu0 0
        %3084 = vmatprep.subr.bf16.mxu0 0
        %3085 = vmatpush2.bf16.xpose.msra.mxu0 0
        %3086 = vmatprep.subr.bf16.mxu0 0
        %3087 = vmatpush2.bf16.xpose.msra.mxu0 0
        %3088 = vmatprep.subr.bf16.mxu0 0
        %3089 = vmatpush2.bf16.xpose.msra.mxu0 0
        %3090 = vmatprep.subr.bf16.mxu0 0
        %3091 = vmatpush2.bf16.xpose.msra.mxu0 0
        %3092 = vmatprep.subr.bf16.mxu0 0
        %3093 = vmatpush2.bf16.xpose.msra.mxu0 0
        %3094 = vmatprep.subr.bf16.mxu0 0
        %3095 = vmatpush2.bf16.xpose.msra.mxu0 0
        %3096 = vmatprep.subr.bf16.mxu0 0
        %3097 = vmatpush2.bf16.xpose.msra.mxu0 0
        %3098 = vmatprep.mubr.bf16.mxu0 0
        %3099 = vmatmul.mubr.bf16.gmra.mxu0 %v3061
        %v3100 = vpop.f32.mrf.mxu0
        %v3101 = vadd.f32 %v2896, %v3100
        %v3102 = vpop.f32.mrf.mxu0
        %v3103 = vpop.f32.mrf.mxu0
        %v3104 = vpop.f32.mrf.mxu0
        %3105 = vdwg.mxu0
        %v3106 = vsel %vm1770, %v2963, -inf
        %3107 = vmax.xlane.f32.xlu0 %v3106
        %v3108 = vpop.xlane.xlu0 %3107
        %v3109 = vsel %vm1770, %v3009, -inf
        %3110 = vmax.xlane.f32.xlu0 %v3109
        %v3111 = vpop.xlane.xlu0 %3110
        %v3112 = vsel %vm1770, %v3055, -inf
        %3113 = vmax.xlane.f32.xlu0 %v3112
        %v3114 = vpop.xlane.xlu0 %3113
        %v3115 = vsel %vm1770, %v3101, -inf
        %3116 = vmax.xlane.f32.xlu0 %v3115
        %v3117 = vpop.xlane.xlu0 %3116
        %v3118 = vsub.f32 %v2963, %v3108
        %v3119 = vsub.f32 %v3009, %v3111
        %v3120 = vsub.f32 %v3055, %v3114
        %v3121 = vsub.f32 %v3101, %v3117
        %v3122 = vmul.f32 %v3118, 1.442695
        %v3123 = vpow.pop %v3122
        %v3124 = vmul.f32 %v3119, 1.442695
        %v3125 = vpow.pop %v3124
        %v3126 = vmul.f32 %v3120, 1.442695
        %v3127 = vpow.pop %v3126
        %v3128 = vmul.f32 %v3121, 1.442695
        %v3129 = vpow.pop %v3128
        %v3130 = vsel %vm1770, %v3123, 0.0
        %3131 = vadd.xlane.f32.xlu0 %v3130
        %v3132 = vpop.xlane.xlu0 %3131
        %v3133 = vsel %vm1770, %v3125, 0.0
        %3134 = vadd.xlane.f32.xlu0 %v3133
        %v3135 = vpop.xlane.xlu0 %3134
        %v3136 = vsel %vm1770, %v3127, 0.0
        %3137 = vadd.xlane.f32.xlu0 %v3136
        %v3138 = vpop.xlane.xlu0 %3137
        %v3139 = vsel %vm1770, %v3129, 0.0
        %3140 = vadd.xlane.f32.xlu0 %v3139
        %v3141 = vpop.xlane.xlu0 %3140
        %v3142 = vrcp.pop %v3132
        %v3143 = vrcp.pop %v3135
        %v3144 = vrcp.pop %v3138
        %v3145 = vrcp.pop %v3141
        %v3146 = vmul.f32 %v3123, %v3142
        %v3147 = vmul.f32 %v3125, %v3143
        %v3148 = vmul.f32 %v3127, %v3144
        %v3149 = vmul.f32 %v3129, %v3145
        %v3150 = vpack.c.bf16 %v3146, %v3146
        %v3151 = vpack.c.bf16 %v3147, %v3147
        %v3152 = vpack.c.bf16 %v3148, %v3148
        %v3153 = vpack.c.bf16 %v3149, %v3149
        %v3155 = vsel %vm1770, %v3150, 0
        %v3158 = vsel %vm1822, %v2900, 0
        %3160 = vmatprep.subr.bf16.mxu0 0
        %3161 = vmatpush1.bf16.msra.mxu0 0
        %3162 = vmatprep.subr.bf16.mxu0 0
        %3163 = vmatpush1.bf16.msra.mxu0 0
        %3164 = vmatprep.subr.bf16.mxu0 0
        %3165 = vmatpush1.bf16.msra.mxu0 0
        %3166 = vmatprep.subr.bf16.mxu0 0
        %3167 = vmatpush1.bf16.msra.mxu0 0
        %3168 = vmatprep.subr.bf16.mxu0 0
        %3169 = vmatpush1.bf16.msra.mxu0 0
        %3170 = vmatprep.subr.bf16.mxu0 0
        %3171 = vmatpush1.bf16.msra.mxu0 0
        %3172 = vmatprep.subr.bf16.mxu0 0
        %3173 = vmatpush1.bf16.msra.mxu0 0
        %3174 = vmatprep.subr.bf16.mxu0 0
        %3175 = vmatpush1.bf16.msra.mxu0 %v3158
        %3176 = vmatprep.subr.bf16.mxu0 0
        %3177 = vmatpush2.bf16.msra.mxu0 0
        %3178 = vmatprep.subr.bf16.mxu0 0
        %3179 = vmatpush2.bf16.msra.mxu0 0
        %3180 = vmatprep.subr.bf16.mxu0 0
        %3181 = vmatpush2.bf16.msra.mxu0 0
        %3182 = vmatprep.subr.bf16.mxu0 0
        %3183 = vmatpush2.bf16.msra.mxu0 0
        %3184 = vmatprep.subr.bf16.mxu0 0
        %3185 = vmatpush2.bf16.msra.mxu0 0
        %3186 = vmatprep.subr.bf16.mxu0 0
        %3187 = vmatpush2.bf16.msra.mxu0 0
        %3188 = vmatprep.subr.bf16.mxu0 0
        %3189 = vmatpush2.bf16.msra.mxu0 0
        %3190 = vmatprep.subr.bf16.mxu0 0
        %3191 = vmatpush2.bf16.msra.mxu0 0
        %3192 = vmatprep.mubr.bf16.mxu0 0
        %3193 = vmatmul.mubr.bf16.gmra.mxu0 %v3155
        %v3194 = vpop.f32.mrf.mxu0
        %v3195 = vadd.f32 0.0, %v3194
        %v3196 = vpop.f32.mrf.mxu0
        %v3197 = vpop.f32.mrf.mxu0
        %v3198 = vpop.f32.mrf.mxu0
        %3199 = vdwg.mxu0
        %v3201 = vsel %vm1770, %v3151, 0
        %v3204 = vsel %vm1822, %v2917, 0
        %3206 = vmatprep.subr.bf16.mxu0 0
        %3207 = vmatpush1.bf16.msra.mxu0 0
        %3208 = vmatprep.subr.bf16.mxu0 0
        %3209 = vmatpush1.bf16.msra.mxu0 0
        %3210 = vmatprep.subr.bf16.mxu0 0
        %3211 = vmatpush1.bf16.msra.mxu0 0
        %3212 = vmatprep.subr.bf16.mxu0 0
        %3213 = vmatpush1.bf16.msra.mxu0 0
        %3214 = vmatprep.subr.bf16.mxu0 0
        %3215 = vmatpush1.bf16.msra.mxu0 0
        %3216 = vmatprep.subr.bf16.mxu0 0
        %3217 = vmatpush1.bf16.msra.mxu0 0
        %3218 = vmatprep.subr.bf16.mxu0 0
        %3219 = vmatpush1.bf16.msra.mxu0 0
        %3220 = vmatprep.subr.bf16.mxu0 0
        %3221 = vmatpush1.bf16.msra.mxu0 %v3204
        %3222 = vmatprep.subr.bf16.mxu0 0
        %3223 = vmatpush2.bf16.msra.mxu0 0
        %3224 = vmatprep.subr.bf16.mxu0 0
        %3225 = vmatpush2.bf16.msra.mxu0 0
        %3226 = vmatprep.subr.bf16.mxu0 0
        %3227 = vmatpush2.bf16.msra.mxu0 0
        %3228 = vmatprep.subr.bf16.mxu0 0
        %3229 = vmatpush2.bf16.msra.mxu0 0
        %3230 = vmatprep.subr.bf16.mxu0 0
        %3231 = vmatpush2.bf16.msra.mxu0 0
        %3232 = vmatprep.subr.bf16.mxu0 0
        %3233 = vmatpush2.bf16.msra.mxu0 0
        %3234 = vmatprep.subr.bf16.mxu0 0
        %3235 = vmatpush2.bf16.msra.mxu0 0
        %3236 = vmatprep.subr.bf16.mxu0 0
        %3237 = vmatpush2.bf16.msra.mxu0 0
        %3238 = vmatprep.mubr.bf16.mxu0 0
        %3239 = vmatmul.mubr.bf16.gmra.mxu0 %v3201
        %v3240 = vpop.f32.mrf.mxu0
        %v3241 = vadd.f32 0.0, %v3240
        %v3242 = vpop.f32.mrf.mxu0
        %v3243 = vpop.f32.mrf.mxu0
        %v3244 = vpop.f32.mrf.mxu0
        %3245 = vdwg.mxu0
        %v3247 = vsel %vm1770, %v3152, 0
        %v3250 = vsel %vm1822, %v2919, 0
        %3252 = vmatprep.subr.bf16.mxu0 0
        %3253 = vmatpush1.bf16.msra.mxu0 0
        %3254 = vmatprep.subr.bf16.mxu0 0
        %3255 = vmatpush1.bf16.msra.mxu0 0
        %3256 = vmatprep.subr.bf16.mxu0 0
        %3257 = vmatpush1.bf16.msra.mxu0 0
        %3258 = vmatprep.subr.bf16.mxu0 0
        %3259 = vmatpush1.bf16.msra.mxu0 0
        %3260 = vmatprep.subr.bf16.mxu0 0
        %3261 = vmatpush1.bf16.msra.mxu0 0
        %3262 = vmatprep.subr.bf16.mxu0 0
        %3263 = vmatpush1.bf16.msra.mxu0 0
        %3264 = vmatprep.subr.bf16.mxu0 0
        %3265 = vmatpush1.bf16.msra.mxu0 0
        %3266 = vmatprep.subr.bf16.mxu0 0
        %3267 = vmatpush1.bf16.msra.mxu0 %v3250
        %3268 = vmatprep.subr.bf16.mxu0 0
        %3269 = vmatpush2.bf16.msra.mxu0 0
        %3270 = vmatprep.subr.bf16.mxu0 0
        %3271 = vmatpush2.bf16.msra.mxu0 0
        %3272 = vmatprep.subr.bf16.mxu0 0
        %3273 = vmatpush2.bf16.msra.mxu0 0
        %3274 = vmatprep.subr.bf16.mxu0 0
        %3275 = vmatpush2.bf16.msra.mxu0 0
        %3276 = vmatprep.subr.bf16.mxu0 0
        %3277 = vmatpush2.bf16.msra.mxu0 0
        %3278 = vmatprep.subr.bf16.mxu0 0
        %3279 = vmatpush2.bf16.msra.mxu0 0
        %3280 = vmatprep.subr.bf16.mxu0 0
        %3281 = vmatpush2.bf16.msra.mxu0 0
        %3282 = vmatprep.subr.bf16.mxu0 0
        %3283 = vmatpush2.bf16.msra.mxu0 0
        %3284 = vmatprep.mubr.bf16.mxu0 0
        %3285 = vmatmul.mubr.bf16.gmra.mxu0 %v3247
        %v3286 = vpop.f32.mrf.mxu0
        %v3287 = vadd.f32 0.0, %v3286
        %v3288 = vpop.f32.mrf.mxu0
        %v3289 = vpop.f32.mrf.mxu0
        %v3290 = vpop.f32.mrf.mxu0
        %3291 = vdwg.mxu0
        %v3293 = vsel %vm1770, %v3153, 0
        %v3296 = vsel %vm1822, %v2921, 0
        %3298 = vmatprep.subr.bf16.mxu0 0
        %3299 = vmatpush1.bf16.msra.mxu0 0
        %3300 = vmatprep.subr.bf16.mxu0 0
        %3301 = vmatpush1.bf16.msra.mxu0 0
        %3302 = vmatprep.subr.bf16.mxu0 0
        %3303 = vmatpush1.bf16.msra.mxu0 0
        %3304 = vmatprep.subr.bf16.mxu0 0
        %3305 = vmatpush1.bf16.msra.mxu0 0
        %3306 = vmatprep.subr.bf16.mxu0 0
        %3307 = vmatpush1.bf16.msra.mxu0 0
        %3308 = vmatprep.subr.bf16.mxu0 0
        %3309 = vmatpush1.bf16.msra.mxu0 0
        %3310 = vmatprep.subr.bf16.mxu0 0
        %3311 = vmatpush1.bf16.msra.mxu0 0
        %3312 = vmatprep.subr.bf16.mxu0 0
        %3313 = vmatpush1.bf16.msra.mxu0 %v3296
        %3314 = vmatprep.subr.bf16.mxu0 0
        %3315 = vmatpush2.bf16.msra.mxu0 0
        %3316 = vmatprep.subr.bf16.mxu0 0
        %3317 = vmatpush2.bf16.msra.mxu0 0
        %3318 = vmatprep.subr.bf16.mxu0 0
        %3319 = vmatpush2.bf16.msra.mxu0 0
        %3320 = vmatprep.subr.bf16.mxu0 0
        %3321 = vmatpush2.bf16.msra.mxu0 0
        %3322 = vmatprep.subr.bf16.mxu0 0
        %3323 = vmatpush2.bf16.msra.mxu0 0
        %3324 = vmatprep.subr.bf16.mxu0 0
        %3325 = vmatpush2.bf16.msra.mxu0 0
        %3326 = vmatprep.subr.bf16.mxu0 0
        %3327 = vmatpush2.bf16.msra.mxu0 0
        %3328 = vmatprep.subr.bf16.mxu0 0
        %3329 = vmatpush2.bf16.msra.mxu0 0
        %3330 = vmatprep.mubr.bf16.mxu0 0
        %3331 = vmatmul.mubr.bf16.gmra.mxu0 %v3293
        %v3332 = vpop.f32.mrf.mxu0
        %v3333 = vadd.f32 0.0, %v3332
        %v3334 = vpop.f32.mrf.mxu0
        %v3335 = vpop.f32.mrf.mxu0
        %v3336 = vpop.f32.mrf.mxu0
        %3337 = vdwg.mxu0
        %3339 = vrot.lane.b32.xlu0 %v3241, 32
        %v3340 = vpop.permute.xlu0 %3339
        %3343 = vrot.lane.b32.xlu0 %v3287, 64
        %v3344 = vpop.permute.xlu0 %3343
        %3347 = vrot.lane.b32.xlu0 %v3333, 96
        %v3348 = vpop.permute.xlu0 %3347
        %v3350 = vsel %vm1585, %v3195, %v3340
        %v3351 = vsel %vm2017, %v3350, %v3344
        %v3352 = vsel %vm2019, %v3351, %v3348
        %v3353 = vrot.slane %v2898, 4
        %v3354 = vrot.slane %v2899, 4
        %v3356 = vsel %vm1585, %v3353, 0
        %v3359 = vsel %vm1585, %v3354, 0
        %3361 = vmatprep.subr.bf16.mxu0 0
        %3362 = vmatpush1.bf16.xpose.msra.mxu0 0
        %3363 = vmatprep.subr.bf16.mxu0 0
        %3364 = vmatpush1.bf16.xpose.msra.mxu0 0
        %3365 = vmatprep.subr.bf16.mxu0 0
        %3366 = vmatpush1.bf16.xpose.msra.mxu0 0
        %3367 = vmatprep.subr.bf16.mxu0 0
        %3368 = vmatpush1.bf16.xpose.msra.mxu0 0
        %3369 = vmatprep.subr.bf16.mxu0 0
        %3370 = vmatpush1.bf16.xpose.msra.mxu0 0
        %3371 = vmatprep.subr.bf16.mxu0 0
        %3372 = vmatpush1.bf16.xpose.msra.mxu0 0
        %3373 = vmatprep.subr.bf16.mxu0 0
        %3374 = vmatpush1.bf16.xpose.msra.mxu0 0
        %3375 = vmatprep.subr.bf16.mxu0 0
        %3376 = vmatpush1.bf16.xpose.msra.mxu0 %v3359
        %3377 = vmatprep.subr.bf16.mxu0 0
        %3378 = vmatpush2.bf16.xpose.msra.mxu0 0
        %3379 = vmatprep.subr.bf16.mxu0 0
        %3380 = vmatpush2.bf16.xpose.msra.mxu0 0
        %3381 = vmatprep.subr.bf16.mxu0 0
        %3382 = vmatpush2.bf16.xpose.msra.mxu0 0
        %3383 = vmatprep.subr.bf16.mxu0 0
        %3384 = vmatpush2.bf16.xpose.msra.mxu0 0
        %3385 = vmatprep.subr.bf16.mxu0 0
        %3386 = vmatpush2.bf16.xpose.msra.mxu0 0
        %3387 = vmatprep.subr.bf16.mxu0 0
        %3388 = vmatpush2.bf16.xpose.msra.mxu0 0
        %3389 = vmatprep.subr.bf16.mxu0 0
        %3390 = vmatpush2.bf16.xpose.msra.mxu0 0
        %3391 = vmatprep.subr.bf16.mxu0 0
        %3392 = vmatpush2.bf16.xpose.msra.mxu0 0
        %3393 = vmatprep.mubr.bf16.mxu0 0
        %3394 = vmatmul.mubr.bf16.gmra.mxu0 %v3356
        %v3395 = vpop.f32.mrf.mxu0
        %v3396 = vadd.f32 %v2897, %v3395
        %v3397 = vpop.f32.mrf.mxu0
        %v3398 = vpop.f32.mrf.mxu0
        %v3399 = vpop.f32.mrf.mxu0
        %3400 = vdwg.mxu0
        %v3401 = vrot.slane %v2903, 4
        %v3402 = vrot.slane %v2910, 4
        %v3404 = vsel %vm1585, %v3401, 0
        %v3407 = vsel %vm1585, %v3402, 0
        %3409 = vmatprep.subr.bf16.mxu0 0
        %3410 = vmatpush1.bf16.xpose.msra.mxu0 0
        %3411 = vmatprep.subr.bf16.mxu0 0
        %3412 = vmatpush1.bf16.xpose.msra.mxu0 0
        %3413 = vmatprep.subr.bf16.mxu0 0
        %3414 = vmatpush1.bf16.xpose.msra.mxu0 0
        %3415 = vmatprep.subr.bf16.mxu0 0
        %3416 = vmatpush1.bf16.xpose.msra.mxu0 0
        %3417 = vmatprep.subr.bf16.mxu0 0
        %3418 = vmatpush1.bf16.xpose.msra.mxu0 0
        %3419 = vmatprep.subr.bf16.mxu0 0
        %3420 = vmatpush1.bf16.xpose.msra.mxu0 0
        %3421 = vmatprep.subr.bf16.mxu0 0
        %3422 = vmatpush1.bf16.xpose.msra.mxu0 0
        %3423 = vmatprep.subr.bf16.mxu0 0
        %3424 = vmatpush1.bf16.xpose.msra.mxu0 %v3407
        %3425 = vmatprep.subr.bf16.mxu0 0
        %3426 = vmatpush2.bf16.xpose.msra.mxu0 0
        %3427 = vmatprep.subr.bf16.mxu0 0
        %3428 = vmatpush2.bf16.xpose.msra.mxu0 0
        %3429 = vmatprep.subr.bf16.mxu0 0
        %3430 = vmatpush2.bf16.xpose.msra.mxu0 0
        %3431 = vmatprep.subr.bf16.mxu0 0
        %3432 = vmatpush2.bf16.xpose.msra.mxu0 0
        %3433 = vmatprep.subr.bf16.mxu0 0
        %3434 = vmatpush2.bf16.xpose.msra.mxu0 0
        %3435 = vmatprep.subr.bf16.mxu0 0
        %3436 = vmatpush2.bf16.xpose.msra.mxu0 0
        %3437 = vmatprep.subr.bf16.mxu0 0
        %3438 = vmatpush2.bf16.xpose.msra.mxu0 0
        %3439 = vmatprep.subr.bf16.mxu0 0
        %3440 = vmatpush2.bf16.xpose.msra.mxu0 0
        %3441 = vmatprep.mubr.bf16.mxu0 0
        %3442 = vmatmul.mubr.bf16.gmra.mxu0 %v3404
        %v3443 = vpop.f32.mrf.mxu0
        %v3444 = vadd.f32 %v2897, %v3443
        %v3445 = vpop.f32.mrf.mxu0
        %v3446 = vpop.f32.mrf.mxu0
        %v3447 = vpop.f32.mrf.mxu0
        %3448 = vdwg.mxu0
        %v3449 = vrot.slane %v2905, 4
        %v3450 = vrot.slane %v2912, 4
        %v3452 = vsel %vm1585, %v3449, 0
        %v3455 = vsel %vm1585, %v3450, 0
        %3457 = vmatprep.subr.bf16.mxu0 0
        %3458 = vmatpush1.bf16.xpose.msra.mxu0 0
        %3459 = vmatprep.subr.bf16.mxu0 0
        %3460 = vmatpush1.bf16.xpose.msra.mxu0 0
        %3461 = vmatprep.subr.bf16.mxu0 0
        %3462 = vmatpush1.bf16.xpose.msra.mxu0 0
        %3463 = vmatprep.subr.bf16.mxu0 0
        %3464 = vmatpush1.bf16.xpose.msra.mxu0 0
        %3465 = vmatprep.subr.bf16.mxu0 0
        %3466 = vmatpush1.bf16.xpose.msra.mxu0 0
        %3467 = vmatprep.subr.bf16.mxu0 0
        %3468 = vmatpush1.bf16.xpose.msra.mxu0 0
        %3469 = vmatprep.subr.bf16.mxu0 0
        %3470 = vmatpush1.bf16.xpose.msra.mxu0 0
        %3471 = vmatprep.subr.bf16.mxu0 0
        %3472 = vmatpush1.bf16.xpose.msra.mxu0 %v3455
        %3473 = vmatprep.subr.bf16.mxu0 0
        %3474 = vmatpush2.bf16.xpose.msra.mxu0 0
        %3475 = vmatprep.subr.bf16.mxu0 0
        %3476 = vmatpush2.bf16.xpose.msra.mxu0 0
        %3477 = vmatprep.subr.bf16.mxu0 0
        %3478 = vmatpush2.bf16.xpose.msra.mxu0 0
        %3479 = vmatprep.subr.bf16.mxu0 0
        %3480 = vmatpush2.bf16.xpose.msra.mxu0 0
        %3481 = vmatprep.subr.bf16.mxu0 0
        %3482 = vmatpush2.bf16.xpose.msra.mxu0 0
        %3483 = vmatprep.subr.bf16.mxu0 0
        %3484 = vmatpush2.bf16.xpose.msra.mxu0 0
        %3485 = vmatprep.subr.bf16.mxu0 0
        %3486 = vmatpush2.bf16.xpose.msra.mxu0 0
        %3487 = vmatprep.subr.bf16.mxu0 0
        %3488 = vmatpush2.bf16.xpose.msra.mxu0 0
        %3489 = vmatprep.mubr.bf16.mxu0 0
        %3490 = vmatmul.mubr.bf16.gmra.mxu0 %v3452
        %v3491 = vpop.f32.mrf.mxu0
        %v3492 = vadd.f32 %v2897, %v3491
        %v3493 = vpop.f32.mrf.mxu0
        %v3494 = vpop.f32.mrf.mxu0
        %v3495 = vpop.f32.mrf.mxu0
        %3496 = vdwg.mxu0
        %v3497 = vrot.slane %v2907, 4
        %v3498 = vrot.slane %v2914, 4
        %v3500 = vsel %vm1585, %v3497, 0
        %v3503 = vsel %vm1585, %v3498, 0
        %3505 = vmatprep.subr.bf16.mxu0 0
        %3506 = vmatpush1.bf16.xpose.msra.mxu0 0
        %3507 = vmatprep.subr.bf16.mxu0 0
        %3508 = vmatpush1.bf16.xpose.msra.mxu0 0
        %3509 = vmatprep.subr.bf16.mxu0 0
        %3510 = vmatpush1.bf16.xpose.msra.mxu0 0
        %3511 = vmatprep.subr.bf16.mxu0 0
        %3512 = vmatpush1.bf16.xpose.msra.mxu0 0
        %3513 = vmatprep.subr.bf16.mxu0 0
        %3514 = vmatpush1.bf16.xpose.msra.mxu0 0
        %3515 = vmatprep.subr.bf16.mxu0 0
        %3516 = vmatpush1.bf16.xpose.msra.mxu0 0
        %3517 = vmatprep.subr.bf16.mxu0 0
        %3518 = vmatpush1.bf16.xpose.msra.mxu0 0
        %3519 = vmatprep.subr.bf16.mxu0 0
        %3520 = vmatpush1.bf16.xpose.msra.mxu0 %v3503
        %3521 = vmatprep.subr.bf16.mxu0 0
        %3522 = vmatpush2.bf16.xpose.msra.mxu0 0
        %3523 = vmatprep.subr.bf16.mxu0 0
        %3524 = vmatpush2.bf16.xpose.msra.mxu0 0
        %3525 = vmatprep.subr.bf16.mxu0 0
        %3526 = vmatpush2.bf16.xpose.msra.mxu0 0
        %3527 = vmatprep.subr.bf16.mxu0 0
        %3528 = vmatpush2.bf16.xpose.msra.mxu0 0
        %3529 = vmatprep.subr.bf16.mxu0 0
        %3530 = vmatpush2.bf16.xpose.msra.mxu0 0
        %3531 = vmatprep.subr.bf16.mxu0 0
        %3532 = vmatpush2.bf16.xpose.msra.mxu0 0
        %3533 = vmatprep.subr.bf16.mxu0 0
        %3534 = vmatpush2.bf16.xpose.msra.mxu0 0
        %3535 = vmatprep.subr.bf16.mxu0 0
        %3536 = vmatpush2.bf16.xpose.msra.mxu0 0
        %3537 = vmatprep.mubr.bf16.mxu0 0
        %3538 = vmatmul.mubr.bf16.gmra.mxu0 %v3500
        %v3539 = vpop.f32.mrf.mxu0
        %v3540 = vadd.f32 %v2897, %v3539
        %v3541 = vpop.f32.mrf.mxu0
        %v3542 = vpop.f32.mrf.mxu0
        %v3543 = vpop.f32.mrf.mxu0
        %3544 = vdwg.mxu0
        %v3545 = vsel %vm1770, %v3396, -inf
        %3546 = vmax.xlane.f32.xlu0 %v3545
        %v3547 = vpop.xlane.xlu0 %3546
        %v3548 = vsel %vm1770, %v3444, -inf
        %3549 = vmax.xlane.f32.xlu0 %v3548
        %v3550 = vpop.xlane.xlu0 %3549
        %v3551 = vsel %vm1770, %v3492, -inf
        %3552 = vmax.xlane.f32.xlu0 %v3551
        %v3553 = vpop.xlane.xlu0 %3552
        %v3554 = vsel %vm1770, %v3540, -inf
        %3555 = vmax.xlane.f32.xlu0 %v3554
        %v3556 = vpop.xlane.xlu0 %3555
        %v3557 = vsub.f32 %v3396, %v3547
        %v3558 = vsub.f32 %v3444, %v3550
        %v3559 = vsub.f32 %v3492, %v3553
        %v3560 = vsub.f32 %v3540, %v3556
        %v3561 = vmul.f32 %v3557, 1.442695
        %v3562 = vpow.pop %v3561
        %v3563 = vmul.f32 %v3558, 1.442695
        %v3564 = vpow.pop %v3563
        %v3565 = vmul.f32 %v3559, 1.442695
        %v3566 = vpow.pop %v3565
        %v3567 = vmul.f32 %v3560, 1.442695
        %v3568 = vpow.pop %v3567
        %v3569 = vsel %vm1770, %v3562, 0.0
        %3570 = vadd.xlane.f32.xlu0 %v3569
        %v3571 = vpop.xlane.xlu0 %3570
        %v3572 = vsel %vm1770, %v3564, 0.0
        %3573 = vadd.xlane.f32.xlu0 %v3572
        %v3574 = vpop.xlane.xlu0 %3573
        %v3575 = vsel %vm1770, %v3566, 0.0
        %3576 = vadd.xlane.f32.xlu0 %v3575
        %v3577 = vpop.xlane.xlu0 %3576
        %v3578 = vsel %vm1770, %v3568, 0.0
        %3579 = vadd.xlane.f32.xlu0 %v3578
        %v3580 = vpop.xlane.xlu0 %3579
        %v3581 = vrcp.pop %v3571
        %v3582 = vrcp.pop %v3574
        %v3583 = vrcp.pop %v3577
        %v3584 = vrcp.pop %v3580
        %v3585 = vmul.f32 %v3562, %v3581
        %v3586 = vmul.f32 %v3564, %v3582
        %v3587 = vmul.f32 %v3566, %v3583
        %v3588 = vmul.f32 %v3568, %v3584
        %v3589 = vpack.c.bf16 %v3585, %v3585
        %v3590 = vpack.c.bf16 %v3586, %v3586
        %v3591 = vpack.c.bf16 %v3587, %v3587
        %v3592 = vpack.c.bf16 %v3588, %v3588
        %v3593 = vrot.slane %v2900, 4
        %v3595 = vsel %vm1770, %v3589, 0
        %v3598 = vsel %vm1822, %v3593, 0
        %3600 = vmatprep.subr.bf16.mxu0 0
        %3601 = vmatpush1.bf16.msra.mxu0 0
        %3602 = vmatprep.subr.bf16.mxu0 0
        %3603 = vmatpush1.bf16.msra.mxu0 0
        %3604 = vmatprep.subr.bf16.mxu0 0
        %3605 = vmatpush1.bf16.msra.mxu0 0
        %3606 = vmatprep.subr.bf16.mxu0 0
        %3607 = vmatpush1.bf16.msra.mxu0 0
        %3608 = vmatprep.subr.bf16.mxu0 0
        %3609 = vmatpush1.bf16.msra.mxu0 0
        %3610 = vmatprep.subr.bf16.mxu0 0
        %3611 = vmatpush1.bf16.msra.mxu0 0
        %3612 = vmatprep.subr.bf16.mxu0 0
        %3613 = vmatpush1.bf16.msra.mxu0 0
        %3614 = vmatprep.subr.bf16.mxu0 0
        %3615 = vmatpush1.bf16.msra.mxu0 %v3598
        %3616 = vmatprep.subr.bf16.mxu0 0
        %3617 = vmatpush2.bf16.msra.mxu0 0
        %3618 = vmatprep.subr.bf16.mxu0 0
        %3619 = vmatpush2.bf16.msra.mxu0 0
        %3620 = vmatprep.subr.bf16.mxu0 0
        %3621 = vmatpush2.bf16.msra.mxu0 0
        %3622 = vmatprep.subr.bf16.mxu0 0
        %3623 = vmatpush2.bf16.msra.mxu0 0
        %3624 = vmatprep.subr.bf16.mxu0 0
        %3625 = vmatpush2.bf16.msra.mxu0 0
        %3626 = vmatprep.subr.bf16.mxu0 0
        %3627 = vmatpush2.bf16.msra.mxu0 0
        %3628 = vmatprep.subr.bf16.mxu0 0
        %3629 = vmatpush2.bf16.msra.mxu0 0
        %3630 = vmatprep.subr.bf16.mxu0 0
        %3631 = vmatpush2.bf16.msra.mxu0 0
        %3632 = vmatprep.mubr.bf16.mxu0 0
        %3633 = vmatmul.mubr.bf16.gmra.mxu0 %v3595
        %v3634 = vpop.f32.mrf.mxu0
        %v3635 = vadd.f32 0.0, %v3634
        %v3636 = vpop.f32.mrf.mxu0
        %v3637 = vpop.f32.mrf.mxu0
        %v3638 = vpop.f32.mrf.mxu0
        %3639 = vdwg.mxu0
        %v3640 = vrot.slane %v2917, 4
        %v3642 = vsel %vm1770, %v3590, 0
        %v3645 = vsel %vm1822, %v3640, 0
        %3647 = vmatprep.subr.bf16.mxu0 0
        %3648 = vmatpush1.bf16.msra.mxu0 0
        %3649 = vmatprep.subr.bf16.mxu0 0
        %3650 = vmatpush1.bf16.msra.mxu0 0
        %3651 = vmatprep.subr.bf16.mxu0 0
        %3652 = vmatpush1.bf16.msra.mxu0 0
        %3653 = vmatprep.subr.bf16.mxu0 0
        %3654 = vmatpush1.bf16.msra.mxu0 0
        %3655 = vmatprep.subr.bf16.mxu0 0
        %3656 = vmatpush1.bf16.msra.mxu0 0
        %3657 = vmatprep.subr.bf16.mxu0 0
        %3658 = vmatpush1.bf16.msra.mxu0 0
        %3659 = vmatprep.subr.bf16.mxu0 0
        %3660 = vmatpush1.bf16.msra.mxu0 0
        %3661 = vmatprep.subr.bf16.mxu0 0
        %3662 = vmatpush1.bf16.msra.mxu0 %v3645
        %3663 = vmatprep.subr.bf16.mxu0 0
        %3664 = vmatpush2.bf16.msra.mxu0 0
        %3665 = vmatprep.subr.bf16.mxu0 0
        %3666 = vmatpush2.bf16.msra.mxu0 0
        %3667 = vmatprep.subr.bf16.mxu0 0
        %3668 = vmatpush2.bf16.msra.mxu0 0
        %3669 = vmatprep.subr.bf16.mxu0 0
        %3670 = vmatpush2.bf16.msra.mxu0 0
        %3671 = vmatprep.subr.bf16.mxu0 0
        %3672 = vmatpush2.bf16.msra.mxu0 0
        %3673 = vmatprep.subr.bf16.mxu0 0
        %3674 = vmatpush2.bf16.msra.mxu0 0
        %3675 = vmatprep.subr.bf16.mxu0 0
        %3676 = vmatpush2.bf16.msra.mxu0 0
        %3677 = vmatprep.subr.bf16.mxu0 0
        %3678 = vmatpush2.bf16.msra.mxu0 0
        %3679 = vmatprep.mubr.bf16.mxu0 0
        %3680 = vmatmul.mubr.bf16.gmra.mxu0 %v3642
        %v3681 = vpop.f32.mrf.mxu0
        %v3682 = vadd.f32 0.0, %v3681
        %v3683 = vpop.f32.mrf.mxu0
        %v3684 = vpop.f32.mrf.mxu0
        %v3685 = vpop.f32.mrf.mxu0
        %3686 = vdwg.mxu0
        %v3687 = vrot.slane %v2919, 4
        %v3689 = vsel %vm1770, %v3591, 0
        %v3692 = vsel %vm1822, %v3687, 0
        %3694 = vmatprep.subr.bf16.mxu0 0
        %3695 = vmatpush1.bf16.msra.mxu0 0
        %3696 = vmatprep.subr.bf16.mxu0 0
        %3697 = vmatpush1.bf16.msra.mxu0 0
        %3698 = vmatprep.subr.bf16.mxu0 0
        %3699 = vmatpush1.bf16.msra.mxu0 0
        %3700 = vmatprep.subr.bf16.mxu0 0
        %3701 = vmatpush1.bf16.msra.mxu0 0
        %3702 = vmatprep.subr.bf16.mxu0 0
        %3703 = vmatpush1.bf16.msra.mxu0 0
        %3704 = vmatprep.subr.bf16.mxu0 0
        %3705 = vmatpush1.bf16.msra.mxu0 0
        %3706 = vmatprep.subr.bf16.mxu0 0
        %3707 = vmatpush1.bf16.msra.mxu0 0
        %3708 = vmatprep.subr.bf16.mxu0 0
        %3709 = vmatpush1.bf16.msra.mxu0 %v3692
        %3710 = vmatprep.subr.bf16.mxu0 0
        %3711 = vmatpush2.bf16.msra.mxu0 0
        %3712 = vmatprep.subr.bf16.mxu0 0
        %3713 = vmatpush2.bf16.msra.mxu0 0
        %3714 = vmatprep.subr.bf16.mxu0 0
        %3715 = vmatpush2.bf16.msra.mxu0 0
        %3716 = vmatprep.subr.bf16.mxu0 0
        %3717 = vmatpush2.bf16.msra.mxu0 0
        %3718 = vmatprep.subr.bf16.mxu0 0
        %3719 = vmatpush2.bf16.msra.mxu0 0
        %3720 = vmatprep.subr.bf16.mxu0 0
        %3721 = vmatpush2.bf16.msra.mxu0 0
        %3722 = vmatprep.subr.bf16.mxu0 0
        %3723 = vmatpush2.bf16.msra.mxu0 0
        %3724 = vmatprep.subr.bf16.mxu0 0
        %3725 = vmatpush2.bf16.msra.mxu0 0
        %3726 = vmatprep.mubr.bf16.mxu0 0
        %3727 = vmatmul.mubr.bf16.gmra.mxu0 %v3689
        %v3728 = vpop.f32.mrf.mxu0
        %v3729 = vadd.f32 0.0, %v3728
        %v3730 = vpop.f32.mrf.mxu0
        %v3731 = vpop.f32.mrf.mxu0
        %v3732 = vpop.f32.mrf.mxu0
        %3733 = vdwg.mxu0
        %v3734 = vrot.slane %v2921, 4
        %v3736 = vsel %vm1770, %v3592, 0
        %v3739 = vsel %vm1822, %v3734, 0
        %3741 = vmatprep.subr.bf16.mxu0 0
        %3742 = vmatpush1.bf16.msra.mxu0 0
        %3743 = vmatprep.subr.bf16.mxu0 0
        %3744 = vmatpush1.bf16.msra.mxu0 0
        %3745 = vmatprep.subr.bf16.mxu0 0
        %3746 = vmatpush1.bf16.msra.mxu0 0
        %3747 = vmatprep.subr.bf16.mxu0 0
        %3748 = vmatpush1.bf16.msra.mxu0 0
        %3749 = vmatprep.subr.bf16.mxu0 0
        %3750 = vmatpush1.bf16.msra.mxu0 0
        %3751 = vmatprep.subr.bf16.mxu0 0
        %3752 = vmatpush1.bf16.msra.mxu0 0
        %3753 = vmatprep.subr.bf16.mxu0 0
        %3754 = vmatpush1.bf16.msra.mxu0 0
        %3755 = vmatprep.subr.bf16.mxu0 0
        %3756 = vmatpush1.bf16.msra.mxu0 %v3739
        %3757 = vmatprep.subr.bf16.mxu0 0
        %3758 = vmatpush2.bf16.msra.mxu0 0
        %3759 = vmatprep.subr.bf16.mxu0 0
        %3760 = vmatpush2.bf16.msra.mxu0 0
        %3761 = vmatprep.subr.bf16.mxu0 0
        %3762 = vmatpush2.bf16.msra.mxu0 0
        %3763 = vmatprep.subr.bf16.mxu0 0
        %3764 = vmatpush2.bf16.msra.mxu0 0
        %3765 = vmatprep.subr.bf16.mxu0 0
        %3766 = vmatpush2.bf16.msra.mxu0 0
        %3767 = vmatprep.subr.bf16.mxu0 0
        %3768 = vmatpush2.bf16.msra.mxu0 0
        %3769 = vmatprep.subr.bf16.mxu0 0
        %3770 = vmatpush2.bf16.msra.mxu0 0
        %3771 = vmatprep.subr.bf16.mxu0 0
        %3772 = vmatpush2.bf16.msra.mxu0 0
        %3773 = vmatprep.mubr.bf16.mxu0 0
        %3774 = vmatmul.mubr.bf16.gmra.mxu0 %v3736
        %v3775 = vpop.f32.mrf.mxu0
        %v3776 = vadd.f32 0.0, %v3775
        %v3777 = vpop.f32.mrf.mxu0
        %v3778 = vpop.f32.mrf.mxu0
        %v3779 = vpop.f32.mrf.mxu0
        %3780 = vdwg.mxu0
        %3782 = vrot.lane.b32.xlu0 %v3682, 32
        %v3783 = vpop.permute.xlu0 %3782
        %3786 = vrot.lane.b32.xlu0 %v3729, 64
        %v3787 = vpop.permute.xlu0 %3786
        %3790 = vrot.lane.b32.xlu0 %v3776, 96
        %v3791 = vpop.permute.xlu0 %3790
        %v3793 = vsel %vm1585, %v3635, %v3783
        %v3794 = vsel %vm2017, %v3793, %v3787
        %v3795 = vsel %vm2019, %v3794, %v3791
        %v3796 = vpack.c.bf16 %v3795, %v3352
        %v3797 = vld [vmem:[%s1089] sm:$0xf]
        %v3798 = vld [vmem:[%s1089 + $0x4] sm:$0xf]
        %v3799 = vld [vmem:[%s1089 + $0x8] sm:$0xf]
        %v3800 = vld [vmem:[%s1089 + $0xc] sm:$0xf]
        %v3801 = vld [vmem:[%s1089 + $0x10] sm:$0xf]
        %v3802 = vld [vmem:[%s1089 + $0x14] sm:$0xf]
        %v3803 = vld [vmem:[%s1089 + $0x18] sm:$0xf]
        %v3804 = vld [vmem:[%s1089 + $0x1c] sm:$0xf]
        %v3805 = vld [vmem:[%s1089 + $0x20] sm:$0xf]
        %v3806 = vld [vmem:[%s1089 + $0x24] sm:$0xf]
        %v3807 = vld [vmem:[%s1089 + $0x28] sm:$0xf]
        %v3808 = vld [vmem:[%s1089 + $0x2c] sm:$0xf]
        %v3809 = vld [vmem:[%s1089 + $0x30] sm:$0xf]
        %v3810 = vld [vmem:[%s1089 + $0x34] sm:$0xf]
        %v3811 = vld [vmem:[%s1089 + $0x38] sm:$0xf]
        %v3812 = vld [vmem:[%s1089 + $0x3c] sm:$0xf]
        %v3813 = vld [vmem:[%s1257] sm:$0x1]
        %v3815 = vlaneseq
        %v3816 = vshrl.u32 %v3815, 7
        %v3817 = vsub.s32 0, %v3816
        %v3818 = vrot.slane %v3813, %v3817
        %v3836 = vunpack.c.l.b16 %v3797
        %v3837 = vunpack.c.l.b16 %v3798
        %v3838 = vunpack.c.l.b16 %v3799
        %v3839 = vunpack.c.l.b16 %v3800
        %v3840 = vunpack.c.l.b16 %v3801
        %v3841 = vunpack.c.l.b16 %v3802
        %v3842 = vunpack.c.l.b16 %v3803
        %v3843 = vunpack.c.l.b16 %v3804
        %v3844 = vunpack.c.l.b16 %v3805
        %v3845 = vunpack.c.l.b16 %v3806
        %v3846 = vunpack.c.l.b16 %v3807
        %v3847 = vunpack.c.l.b16 %v3808
        %v3848 = vunpack.c.l.b16 %v3809
        %v3849 = vunpack.c.l.b16 %v3810
        %v3850 = vunpack.c.l.b16 %v3811
        %v3851 = vunpack.c.l.b16 %v3812
        %v3852 = vpack.c.b16 %v3837, %v3836
        %v3853 = vpack.c.b16 %v3839, %v3838
        %v3854 = vpack.c.b16 %v3841, %v3840
        %v3855 = vpack.c.b16 %v3843, %v3842
        %v3856 = vpack.c.b16 %v3845, %v3844
        %v3857 = vpack.c.b16 %v3847, %v3846
        %v3858 = vpack.c.b16 %v3849, %v3848
        %v3859 = vpack.c.b16 %v3851, %v3850
        %3868 = vmatprep.subr.bf16.mxu0 0
        %3869 = vmatpush1.bf16.msra.mxu0 %v3859
        %3870 = vmatprep.subr.bf16.mxu0 0
        %3871 = vmatpush1.bf16.msra.mxu0 %v3858
        %3872 = vmatprep.subr.bf16.mxu0 0
        %3873 = vmatpush1.bf16.msra.mxu0 %v3857
        %3874 = vmatprep.subr.bf16.mxu0 0
        %3875 = vmatpush1.bf16.msra.mxu0 %v3856
        %3876 = vmatprep.subr.bf16.mxu0 0
        %3877 = vmatpush1.bf16.msra.mxu0 %v3855
        %3878 = vmatprep.subr.bf16.mxu0 0
        %3879 = vmatpush1.bf16.msra.mxu0 %v3854
        %3880 = vmatprep.subr.bf16.mxu0 0
        %3881 = vmatpush1.bf16.msra.mxu0 %v3853
        %3882 = vmatprep.subr.bf16.mxu0 0
        %3883 = vmatpush1.bf16.msra.mxu0 %v3852
        %3884 = vmatprep.subr.bf16.mxu0 0
        %3885 = vmatpush2.bf16.msra.mxu0 0
        %3886 = vmatprep.subr.bf16.mxu0 0
        %3887 = vmatpush2.bf16.msra.mxu0 0
        %3888 = vmatprep.subr.bf16.mxu0 0
        %3889 = vmatpush2.bf16.msra.mxu0 0
        %3890 = vmatprep.subr.bf16.mxu0 0
        %3891 = vmatpush2.bf16.msra.mxu0 0
        %3892 = vmatprep.subr.bf16.mxu0 0
        %3893 = vmatpush2.bf16.msra.mxu0 0
        %3894 = vmatprep.subr.bf16.mxu0 0
        %3895 = vmatpush2.bf16.msra.mxu0 0
        %3896 = vmatprep.subr.bf16.mxu0 0
        %3897 = vmatpush2.bf16.msra.mxu0 0
        %3898 = vmatprep.subr.bf16.mxu0 0
        %3899 = vmatpush2.bf16.msra.mxu0 0
        %3900 = vmatprep.mubr.bf16.mxu0 0
        %3901 = vmatmul.mubr.bf16.gmra.mxu0 %v3796
        %v3902 = vpop.f32.mrf.mxu0
        %v3903 = vadd.f32 %v3818, %v3902
        %v3904 = vpop.f32.mrf.mxu0
        %v3905 = vpop.f32.mrf.mxu0
        %v3906 = vadd.f32 %v3818, %v3905
        %v3907 = vpop.f32.mrf.mxu0
        %3908 = vdwg.mxu0
        %v3909 = vadd.f32 %v2624, %v3903
        %v3910 = vadd.f32 %v2625, %v3906
        %v3911 = vld [vmem:[%s1273] sm:$0x1]
        %v3912 = vld [vmem:[%s1276] sm:$0x1]
        %3913 = vadd.xlane.f32.xlu0 %v3909
        %v3914 = vpop.xlane.xlu0 %3913
        %3915 = vadd.xlane.f32.xlu0 %v3910
        %v3916 = vpop.xlane.xlu0 %3915
        %v3917 = vmul.f32 %v3914, %v2585
        %v3918 = vmul.f32 %v3916, %v2585
        %v3919 = vmul.f32 %v3909, %v3909
        %v3920 = vmul.f32 %v3910, %v3910
        %3921 = vadd.xlane.f32.xlu0 %v3919
        %v3922 = vpop.xlane.xlu0 %3921
        %3923 = vadd.xlane.f32.xlu0 %v3920
        %v3924 = vpop.xlane.xlu0 %3923
        %v3925 = vmul.f32 %v3922, %v2585
        %v3926 = vmul.f32 %v3924, %v2585
        %v3927 = vmul.f32 %v3917, %v3917
        %v3928 = vmul.f32 %v3918, %v3918
        %v3929 = vsub.f32 %v3925, %v3927
        %v3930 = vsub.f32 %v3926, %v3928
        %v3931 = vmax.f32 %v3929, 0.0
        %v3932 = vmax.f32 %v3930, 0.0
        %v3933 = vsub.f32 %v3909, %v3917
        %v3934 = vsub.f32 %v3910, %v3918
        %v3935 = vadd.f32 %v3931, 1e-05
        %v3936 = vadd.f32 %v3932, 1e-05
        %v3937 = vrsqrt.pop %v3935
        %v3938 = vrsqrt.pop %v3936
        %v3939 = vmul.f32 %v3933, %v3937
        %v3940 = vmul.f32 %v3934, %v3938
        %v3942 = vlaneseq
        %v3943 = vshrl.u32 %v3942, 7
        %v3944 = vsub.s32 0, %v3943
        %v3945 = vrot.slane %v3911, %v3944
        %v3947 = vmul.f32 %v3939, %v3945
        %v3948 = vmul.f32 %v3940, %v3945
        %v3950 = vlaneseq
        %v3951 = vshrl.u32 %v3950, 7
        %v3952 = vsub.s32 0, %v3951
        %v3953 = vrot.slane %v3912, %v3952
        %v3955 = vadd.f32 %v3947, %v3953
        %v3956 = vadd.f32 %v3948, %v3953
        %v3957 = vpack.c.bf16 %v3956, %v3955
        %v3958 = vld [vmem:[%s1098] sm:$0xff]
        %v3959 = vld [vmem:[%s1098 + $0x8] sm:$0xff]
        %v3960 = vld [vmem:[%s1098 + $0x10] sm:$0xff]
        %v3961 = vld [vmem:[%s1098 + $0x18] sm:$0xff]
        %v3962 = vld [vmem:[%s1098 + $0x20] sm:$0xff]
        %v3963 = vld [vmem:[%s1098 + $0x28] sm:$0xff]
        %v3964 = vld [vmem:[%s1098 + $0x30] sm:$0xff]
        %v3965 = vld [vmem:[%s1098 + $0x38] sm:$0xff]
        %v3966 = vld [vmem:[%s1098 + $0x40] sm:$0xff]
        %v3967 = vld [vmem:[%s1098 + $0x48] sm:$0xff]
        %v3968 = vld [vmem:[%s1098 + $0x50] sm:$0xff]
        %v3969 = vld [vmem:[%s1098 + $0x58] sm:$0xff]
        %v3970 = vld [vmem:[%s1098 + $0x60] sm:$0xff]
        %v3971 = vld [vmem:[%s1098 + $0x68] sm:$0xff]
        %v3972 = vld [vmem:[%s1098 + $0x70] sm:$0xff]
        %v3973 = vld [vmem:[%s1098 + $0x78] sm:$0xff]
        %v3974 = vld [vmem:[%s1261] sm:$0x3]
        %v3976 = vlaneseq
        %v3977 = vshrl.u32 %v3976, 7
        %v3978 = vsub.s32 0, %v3977
        %v3979 = vrot.slane %v3974, %v3978
        %v3980 = vlaneseq
        %v3981 = vshrl.u32 %v3980, 7
        %v3982 = vsub.s32 1, %v3981
        %v3983 = vrot.slane %v3974, %v3982
        %v4002 = vunpack.c.l.b16 %v3958
        %v4003 = vunpack.c.h.b16 %v3958
        %v4004 = vunpack.c.l.b16 %v3959
        %v4005 = vunpack.c.h.b16 %v3959
        %v4006 = vunpack.c.l.b16 %v3960
        %v4007 = vunpack.c.h.b16 %v3960
        %v4008 = vunpack.c.l.b16 %v3961
        %v4009 = vunpack.c.h.b16 %v3961
        %v4010 = vunpack.c.l.b16 %v3962
        %v4011 = vunpack.c.h.b16 %v3962
        %v4012 = vunpack.c.l.b16 %v3963
        %v4013 = vunpack.c.h.b16 %v3963
        %v4014 = vunpack.c.l.b16 %v3964
        %v4015 = vunpack.c.h.b16 %v3964
        %v4016 = vunpack.c.l.b16 %v3965
        %v4017 = vunpack.c.h.b16 %v3965
        %v4018 = vunpack.c.l.b16 %v3966
        %v4019 = vunpack.c.h.b16 %v3966
        %v4020 = vunpack.c.l.b16 %v3967
        %v4021 = vunpack.c.h.b16 %v3967
        %v4022 = vunpack.c.l.b16 %v3968
        %v4023 = vunpack.c.h.b16 %v3968
        %v4024 = vunpack.c.l.b16 %v3969
        %v4025 = vunpack.c.h.b16 %v3969
        %v4026 = vunpack.c.l.b16 %v3970
        %v4027 = vunpack.c.h.b16 %v3970
        %v4028 = vunpack.c.l.b16 %v3971
        %v4029 = vunpack.c.h.b16 %v3971
        %v4030 = vunpack.c.l.b16 %v3972
        %v4031 = vunpack.c.h.b16 %v3972
        %v4032 = vunpack.c.l.b16 %v3973
        %v4033 = vunpack.c.h.b16 %v3973
        %v4034 = vpack.c.b16 %v4004, %v4002
        %v4035 = vpack.c.b16 %v4005, %v4003
        %v4036 = vpack.c.b16 %v4008, %v4006
        %v4037 = vpack.c.b16 %v4009, %v4007
        %v4038 = vpack.c.b16 %v4012, %v4010
        %v4039 = vpack.c.b16 %v4013, %v4011
        %v4040 = vpack.c.b16 %v4016, %v4014
        %v4041 = vpack.c.b16 %v4017, %v4015
        %v4042 = vpack.c.b16 %v4020, %v4018
        %v4043 = vpack.c.b16 %v4021, %v4019
        %v4044 = vpack.c.b16 %v4024, %v4022
        %v4045 = vpack.c.b16 %v4025, %v4023
        %v4046 = vpack.c.b16 %v4028, %v4026
        %v4047 = vpack.c.b16 %v4029, %v4027
        %v4048 = vpack.c.b16 %v4032, %v4030
        %v4049 = vpack.c.b16 %v4033, %v4031
        %4066 = vmatprep.subr.bf16.mxu0 %v4049
        %4067 = vmatpush1.bf16.msra.mxu0 %v4048
        %4068 = vmatprep.subr.bf16.mxu0 %v4047
        %4069 = vmatpush1.bf16.msra.mxu0 %v4046
        %4070 = vmatprep.subr.bf16.mxu0 %v4045
        %4071 = vmatpush1.bf16.msra.mxu0 %v4044
        %4072 = vmatprep.subr.bf16.mxu0 %v4043
        %4073 = vmatpush1.bf16.msra.mxu0 %v4042
        %4074 = vmatprep.subr.bf16.mxu0 %v4041
        %4075 = vmatpush1.bf16.msra.mxu0 %v4040
        %4076 = vmatprep.subr.bf16.mxu0 %v4039
        %4077 = vmatpush1.bf16.msra.mxu0 %v4038
        %4078 = vmatprep.subr.bf16.mxu0 %v4037
        %4079 = vmatpush1.bf16.msra.mxu0 %v4036
        %4080 = vmatprep.subr.bf16.mxu0 %v4035
        %4081 = vmatpush1.bf16.msra.mxu0 %v4034
        %4082 = vmatprep.subr.bf16.mxu0 0
        %4083 = vmatpush2.bf16.msra.mxu0 0
        %4084 = vmatprep.subr.bf16.mxu0 0
        %4085 = vmatpush2.bf16.msra.mxu0 0
        %4086 = vmatprep.subr.bf16.mxu0 0
        %4087 = vmatpush2.bf16.msra.mxu0 0
        %4088 = vmatprep.subr.bf16.mxu0 0
        %4089 = vmatpush2.bf16.msra.mxu0 0
        %4090 = vmatprep.subr.bf16.mxu0 0
        %4091 = vmatpush2.bf16.msra.mxu0 0
        %4092 = vmatprep.subr.bf16.mxu0 0
        %4093 = vmatpush2.bf16.msra.mxu0 0
        %4094 = vmatprep.subr.bf16.mxu0 0
        %4095 = vmatpush2.bf16.msra.mxu0 0
        %4096 = vmatprep.subr.bf16.mxu0 0
        %4097 = vmatpush2.bf16.msra.mxu0 0
        %4098 = vmatprep.mubr.bf16.mxu0 0
        %4099 = vmatmul.mubr.bf16.gmra.mxu0 %v3957
        %v4100 = vpop.f32.mrf.mxu0
        %v4101 = vadd.f32 %v3979, %v4100
        %v4102 = vpop.f32.mrf.mxu0
        %v4103 = vadd.f32 %v3983, %v4102
        %v4104 = vpop.f32.mrf.mxu0
        %v4105 = vadd.f32 %v3979, %v4104
        %v4106 = vpop.f32.mrf.mxu0
        %v4107 = vadd.f32 %v3983, %v4106
        %4108 = vdwg.mxu0
        %v4109 = vmax.f32 %v4101, 0.0
        %v4110 = vmax.f32 %v4103, 0.0
        %v4111 = vmax.f32 %v4105, 0.0
        %v4112 = vmax.f32 %v4107, 0.0
        %v4113 = vpack.c.bf16 %v4111, %v4109
        %v4114 = vpack.c.bf16 %v4112, %v4110
        %v4115 = vld [vmem:[%s1107] sm:$0xf]
        %v4116 = vld [vmem:[%s1107 + $0x4] sm:$0xf]
        %v4117 = vld [vmem:[%s1107 + $0x8] sm:$0xf]
        %v4118 = vld [vmem:[%s1107 + $0xc] sm:$0xf]
        %v4119 = vld [vmem:[%s1107 + $0x10] sm:$0xf]
        %v4120 = vld [vmem:[%s1107 + $0x14] sm:$0xf]
        %v4121 = vld [vmem:[%s1107 + $0x18] sm:$0xf]
        %v4122 = vld [vmem:[%s1107 + $0x1c] sm:$0xf]
        %v4123 = vld [vmem:[%s1107 + $0x20] sm:$0xf]
        %v4124 = vld [vmem:[%s1107 + $0x24] sm:$0xf]
        %v4125 = vld [vmem:[%s1107 + $0x28] sm:$0xf]
        %v4126 = vld [vmem:[%s1107 + $0x2c] sm:$0xf]
        %v4127 = vld [vmem:[%s1107 + $0x30] sm:$0xf]
        %v4128 = vld [vmem:[%s1107 + $0x34] sm:$0xf]
        %v4129 = vld [vmem:[%s1107 + $0x38] sm:$0xf]
        %v4130 = vld [vmem:[%s1107 + $0x3c] sm:$0xf]
        %v4131 = vld [vmem:[%s1107 + $0x40] sm:$0xf]
        %v4132 = vld [vmem:[%s1107 + $0x44] sm:$0xf]
        %v4133 = vld [vmem:[%s1107 + $0x48] sm:$0xf]
        %v4134 = vld [vmem:[%s1107 + $0x4c] sm:$0xf]
        %v4135 = vld [vmem:[%s1107 + $0x50] sm:$0xf]
        %v4136 = vld [vmem:[%s1107 + $0x54] sm:$0xf]
        %v4137 = vld [vmem:[%s1107 + $0x58] sm:$0xf]
        %v4138 = vld [vmem:[%s1107 + $0x5c] sm:$0xf]
        %v4139 = vld [vmem:[%s1107 + $0x60] sm:$0xf]
        %v4140 = vld [vmem:[%s1107 + $0x64] sm:$0xf]
        %v4141 = vld [vmem:[%s1107 + $0x68] sm:$0xf]
        %v4142 = vld [vmem:[%s1107 + $0x6c] sm:$0xf]
        %v4143 = vld [vmem:[%s1107 + $0x70] sm:$0xf]
        %v4144 = vld [vmem:[%s1107 + $0x74] sm:$0xf]
        %v4145 = vld [vmem:[%s1107 + $0x78] sm:$0xf]
        %v4146 = vld [vmem:[%s1107 + $0x7c] sm:$0xf]
        %v4147 = vld [vmem:[%s1264] sm:$0x1]
        %v4149 = vlaneseq
        %v4150 = vshrl.u32 %v4149, 7
        %v4151 = vsub.s32 0, %v4150
        %v4152 = vrot.slane %v4147, %v4151
        %v4186 = vunpack.c.l.b16 %v4115
        %v4187 = vunpack.c.l.b16 %v4116
        %v4188 = vunpack.c.l.b16 %v4117
        %v4189 = vunpack.c.l.b16 %v4118
        %v4190 = vunpack.c.l.b16 %v4119
        %v4191 = vunpack.c.l.b16 %v4120
        %v4192 = vunpack.c.l.b16 %v4121
        %v4193 = vunpack.c.l.b16 %v4122
        %v4194 = vunpack.c.l.b16 %v4123
        %v4195 = vunpack.c.l.b16 %v4124
        %v4196 = vunpack.c.l.b16 %v4125
        %v4197 = vunpack.c.l.b16 %v4126
        %v4198 = vunpack.c.l.b16 %v4127
        %v4199 = vunpack.c.l.b16 %v4128
        %v4200 = vunpack.c.l.b16 %v4129
        %v4201 = vunpack.c.l.b16 %v4130
        %v4202 = vunpack.c.l.b16 %v4131
        %v4203 = vunpack.c.l.b16 %v4132
        %v4204 = vunpack.c.l.b16 %v4133
        %v4205 = vunpack.c.l.b16 %v4134
        %v4206 = vunpack.c.l.b16 %v4135
        %v4207 = vunpack.c.l.b16 %v4136
        %v4208 = vunpack.c.l.b16 %v4137
        %v4209 = vunpack.c.l.b16 %v4138
        %v4210 = vunpack.c.l.b16 %v4139
        %v4211 = vunpack.c.l.b16 %v4140
        %v4212 = vunpack.c.l.b16 %v4141
        %v4213 = vunpack.c.l.b16 %v4142
        %v4214 = vunpack.c.l.b16 %v4143
        %v4215 = vunpack.c.l.b16 %v4144
        %v4216 = vunpack.c.l.b16 %v4145
        %v4217 = vunpack.c.l.b16 %v4146
        %v4218 = vpack.c.b16 %v4187, %v4186
        %v4219 = vpack.c.b16 %v4189, %v4188
        %v4220 = vpack.c.b16 %v4191, %v4190
        %v4221 = vpack.c.b16 %v4193, %v4192
        %v4222 = vpack.c.b16 %v4195, %v4194
        %v4223 = vpack.c.b16 %v4197, %v4196
        %v4224 = vpack.c.b16 %v4199, %v4198
        %v4225 = vpack.c.b16 %v4201, %v4200
        %v4226 = vpack.c.b16 %v4203, %v4202
        %v4227 = vpack.c.b16 %v4205, %v4204
        %v4228 = vpack.c.b16 %v4207, %v4206
        %v4229 = vpack.c.b16 %v4209, %v4208
        %v4230 = vpack.c.b16 %v4211, %v4210
        %v4231 = vpack.c.b16 %v4213, %v4212
        %v4232 = vpack.c.b16 %v4215, %v4214
        %v4233 = vpack.c.b16 %v4217, %v4216
        %4250 = vmatprep.subr.bf16.mxu0 0
        %4251 = vmatpush1.bf16.msra.mxu0 %v4225
        %4252 = vmatprep.subr.bf16.mxu0 0
        %4253 = vmatpush1.bf16.msra.mxu0 %v4224
        %4254 = vmatprep.subr.bf16.mxu0 0
        %4255 = vmatpush1.bf16.msra.mxu0 %v4223
        %4256 = vmatprep.subr.bf16.mxu0 0
        %4257 = vmatpush1.bf16.msra.mxu0 %v4222
        %4258 = vmatprep.subr.bf16.mxu0 0
        %4259 = vmatpush1.bf16.msra.mxu0 %v4221
        %4260 = vmatprep.subr.bf16.mxu0 0
        %4261 = vmatpush1.bf16.msra.mxu0 %v4220
        %4262 = vmatprep.subr.bf16.mxu0 0
        %4263 = vmatpush1.bf16.msra.mxu0 %v4219
        %4264 = vmatprep.subr.bf16.mxu0 0
        %4265 = vmatpush1.bf16.msra.mxu0 %v4218
        %4266 = vmatprep.subr.bf16.mxu0 0
        %4267 = vmatpush2.bf16.msra.mxu0 %v4233
        %4268 = vmatprep.subr.bf16.mxu0 0
        %4269 = vmatpush2.bf16.msra.mxu0 %v4232
        %4270 = vmatprep.subr.bf16.mxu0 0
        %4271 = vmatpush2.bf16.msra.mxu0 %v4231
        %4272 = vmatprep.subr.bf16.mxu0 0
        %4273 = vmatpush2.bf16.msra.mxu0 %v4230
        %4274 = vmatprep.subr.bf16.mxu0 0
        %4275 = vmatpush2.bf16.msra.mxu0 %v4229
        %4276 = vmatprep.subr.bf16.mxu0 0
        %4277 = vmatpush2.bf16.msra.mxu0 %v4228
        %4278 = vmatprep.subr.bf16.mxu0 0
        %4279 = vmatpush2.bf16.msra.mxu0 %v4227
        %4280 = vmatprep.subr.bf16.mxu0 0
        %4281 = vmatpush2.bf16.msra.mxu0 %v4226
        %4282 = vmatprep.mubr.bf16.mxu0 %v4114
        %4283 = vmatmul.mubr.bf16.gmra.mxu0 %v4113
        %v4284 = vpop.f32.mrf.mxu0
        %v4285 = vadd.f32 %v4152, %v4284
        %v4286 = vpop.f32.mrf.mxu0
        %v4287 = vpop.f32.mrf.mxu0
        %v4288 = vadd.f32 %v4152, %v4287
        %v4289 = vpop.f32.mrf.mxu0
        %4290 = vdwg.mxu0
        %v4291 = vadd.f32 %v3955, %v4285
        %v4292 = vadd.f32 %v3956, %v4288
        %v4293 = vld [vmem:[%s1279] sm:$0x1]
        %v4294 = vld [vmem:[%s1282] sm:$0x1]
        %4295 = vadd.xlane.f32.xlu0 %v4291
        %v4296 = vpop.xlane.xlu0 %4295
        %4297 = vadd.xlane.f32.xlu0 %v4292
        %v4298 = vpop.xlane.xlu0 %4297
        %v4299 = vmul.f32 %v4296, %v2585
        %v4300 = vmul.f32 %v4298, %v2585
        %v4301 = vmul.f32 %v4291, %v4291
        %v4302 = vmul.f32 %v4292, %v4292
        %4303 = vadd.xlane.f32.xlu0 %v4301
        %v4304 = vpop.xlane.xlu0 %4303
        %4305 = vadd.xlane.f32.xlu0 %v4302
        %v4306 = vpop.xlane.xlu0 %4305
        %v4307 = vmul.f32 %v4304, %v2585
        %v4308 = vmul.f32 %v4306, %v2585
        %v4309 = vmul.f32 %v4299, %v4299
        %v4310 = vmul.f32 %v4300, %v4300
        %v4311 = vsub.f32 %v4307, %v4309
        %v4312 = vsub.f32 %v4308, %v4310
        %v4313 = vmax.f32 %v4311, 0.0
        %v4314 = vmax.f32 %v4312, 0.0
        %v4315 = vsub.f32 %v4291, %v4299
        %v4316 = vsub.f32 %v4292, %v4300
        %v4317 = vadd.f32 %v4313, 1e-05
        %v4318 = vadd.f32 %v4314, 1e-05
        %v4319 = vrsqrt.pop %v4317
        %v4320 = vrsqrt.pop %v4318
        %v4321 = vmul.f32 %v4315, %v4319
        %v4322 = vmul.f32 %v4316, %v4320
        %v4324 = vlaneseq
        %v4325 = vshrl.u32 %v4324, 7
        %v4326 = vsub.s32 0, %v4325
        %v4327 = vrot.slane %v4293, %v4326
        %v4329 = vmul.f32 %v4321, %v4327
        %v4330 = vmul.f32 %v4322, %v4327
        %v4332 = vlaneseq
        %v4333 = vshrl.u32 %v4332, 7
        %v4334 = vsub.s32 0, %v4333
        %v4335 = vrot.slane %v4294, %v4334
        %v4337 = vadd.f32 %v4329, %v4335
        %v4338 = vadd.f32 %v4330, %v4335
        %4339 = vst [vmem:[#allocation2] sm:$0xff] %v4337
        %4340 = vst [vmem:[#allocation2 + $0x8] sm:$0xff] %v4338
        %p4341 = scmp.eq.s32.totalorder %s44, 1
        // Predicated region
        $region169: #{tpu_custom_call.1} parent=115 // pred_check
          %p4342 = pneg %p4341
        $region170: #{tpu_custom_call.1} parent=115 // pred_check_branch
          %4344 = sbr.rel (%p4342) target = $region172
        $region171: #{tpu_custom_call.1} parent=115 // pred_region
          %4345 = vst [vmem:[#allocation19] sm:$0xff] %v4337
          %4346 = vst [vmem:[#allocation19 + $0x8] sm:$0xff] %v4338
        $region172: #{tpu_custom_call.1} parent=115 // pred_fallthru
          _
        // Predicated region
        $region173: #{tpu_custom_call.1} parent=115 // pred_check
          %p4347 = pneg %p693
        $region174: #{tpu_custom_call.1} parent=115 // pred_check_branch
          %4349 = sbr.rel (%p4347) target = $region176
        $region175: #{tpu_custom_call.1} parent=115 // pred_region
          %s4350 = smul.u32 2, %s43
          %s4352 = ssub.s32 256, 256
          %4353 = vsyncadd [#allocation5], %s4352
          %s4354 = smul.addr %s4350, 128
          %s4355 = scalar_lea.hbm %s24, %s4354
          %s4356 = sshll.u32 [#allocation19], 4
          %s4357 = int_to_ptr.vmem [resolvable:$true] %s4356
          %4362 = dma.vmem_to_hbm [thread:$0]  %s4357, 256, %s4355, [#allocation5], 128, 128, 8
        $region176: #{tpu_custom_call.1} parent=115 // pred_fallthru
          _
        // Predicated region
        $region177: #{tpu_custom_call.1} parent=115 // pred_check
          %p4363 = pneg %p693
        $region178: #{tpu_custom_call.1} parent=115 // pred_check_branch
          %4365 = sbr.rel (%p4363) target = $region180
        $region179: #{tpu_custom_call.1} parent=115 // pred_region
          %4366 = dma.done [#allocation5], 256
        $region180: #{tpu_custom_call.1} parent=115 // pred_fallthru
          _
      $region116: #{tpu_custom_call.1} parent=5 // pred_fallthru
        _
      %p4367 = scmp.le.s32.totalorder 2, %s34
      // Predicated region
      $region181: #{tpu_custom_call.1} parent=5 // pred_check
        %p4368 = pneg %p4367
      $region182: #{tpu_custom_call.1} parent=5 // pred_check_branch
        %4370 = sbr.rel (%p4368) target = $region184
      $region183: #{tpu_custom_call.1} parent=5 // pred_region
        %s4371 = ssub.s32 %s34, 2
      $region184: #{tpu_custom_call.1} parent=5 // pred_fallthru
        _
    $region6: #{tpu_custom_call.1} parent=1 // loop_footer
      %s38 = sadd.s32 1, %s34
    $region7: #{tpu_custom_call.1} parent=1 // loop_footer_branch
      %33 = sbr.rel target = $region3
    $region8: #{tpu_custom_call.1} parent=1 // loop_exit
      _
    %4372 = vsyncpa [#allocation4], 1
    %s4373 = scalar_lea.sflag [#allocation4], 1
    %4374 = vsyncpa %s4373, 1
    %4375 = vsyncpa [#allocation7], 1
    %4376 = vsyncpa [#allocation10], 1
    %4377 = vsyncpa [#allocation5], 1
    %s4378 = scalar_lea.sflag [#allocation5], 1
    %4379 = vsyncpa %s4378, 1

</llo_original>
